<compile_context>
chip_gen: v7x
topology: tpu7x:2x2x1
jax: 0.10.0
libtpu: 0.0.40
codegen_flags: <defaults>
</compile_context>

<pallas_src>
import functools

import jax
import jax.numpy as jnp
import numpy as np
from jax import lax
from jax.experimental import pallas as pl
from jax.experimental.pallas import tpu as pltpu

_LANES = 128
_CHUNK_ROWS = 64        # rows per vreg-resident inner chunk (bounds live ranges)
_MAX_TILE_ROWS = 1024   # 1024x128 (f32 + bf16) block ~= 768 KiB; x2 pipeline bufs


def _ece_kernel(conf_ref, acc_ref, cnt_ref, sc_ref, sa_ref, *,
                boundaries, chunk, n_chunks):
    """Per-tile telescoped cumulative bin statistics.

    For every boundary b, lane-wise partials (no cross-lane reduce in the hot
    loop):
      cnt[b, :] = sum_rows [conf > boundaries[b]]          (MXU, exact 0/1)
      sa [b, :] = sum_rows acc  * [conf > boundaries[b]]   (MXU, exact 0/1)
      sc [b, :] = sum_rows conf * [conf > boundaries[b]]   (VPU, f32)
    Per-bin (lower, upper] statistics are adjacent differences, taken in the
    tiny JAX combine outside the kernel.
    """
    n_bnd = len(boundaries)
    ones_row = jnp.ones((1, chunk), dtype=jnp.bfloat16)    # hoisted constant

    def chunk_body(c, carry):
        cnt, sc, sa = carry
        off = pl.multiple_of(c * chunk, chunk)
        conf = conf_ref[pl.ds(off, chunk), :]               # (chunk, 128) f32
        acc = acc_ref[pl.ds(off, chunk), :]                 # (chunk, 128) bf16 0/1
        acc_zero = jnp.zeros_like(acc)                      # hoisted out of bin loop
        conf_zero = jnp.zeros_like(conf)

        cnt_rows, sc_rows, sa_rows = [], [], []
        for b in range(n_bnd):                              # unrolled bin loop
            gt = conf > boundaries[b]
            gt_b = gt.astype(jnp.bfloat16)                  # exact 0/1
            acc_b = jnp.where(gt, acc, acc_zero)            # exact 0/1
            conf_b = jnp.where(gt, conf, conf_zero)         # f32 payload
            # 2/3 of the sublane reductions on the (otherwise idle) MXU:
            cnt_rows.append(jnp.dot(ones_row, gt_b,
                                    preferred_element_type=jnp.float32))
            sa_rows.append(jnp.dot(ones_row, acc_b,
                                   preferred_element_type=jnp.float32))
            # ... and 1/3 (the f32 confidence payload) on the VPU.
            sc_rows.append(jnp.sum(conf_b, axis=0, keepdims=True))

        cnt = cnt + jnp.concatenate(cnt_rows, axis=0)
        sc = sc + jnp.concatenate(sc_rows, axis=0)
        sa = sa + jnp.concatenate(sa_rows, axis=0)
        return cnt, sc, sa

    zeros = jnp.zeros((n_bnd, _LANES), jnp.float32)
    cnt, sc, sa = lax.fori_loop(0, n_chunks, chunk_body, (zeros, zeros, zeros))

    # One dense store per payload per grid step (no masked per-bin RMWs).
    cnt_ref[0] = cnt
    sc_ref[0] = sc
    sa_ref[0] = sa


@functools.partial(jax.jit, static_argnames=("n_bins",))
def ece_loss_pallas(confidences, predictions, labels, n_bins=15):
    """Returns ece as a shape-(1,) float32 array (matches torch.zeros(1))."""
    n = confidences.shape[0]

    conf = confidences.astype(jnp.float32)
    acc = (predictions == labels).astype(jnp.bfloat16)      # 0/1, exact in bf16

    rows = pl.cdiv(n, _LANES)
    rows_c = pl.cdiv(rows, _CHUNK_ROWS) * _CHUNK_ROWS
    tile_rows = min(_MAX_TILE_ROWS, rows_c)
    rows_pad = pl.cdiv(rows_c, tile_rows) * tile_rows
    grid = rows_pad // tile_rows
    n_chunks = tile_rows // _CHUNK_ROWS
    pad = rows_pad * _LANES - n

    # compare + pad + reshape fuse into one XLA prep pass; the kernel itself
    # is VALU/MXU-bound, so this is not on the binding slot.
    conf2 = jnp.pad(conf, (0, pad), constant_values=-1.0).reshape(rows_pad, _LANES)
    acc2 = jnp.pad(acc, (0, pad)).reshape(rows_pad, _LANES)

    boundaries = np.linspace(0.0, 1.0, n_bins + 1, dtype=np.float32)
    n_bnd = n_bins + 1
    n_bnd_pad = max(8, ((n_bnd + 7) // 8) * 8)               # 16 -> 16 sublanes
    bnd = np.full((n_bnd_pad,), 2.0, dtype=np.float32)       # pad rows: conf>2 == 0
    bnd[:n_bnd] = boundaries
    bnd_t = tuple(float(b) for b in bnd)                     # f32 round-trip is exact

    kernel = functools.partial(_ece_kernel, boundaries=bnd_t,
                               chunk=_CHUNK_ROWS, n_chunks=n_chunks)

    part_shape = jax.ShapeDtypeStruct((grid, n_bnd_pad, _LANES), jnp.float32)
    out_spec = pl.BlockSpec((1, n_bnd_pad, _LANES), lambda i: (i, 0, 0))

    cnt_p, sc_p, sa_p = pl.pallas_call(
        kernel,
        grid=(grid,),
        in_specs=[
            pl.BlockSpec((tile_rows, _LANES), lambda i: (i, 0)),
            pl.BlockSpec((tile_rows, _LANES), lambda i: (i, 0)),
        ],
        out_specs=[out_spec, out_spec, out_spec],
        out_shape=[part_shape, part_shape, part_shape],
        compiler_params=pltpu.CompilerParams(
            dimension_semantics=("parallel",)),               # both v7x TCs usable
    )(conf2, acc2)

    # Tiny (n_bins x grid x 128) combine in plain JAX: difference adjacent
    # boundaries on the lane partials (exact telescoping), then reduce.
    cnt_b = jnp.sum(cnt_p[:, :n_bins, :] - cnt_p[:, 1:n_bins + 1, :], axis=(0, 2))
    sc_b = jnp.sum(sc_p[:, :n_bins, :] - sc_p[:, 1:n_bins + 1, :], axis=(0, 2))
    sa_b = jnp.sum(sa_p[:, :n_bins, :] - sa_p[:, 1:n_bins + 1, :], axis=(0, 2))

    safe = jnp.maximum(cnt_b, jnp.float32(1.0))
    prop = cnt_b * jnp.float32(1.0 / float(n))
    gap = jnp.abs(sc_b - sa_b) / safe
    ece = jnp.sum(jnp.where(cnt_b > 0.0, gap * prop, jnp.float32(0.0)))
    return ece.reshape(1)


def _ece_reference(confidences, predictions, labels, n_bins=15):
    conf = np.asarray(confidences, dtype=np.float32)
    acc = (np.asarray(predictions) == np.asarray(labels)).astype(np.float32)
    boundaries = np.linspace(0.0, 1.0, n_bins + 1, dtype=np.float32)
    ece = 0.0
    for lower, upper in zip(boundaries[:-1], boundaries[1:]):
        in_bin = (conf > lower) & (conf <= upper)
        prop = in_bin.astype(np.float32).mean()
        if prop > 0:
            acc_in = acc[in_bin].mean()
            conf_in = conf[in_bin].mean()
            ece += abs(conf_in - acc_in) * prop
    return np.array([ece], dtype=np.float32)


if __name__ == "__main__":
    key = jax.random.PRNGKey(0)
    NUM_CLASSES = 10

    # Small path (single tile; exercises padding 2000 -> 8192 lane slots).
    N = 2000
    k1, k2, k3, k4, k5, k6 = jax.random.split(key, 6)
    confidences = jax.random.uniform(k1, (N,), dtype=jnp.float32,
                                     minval=0.05, maxval=1.0)
    predictions = jax.random.randint(k2, (N,), 0, NUM_CLASSES, dtype=jnp.int32)
    labels = jax.random.randint(k3, (N,), 0, NUM_CLASSES, dtype=jnp.int32)

    ece = ece_loss_pallas(confidences, predictions, labels, n_bins=15)
    jax.block_until_ready(ece)
    ref = _ece_reference(np.asarray(confidences), np.asarray(predictions),
                         np.asarray(labels))
    np.testing.assert_allclose(np.asarray(ece), ref, rtol=5e-4, atol=5e-5)

    # Multi-tile path (grid > 1, "parallel" row-tile axis, chunked fori_loop).
    N2 = 300_000
    conf2 = jax.random.uniform(k4, (N2,), dtype=jnp.float32,
                               minval=0.05, maxval=1.0)
    pred2 = jax.random.randint(k5, (N2,), 0, NUM_CLASSES, dtype=jnp.int32)
    lab2 = jax.random.randint(k6, (N2,), 0, NUM_CLASSES, dtype=jnp.int32)

    ece2 = ece_loss_pallas(conf2, pred2, lab2, n_bins=15)
    jax.block_until_ready(ece2)
    ref2 = _ece_reference(np.asarray(conf2), np.asarray(pred2), np.asarray(lab2))
    np.testing.assert_allclose(np.asarray(ece2), ref2, rtol=5e-4, atol=5e-5)

    print("KERNEL_OK")
</pallas_src>

<mosaic_0001>
module attributes {stable_mosaic.version = 11 : i64} {
  func.func @_ece_kernel(%arg0: i32, %arg1: memref<64x128xf32, #tpu.memory_space<vmem>>, %arg2: memref<64x128xbf16, #tpu.memory_space<vmem>>, %arg3: memref<1x16x128xf32, #tpu.memory_space<vmem>>, %arg4: memref<1x16x128xf32, #tpu.memory_space<vmem>>, %arg5: memref<1x16x128xf32, #tpu.memory_space<vmem>>) attributes {dimension_semantics = [#tpu.dimension_semantics<parallel>], iteration_bounds = array<i64: 1>, scalar_prefetch = 0 : i64, scratch_operands = 0 : i64, tpu.core_type = #tpu.core_type<tc>, window_params = [{transform_indices = @transform_0, window_bounds = array<i64: 64, 128>}, {transform_indices = @transform_1, window_bounds = array<i64: 64, 128>}, {transform_indices = @transform_2, window_bounds = array<i64: 1, 16, 128>}, {transform_indices = @transform_3, window_bounds = array<i64: 1, 16, 128>}, {transform_indices = @transform_4, window_bounds = array<i64: 1, 16, 128>}]} {
    %cst = arith.constant 1.000000e+00 : bf16
    %0 = vector.broadcast %cst : bf16 to vector<1x64xbf16>
    %cst_0 = arith.constant 0.000000e+00 : f32
    %1 = vector.broadcast %cst_0 : f32 to vector<16x128xf32>
    %c0_i32 = arith.constant 0 : i32
    %c64_i32 = arith.constant 64 : i32
    %2 = arith.muli %c0_i32, %c64_i32 : i32
    %3 = tpu.assume_multiple %2, 64 : i32
    %4 = arith.index_cast %3 : i32 to index
    %c0 = arith.constant 0 : index
    %5 = vector.load %arg1[%4, %c0] : memref<64x128xf32, #tpu.memory_space<vmem>>, vector<64x128xf32>
    %6 = arith.index_cast %3 : i32 to index
    %c0_1 = arith.constant 0 : index
    %7 = vector.load %arg2[%6, %c0_1] : memref<64x128xbf16, #tpu.memory_space<vmem>>, vector<64x128xbf16>
    %cst_2 = arith.constant 0.000000e+00 : bf16
    %8 = vector.broadcast %cst_2 : bf16 to vector<64x128xbf16>
    %cst_3 = arith.constant 0.000000e+00 : f32
    %9 = vector.broadcast %cst_3 : f32 to vector<64x128xf32>
    %cst_4 = arith.constant 0.000000e+00 : f32
    %10 = vector.broadcast %cst_4 : f32 to vector<64x128xf32>
    %11 = arith.cmpf ogt, %5, %10 : vector<64x128xf32>
    %12 = arith.extui %11 : vector<64x128xi1> to vector<64x128xi32>
    %13 = arith.sitofp %12 : vector<64x128xi32> to vector<64x128xf32>
    %14 = arith.truncf %13 : vector<64x128xf32> to vector<64x128xbf16>
    %15 = arith.select %11, %7, %8 : vector<64x128xi1>, vector<64x128xbf16>
    %16 = arith.select %11, %5, %9 : vector<64x128xi1>, vector<64x128xf32>
    %cst_5 = arith.constant dense<0.000000e+00> : vector<1x128xf32>
    %17 = tpu.matmul %0, %14, %cst_5 {dimension_numbers = #tpu.dot_dimension_numbers<[1], [0], [0], [1], [0, 0, 1, 1], [], []>} : vector<1x64xbf16>, vector<64x128xbf16>, vector<1x128xf32> -> vector<1x128xf32>
    %cst_6 = arith.constant dense<0.000000e+00> : vector<1x128xf32>
    %18 = tpu.matmul %0, %15, %cst_6 {dimension_numbers = #tpu.dot_dimension_numbers<[1], [0], [0], [1], [0, 0, 1, 1], [], []>} : vector<1x64xbf16>, vector<64x128xbf16>, vector<1x128xf32> -> vector<1x128xf32>
    %cst_7 = arith.constant dense<0.000000e+00> : vector<128xf32>
    %19 = vector.multi_reduction <add>, %16, %cst_7 [0] : vector<64x128xf32> to vector<128xf32>
    %20 = vector.shape_cast %19 : vector<128xf32> to vector<1x128xf32>
    %cst_8 = arith.constant 0.0666666701 : f32
    %21 = vector.broadcast %cst_8 : f32 to vector<64x128xf32>
    %22 = arith.cmpf ogt, %5, %21 : vector<64x128xf32>
    %23 = arith.extui %22 : vector<64x128xi1> to vector<64x128xi32>
    %24 = arith.sitofp %23 : vector<64x128xi32> to vector<64x128xf32>
    %25 = arith.truncf %24 : vector<64x128xf32> to vector<64x128xbf16>
    %26 = arith.select %22, %7, %8 : vector<64x128xi1>, vector<64x128xbf16>
    %27 = arith.select %22, %5, %9 : vector<64x128xi1>, vector<64x128xf32>
    %cst_9 = arith.constant dense<0.000000e+00> : vector<1x128xf32>
    %28 = tpu.matmul %0, %25, %cst_9 {dimension_numbers = #tpu.dot_dimension_numbers<[1], [0], [0], [1], [0, 0, 1, 1], [], []>} : vector<1x64xbf16>, vector<64x128xbf16>, vector<1x128xf32> -> vector<1x128xf32>
    %cst_10 = arith.constant dense<0.000000e+00> : vector<1x128xf32>
    %29 = tpu.matmul %0, %26, %cst_10 {dimension_numbers = #tpu.dot_dimension_numbers<[1], [0], [0], [1], [0, 0, 1, 1], [], []>} : vector<1x64xbf16>, vector<64x128xbf16>, vector<1x128xf32> -> vector<1x128xf32>
    %cst_11 = arith.constant dense<0.000000e+00> : vector<128xf32>
    %30 = vector.multi_reduction <add>, %27, %cst_11 [0] : vector<64x128xf32> to vector<128xf32>
    %31 = vector.shape_cast %30 : vector<128xf32> to vector<1x128xf32>
    %cst_12 = arith.constant 0.13333334 : f32
    %32 = vector.broadcast %cst_12 : f32 to vector<64x128xf32>
    %33 = arith.cmpf ogt, %5, %32 : vector<64x128xf32>
    %34 = arith.extui %33 : vector<64x128xi1> to vector<64x128xi32>
    %35 = arith.sitofp %34 : vector<64x128xi32> to vector<64x128xf32>
    %36 = arith.truncf %35 : vector<64x128xf32> to vector<64x128xbf16>
    %37 = arith.select %33, %7, %8 : vector<64x128xi1>, vector<64x128xbf16>
    %38 = arith.select %33, %5, %9 : vector<64x128xi1>, vector<64x128xf32>
    %cst_13 = arith.constant dense<0.000000e+00> : vector<1x128xf32>
    %39 = tpu.matmul %0, %36, %cst_13 {dimension_numbers = #tpu.dot_dimension_numbers<[1], [0], [0], [1], [0, 0, 1, 1], [], []>} : vector<1x64xbf16>, vector<64x128xbf16>, vector<1x128xf32> -> vector<1x128xf32>
    %cst_14 = arith.constant dense<0.000000e+00> : vector<1x128xf32>
    %40 = tpu.matmul %0, %37, %cst_14 {dimension_numbers = #tpu.dot_dimension_numbers<[1], [0], [0], [1], [0, 0, 1, 1], [], []>} : vector<1x64xbf16>, vector<64x128xbf16>, vector<1x128xf32> -> vector<1x128xf32>
    %cst_15 = arith.constant dense<0.000000e+00> : vector<128xf32>
    %41 = vector.multi_reduction <add>, %38, %cst_15 [0] : vector<64x128xf32> to vector<128xf32>
    %42 = vector.shape_cast %41 : vector<128xf32> to vector<1x128xf32>
    %cst_16 = arith.constant 2.000000e-01 : f32
    %43 = vector.broadcast %cst_16 : f32 to vector<64x128xf32>
    %44 = arith.cmpf ogt, %5, %43 : vector<64x128xf32>
    %45 = arith.extui %44 : vector<64x128xi1> to vector<64x128xi32>
    %46 = arith.sitofp %45 : vector<64x128xi32> to vector<64x128xf32>
    %47 = arith.truncf %46 : vector<64x128xf32> to vector<64x128xbf16>
    %48 = arith.select %44, %7, %8 : vector<64x128xi1>, vector<64x128xbf16>
    %49 = arith.select %44, %5, %9 : vector<64x128xi1>, vector<64x128xf32>
    %cst_17 = arith.constant dense<0.000000e+00> : vector<1x128xf32>
    %50 = tpu.matmul %0, %47, %cst_17 {dimension_numbers = #tpu.dot_dimension_numbers<[1], [0], [0], [1], [0, 0, 1, 1], [], []>} : vector<1x64xbf16>, vector<64x128xbf16>, vector<1x128xf32> -> vector<1x128xf32>
    %cst_18 = arith.constant dense<0.000000e+00> : vector<1x128xf32>
    %51 = tpu.matmul %0, %48, %cst_18 {dimension_numbers = #tpu.dot_dimension_numbers<[1], [0], [0], [1], [0, 0, 1, 1], [], []>} : vector<1x64xbf16>, vector<64x128xbf16>, vector<1x128xf32> -> vector<1x128xf32>
    %cst_19 = arith.constant dense<0.000000e+00> : vector<128xf32>
    %52 = vector.multi_reduction <add>, %49, %cst_19 [0] : vector<64x128xf32> to vector<128xf32>
    %53 = vector.shape_cast %52 : vector<128xf32> to vector<1x128xf32>
    %cst_20 = arith.constant 0.266666681 : f32
    %54 = vector.broadcast %cst_20 : f32 to vector<64x128xf32>
    %55 = arith.cmpf ogt, %5, %54 : vector<64x128xf32>
    %56 = arith.extui %55 : vector<64x128xi1> to vector<64x128xi32>
    %57 = arith.sitofp %56 : vector<64x128xi32> to vector<64x128xf32>
    %58 = arith.truncf %57 : vector<64x128xf32> to vector<64x128xbf16>
    %59 = arith.select %55, %7, %8 : vector<64x128xi1>, vector<64x128xbf16>
    %60 = arith.select %55, %5, %9 : vector<64x128xi1>, vector<64x128xf32>
    %cst_21 = arith.constant dense<0.000000e+00> : vector<1x128xf32>
    %61 = tpu.matmul %0, %58, %cst_21 {dimension_numbers = #tpu.dot_dimension_numbers<[1], [0], [0], [1], [0, 0, 1, 1], [], []>} : vector<1x64xbf16>, vector<64x128xbf16>, vector<1x128xf32> -> vector<1x128xf32>
    %cst_22 = arith.constant dense<0.000000e+00> : vector<1x128xf32>
    %62 = tpu.matmul %0, %59, %cst_22 {dimension_numbers = #tpu.dot_dimension_numbers<[1], [0], [0], [1], [0, 0, 1, 1], [], []>} : vector<1x64xbf16>, vector<64x128xbf16>, vector<1x128xf32> -> vector<1x128xf32>
    %cst_23 = arith.constant dense<0.000000e+00> : vector<128xf32>
    %63 = vector.multi_reduction <add>, %60, %cst_23 [0] : vector<64x128xf32> to vector<128xf32>
    %64 = vector.shape_cast %63 : vector<128xf32> to vector<1x128xf32>
    %cst_24 = arith.constant 0.333333343 : f32
    %65 = vector.broadcast %cst_24 : f32 to vector<64x128xf32>
    %66 = arith.cmpf ogt, %5, %65 : vector<64x128xf32>
    %67 = arith.extui %66 : vector<64x128xi1> to vector<64x128xi32>
    %68 = arith.sitofp %67 : vector<64x128xi32> to vector<64x128xf32>
    %69 = arith.truncf %68 : vector<64x128xf32> to vector<64x128xbf16>
    %70 = arith.select %66, %7, %8 : vector<64x128xi1>, vector<64x128xbf16>
    %71 = arith.select %66, %5, %9 : vector<64x128xi1>, vector<64x128xf32>
    %cst_25 = arith.constant dense<0.000000e+00> : vector<1x128xf32>
    %72 = tpu.matmul %0, %69, %cst_25 {dimension_numbers = #tpu.dot_dimension_numbers<[1], [0], [0], [1], [0, 0, 1, 1], [], []>} : vector<1x64xbf16>, vector<64x128xbf16>, vector<1x128xf32> -> vector<1x128xf32>
    %cst_26 = arith.constant dense<0.000000e+00> : vector<1x128xf32>
    %73 = tpu.matmul %0, %70, %cst_26 {dimension_numbers = #tpu.dot_dimension_numbers<[1], [0], [0], [1], [0, 0, 1, 1], [], []>} : vector<1x64xbf16>, vector<64x128xbf16>, vector<1x128xf32> -> vector<1x128xf32>
    %cst_27 = arith.constant dense<0.000000e+00> : vector<128xf32>
    %74 = vector.multi_reduction <add>, %71, %cst_27 [0] : vector<64x128xf32> to vector<128xf32>
    %75 = vector.shape_cast %74 : vector<128xf32> to vector<1x128xf32>
    %cst_28 = arith.constant 4.000000e-01 : f32
    %76 = vector.broadcast %cst_28 : f32 to vector<64x128xf32>
    %77 = arith.cmpf ogt, %5, %76 : vector<64x128xf32>
    %78 = arith.extui %77 : vector<64x128xi1> to vector<64x128xi32>
    %79 = arith.sitofp %78 : vector<64x128xi32> to vector<64x128xf32>
    %80 = arith.truncf %79 : vector<64x128xf32> to vector<64x128xbf16>
    %81 = arith.select %77, %7, %8 : vector<64x128xi1>, vector<64x128xbf16>
    %82 = arith.select %77, %5, %9 : vector<64x128xi1>, vector<64x128xf32>
    %cst_29 = arith.constant dense<0.000000e+00> : vector<1x128xf32>
    %83 = tpu.matmul %0, %80, %cst_29 {dimension_numbers = #tpu.dot_dimension_numbers<[1], [0], [0], [1], [0, 0, 1, 1], [], []>} : vector<1x64xbf16>, vector<64x128xbf16>, vector<1x128xf32> -> vector<1x128xf32>
    %cst_30 = arith.constant dense<0.000000e+00> : vector<1x128xf32>
    %84 = tpu.matmul %0, %81, %cst_30 {dimension_numbers = #tpu.dot_dimension_numbers<[1], [0], [0], [1], [0, 0, 1, 1], [], []>} : vector<1x64xbf16>, vector<64x128xbf16>, vector<1x128xf32> -> vector<1x128xf32>
    %cst_31 = arith.constant dense<0.000000e+00> : vector<128xf32>
    %85 = vector.multi_reduction <add>, %82, %cst_31 [0] : vector<64x128xf32> to vector<128xf32>
    %86 = vector.shape_cast %85 : vector<128xf32> to vector<1x128xf32>
    %cst_32 = arith.constant 0.466666669 : f32
    %87 = vector.broadcast %cst_32 : f32 to vector<64x128xf32>
    %88 = arith.cmpf ogt, %5, %87 : vector<64x128xf32>
    %89 = arith.extui %88 : vector<64x128xi1> to vector<64x128xi32>
    %90 = arith.sitofp %89 : vector<64x128xi32> to vector<64x128xf32>
    %91 = arith.truncf %90 : vector<64x128xf32> to vector<64x128xbf16>
    %92 = arith.select %88, %7, %8 : vector<64x128xi1>, vector<64x128xbf16>
    %93 = arith.select %88, %5, %9 : vector<64x128xi1>, vector<64x128xf32>
    %cst_33 = arith.constant dense<0.000000e+00> : vector<1x128xf32>
    %94 = tpu.matmul %0, %91, %cst_33 {dimension_numbers = #tpu.dot_dimension_numbers<[1], [0], [0], [1], [0, 0, 1, 1], [], []>} : vector<1x64xbf16>, vector<64x128xbf16>, vector<1x128xf32> -> vector<1x128xf32>
    %cst_34 = arith.constant dense<0.000000e+00> : vector<1x128xf32>
    %95 = tpu.matmul %0, %92, %cst_34 {dimension_numbers = #tpu.dot_dimension_numbers<[1], [0], [0], [1], [0, 0, 1, 1], [], []>} : vector<1x64xbf16>, vector<64x128xbf16>, vector<1x128xf32> -> vector<1x128xf32>
    %cst_35 = arith.constant dense<0.000000e+00> : vector<128xf32>
    %96 = vector.multi_reduction <add>, %93, %cst_35 [0] : vector<64x128xf32> to vector<128xf32>
    %97 = vector.shape_cast %96 : vector<128xf32> to vector<1x128xf32>
    %cst_36 = arith.constant 0.533333361 : f32
    %98 = vector.broadcast %cst_36 : f32 to vector<64x128xf32>
    %99 = arith.cmpf ogt, %5, %98 : vector<64x128xf32>
    %100 = arith.extui %99 : vector<64x128xi1> to vector<64x128xi32>
    %101 = arith.sitofp %100 : vector<64x128xi32> to vector<64x128xf32>
    %102 = arith.truncf %101 : vector<64x128xf32> to vector<64x128xbf16>
    %103 = arith.select %99, %7, %8 : vector<64x128xi1>, vector<64x128xbf16>
    %104 = arith.select %99, %5, %9 : vector<64x128xi1>, vector<64x128xf32>
    %cst_37 = arith.constant dense<0.000000e+00> : vector<1x128xf32>
    %105 = tpu.matmul %0, %102, %cst_37 {dimension_numbers = #tpu.dot_dimension_numbers<[1], [0], [0], [1], [0, 0, 1, 1], [], []>} : vector<1x64xbf16>, vector<64x128xbf16>, vector<1x128xf32> -> vector<1x128xf32>
    %cst_38 = arith.constant dense<0.000000e+00> : vector<1x128xf32>
    %106 = tpu.matmul %0, %103, %cst_38 {dimension_numbers = #tpu.dot_dimension_numbers<[1], [0], [0], [1], [0, 0, 1, 1], [], []>} : vector<1x64xbf16>, vector<64x128xbf16>, vector<1x128xf32> -> vector<1x128xf32>
    %cst_39 = arith.constant dense<0.000000e+00> : vector<128xf32>
    %107 = vector.multi_reduction <add>, %104, %cst_39 [0] : vector<64x128xf32> to vector<128xf32>
    %108 = vector.shape_cast %107 : vector<128xf32> to vector<1x128xf32>
    %cst_40 = arith.constant 6.000000e-01 : f32
    %109 = vector.broadcast %cst_40 : f32 to vector<64x128xf32>
    %110 = arith.cmpf ogt, %5, %109 : vector<64x128xf32>
    %111 = arith.extui %110 : vector<64x128xi1> to vector<64x128xi32>
    %112 = arith.sitofp %111 : vector<64x128xi32> to vector<64x128xf32>
    %113 = arith.truncf %112 : vector<64x128xf32> to vector<64x128xbf16>
    %114 = arith.select %110, %7, %8 : vector<64x128xi1>, vector<64x128xbf16>
    %115 = arith.select %110, %5, %9 : vector<64x128xi1>, vector<64x128xf32>
    %cst_41 = arith.constant dense<0.000000e+00> : vector<1x128xf32>
    %116 = tpu.matmul %0, %113, %cst_41 {dimension_numbers = #tpu.dot_dimension_numbers<[1], [0], [0], [1], [0, 0, 1, 1], [], []>} : vector<1x64xbf16>, vector<64x128xbf16>, vector<1x128xf32> -> vector<1x128xf32>
    %cst_42 = arith.constant dense<0.000000e+00> : vector<1x128xf32>
    %117 = tpu.matmul %0, %114, %cst_42 {dimension_numbers = #tpu.dot_dimension_numbers<[1], [0], [0], [1], [0, 0, 1, 1], [], []>} : vector<1x64xbf16>, vector<64x128xbf16>, vector<1x128xf32> -> vector<1x128xf32>
    %cst_43 = arith.constant dense<0.000000e+00> : vector<128xf32>
    %118 = vector.multi_reduction <add>, %115, %cst_43 [0] : vector<64x128xf32> to vector<128xf32>
    %119 = vector.shape_cast %118 : vector<128xf32> to vector<1x128xf32>
    %cst_44 = arith.constant 0.666666686 : f32
    %120 = vector.broadcast %cst_44 : f32 to vector<64x128xf32>
    %121 = arith.cmpf ogt, %5, %120 : vector<64x128xf32>
    %122 = arith.extui %121 : vector<64x128xi1> to vector<64x128xi32>
    %123 = arith.sitofp %122 : vector<64x128xi32> to vector<64x128xf32>
    %124 = arith.truncf %123 : vector<64x128xf32> to vector<64x128xbf16>
    %125 = arith.select %121, %7, %8 : vector<64x128xi1>, vector<64x128xbf16>
    %126 = arith.select %121, %5, %9 : vector<64x128xi1>, vector<64x128xf32>
    %cst_45 = arith.constant dense<0.000000e+00> : vector<1x128xf32>
    %127 = tpu.matmul %0, %124, %cst_45 {dimension_numbers = #tpu.dot_dimension_numbers<[1], [0], [0], [1], [0, 0, 1, 1], [], []>} : vector<1x64xbf16>, vector<64x128xbf16>, vector<1x128xf32> -> vector<1x128xf32>
    %cst_46 = arith.constant dense<0.000000e+00> : vector<1x128xf32>
    %128 = tpu.matmul %0, %125, %cst_46 {dimension_numbers = #tpu.dot_dimension_numbers<[1], [0], [0], [1], [0, 0, 1, 1], [], []>} : vector<1x64xbf16>, vector<64x128xbf16>, vector<1x128xf32> -> vector<1x128xf32>
    %cst_47 = arith.constant dense<0.000000e+00> : vector<128xf32>
    %129 = vector.multi_reduction <add>, %126, %cst_47 [0] : vector<64x128xf32> to vector<128xf32>
    %130 = vector.shape_cast %129 : vector<128xf32> to vector<1x128xf32>
    %cst_48 = arith.constant 0.733333349 : f32
    %131 = vector.broadcast %cst_48 : f32 to vector<64x128xf32>
    %132 = arith.cmpf ogt, %5, %131 : vector<64x128xf32>
    %133 = arith.extui %132 : vector<64x128xi1> to vector<64x128xi32>
    %134 = arith.sitofp %133 : vector<64x128xi32> to vector<64x128xf32>
    %135 = arith.truncf %134 : vector<64x128xf32> to vector<64x128xbf16>
    %136 = arith.select %132, %7, %8 : vector<64x128xi1>, vector<64x128xbf16>
    %137 = arith.select %132, %5, %9 : vector<64x128xi1>, vector<64x128xf32>
    %cst_49 = arith.constant dense<0.000000e+00> : vector<1x128xf32>
    %138 = tpu.matmul %0, %135, %cst_49 {dimension_numbers = #tpu.dot_dimension_numbers<[1], [0], [0], [1], [0, 0, 1, 1], [], []>} : vector<1x64xbf16>, vector<64x128xbf16>, vector<1x128xf32> -> vector<1x128xf32>
    %cst_50 = arith.constant dense<0.000000e+00> : vector<1x128xf32>
    %139 = tpu.matmul %0, %136, %cst_50 {dimension_numbers = #tpu.dot_dimension_numbers<[1], [0], [0], [1], [0, 0, 1, 1], [], []>} : vector<1x64xbf16>, vector<64x128xbf16>, vector<1x128xf32> -> vector<1x128xf32>
    %cst_51 = arith.constant dense<0.000000e+00> : vector<128xf32>
    %140 = vector.multi_reduction <add>, %137, %cst_51 [0] : vector<64x128xf32> to vector<128xf32>
    %141 = vector.shape_cast %140 : vector<128xf32> to vector<1x128xf32>
    %cst_52 = arith.constant 8.000000e-01 : f32
    %142 = vector.broadcast %cst_52 : f32 to vector<64x128xf32>
    %143 = arith.cmpf ogt, %5, %142 : vector<64x128xf32>
    %144 = arith.extui %143 : vector<64x128xi1> to vector<64x128xi32>
    %145 = arith.sitofp %144 : vector<64x128xi32> to vector<64x128xf32>
    %146 = arith.truncf %145 : vector<64x128xf32> to vector<64x128xbf16>
    %147 = arith.select %143, %7, %8 : vector<64x128xi1>, vector<64x128xbf16>
    %148 = arith.select %143, %5, %9 : vector<64x128xi1>, vector<64x128xf32>
    %cst_53 = arith.constant dense<0.000000e+00> : vector<1x128xf32>
    %149 = tpu.matmul %0, %146, %cst_53 {dimension_numbers = #tpu.dot_dimension_numbers<[1], [0], [0], [1], [0, 0, 1, 1], [], []>} : vector<1x64xbf16>, vector<64x128xbf16>, vector<1x128xf32> -> vector<1x128xf32>
    %cst_54 = arith.constant dense<0.000000e+00> : vector<1x128xf32>
    %150 = tpu.matmul %0, %147, %cst_54 {dimension_numbers = #tpu.dot_dimension_numbers<[1], [0], [0], [1], [0, 0, 1, 1], [], []>} : vector<1x64xbf16>, vector<64x128xbf16>, vector<1x128xf32> -> vector<1x128xf32>
    %cst_55 = arith.constant dense<0.000000e+00> : vector<128xf32>
    %151 = vector.multi_reduction <add>, %148, %cst_55 [0] : vector<64x128xf32> to vector<128xf32>
    %152 = vector.shape_cast %151 : vector<128xf32> to vector<1x128xf32>
    %cst_56 = arith.constant 0.866666674 : f32
    %153 = vector.broadcast %cst_56 : f32 to vector<64x128xf32>
    %154 = arith.cmpf ogt, %5, %153 : vector<64x128xf32>
    %155 = arith.extui %154 : vector<64x128xi1> to vector<64x128xi32>
    %156 = arith.sitofp %155 : vector<64x128xi32> to vector<64x128xf32>
    %157 = arith.truncf %156 : vector<64x128xf32> to vector<64x128xbf16>
    %158 = arith.select %154, %7, %8 : vector<64x128xi1>, vector<64x128xbf16>
    %159 = arith.select %154, %5, %9 : vector<64x128xi1>, vector<64x128xf32>
    %cst_57 = arith.constant dense<0.000000e+00> : vector<1x128xf32>
    %160 = tpu.matmul %0, %157, %cst_57 {dimension_numbers = #tpu.dot_dimension_numbers<[1], [0], [0], [1], [0, 0, 1, 1], [], []>} : vector<1x64xbf16>, vector<64x128xbf16>, vector<1x128xf32> -> vector<1x128xf32>
    %cst_58 = arith.constant dense<0.000000e+00> : vector<1x128xf32>
    %161 = tpu.matmul %0, %158, %cst_58 {dimension_numbers = #tpu.dot_dimension_numbers<[1], [0], [0], [1], [0, 0, 1, 1], [], []>} : vector<1x64xbf16>, vector<64x128xbf16>, vector<1x128xf32> -> vector<1x128xf32>
    %cst_59 = arith.constant dense<0.000000e+00> : vector<128xf32>
    %162 = vector.multi_reduction <add>, %159, %cst_59 [0] : vector<64x128xf32> to vector<128xf32>
    %163 = vector.shape_cast %162 : vector<128xf32> to vector<1x128xf32>
    %cst_60 = arith.constant 0.933333337 : f32
    %164 = vector.broadcast %cst_60 : f32 to vector<64x128xf32>
    %165 = arith.cmpf ogt, %5, %164 : vector<64x128xf32>
    %166 = arith.extui %165 : vector<64x128xi1> to vector<64x128xi32>
    %167 = arith.sitofp %166 : vector<64x128xi32> to vector<64x128xf32>
    %168 = arith.truncf %167 : vector<64x128xf32> to vector<64x128xbf16>
    %169 = arith.select %165, %7, %8 : vector<64x128xi1>, vector<64x128xbf16>
    %170 = arith.select %165, %5, %9 : vector<64x128xi1>, vector<64x128xf32>
    %cst_61 = arith.constant dense<0.000000e+00> : vector<1x128xf32>
    %171 = tpu.matmul %0, %168, %cst_61 {dimension_numbers = #tpu.dot_dimension_numbers<[1], [0], [0], [1], [0, 0, 1, 1], [], []>} : vector<1x64xbf16>, vector<64x128xbf16>, vector<1x128xf32> -> vector<1x128xf32>
    %cst_62 = arith.constant dense<0.000000e+00> : vector<1x128xf32>
    %172 = tpu.matmul %0, %169, %cst_62 {dimension_numbers = #tpu.dot_dimension_numbers<[1], [0], [0], [1], [0, 0, 1, 1], [], []>} : vector<1x64xbf16>, vector<64x128xbf16>, vector<1x128xf32> -> vector<1x128xf32>
    %cst_63 = arith.constant dense<0.000000e+00> : vector<128xf32>
    %173 = vector.multi_reduction <add>, %170, %cst_63 [0] : vector<64x128xf32> to vector<128xf32>
    %174 = vector.shape_cast %173 : vector<128xf32> to vector<1x128xf32>
    %cst_64 = arith.constant 1.000000e+00 : f32
    %175 = vector.broadcast %cst_64 : f32 to vector<64x128xf32>
    %176 = arith.cmpf ogt, %5, %175 : vector<64x128xf32>
    %177 = arith.extui %176 : vector<64x128xi1> to vector<64x128xi32>
    %178 = arith.sitofp %177 : vector<64x128xi32> to vector<64x128xf32>
    %179 = arith.truncf %178 : vector<64x128xf32> to vector<64x128xbf16>
    %180 = arith.select %176, %7, %8 : vector<64x128xi1>, vector<64x128xbf16>
    %181 = arith.select %176, %5, %9 : vector<64x128xi1>, vector<64x128xf32>
    %cst_65 = arith.constant dense<0.000000e+00> : vector<1x128xf32>
    %182 = tpu.matmul %0, %179, %cst_65 {dimension_numbers = #tpu.dot_dimension_numbers<[1], [0], [0], [1], [0, 0, 1, 1], [], []>} : vector<1x64xbf16>, vector<64x128xbf16>, vector<1x128xf32> -> vector<1x128xf32>
    %cst_66 = arith.constant dense<0.000000e+00> : vector<1x128xf32>
    %183 = tpu.matmul %0, %180, %cst_66 {dimension_numbers = #tpu.dot_dimension_numbers<[1], [0], [0], [1], [0, 0, 1, 1], [], []>} : vector<1x64xbf16>, vector<64x128xbf16>, vector<1x128xf32> -> vector<1x128xf32>
    %cst_67 = arith.constant dense<0.000000e+00> : vector<128xf32>
    %184 = vector.multi_reduction <add>, %181, %cst_67 [0] : vector<64x128xf32> to vector<128xf32>
    %185 = vector.shape_cast %184 : vector<128xf32> to vector<1x128xf32>
    %186 = tpu.concatenate %17, %28, %39, %50, %61, %72, %83, %94, %105, %116, %127, %138, %149, %160, %171, %182 in 0 : vector<1x128xf32>, vector<1x128xf32>, vector<1x128xf32>, vector<1x128xf32>, vector<1x128xf32>, vector<1x128xf32>, vector<1x128xf32>, vector<1x128xf32>, vector<1x128xf32>, vector<1x128xf32>, vector<1x128xf32>, vector<1x128xf32>, vector<1x128xf32>, vector<1x128xf32>, vector<1x128xf32>, vector<1x128xf32> -> vector<16x128xf32>
    %187 = arith.addf %1, %186 : vector<16x128xf32>
    %188 = tpu.concatenate %20, %31, %42, %53, %64, %75, %86, %97, %108, %119, %130, %141, %152, %163, %174, %185 in 0 : vector<1x128xf32>, vector<1x128xf32>, vector<1x128xf32>, vector<1x128xf32>, vector<1x128xf32>, vector<1x128xf32>, vector<1x128xf32>, vector<1x128xf32>, vector<1x128xf32>, vector<1x128xf32>, vector<1x128xf32>, vector<1x128xf32>, vector<1x128xf32>, vector<1x128xf32>, vector<1x128xf32>, vector<1x128xf32> -> vector<16x128xf32>
    %189 = arith.addf %1, %188 : vector<16x128xf32>
    %190 = tpu.concatenate %18, %29, %40, %51, %62, %73, %84, %95, %106, %117, %128, %139, %150, %161, %172, %183 in 0 : vector<1x128xf32>, vector<1x128xf32>, vector<1x128xf32>, vector<1x128xf32>, vector<1x128xf32>, vector<1x128xf32>, vector<1x128xf32>, vector<1x128xf32>, vector<1x128xf32>, vector<1x128xf32>, vector<1x128xf32>, vector<1x128xf32>, vector<1x128xf32>, vector<1x128xf32>, vector<1x128xf32>, vector<1x128xf32> -> vector<16x128xf32>
    %191 = arith.addf %1, %190 : vector<16x128xf32>
    %c1_i32 = arith.constant 1 : i32
    %c0_68 = arith.constant 0 : index
    %c0_69 = arith.constant 0 : index
    %c0_70 = arith.constant 0 : index
    %192 = vector.load %arg3[%c0_68, %c0_69, %c0_70] : memref<1x16x128xf32, #tpu.memory_space<vmem>>, vector<1x16x128xf32>
    %193 = vector.shape_cast %192 : vector<1x16x128xf32> to vector<16x128xf32>
    %194 = vector.shape_cast %187 : vector<16x128xf32> to vector<1x16x128xf32>
    tpu.vector_store %arg3[%c0_68, %c0_69, %c0_70], %194 {strides = array<i32>} : memref<1x16x128xf32, #tpu.memory_space<vmem>>, vector<1x16x128xf32>,
    %c0_71 = arith.constant 0 : index
    %c0_72 = arith.constant 0 : index
    %c0_73 = arith.constant 0 : index
    %195 = vector.load %arg4[%c0_71, %c0_72, %c0_73] : memref<1x16x128xf32, #tpu.memory_space<vmem>>, vector<1x16x128xf32>
    %196 = vector.shape_cast %195 : vector<1x16x128xf32> to vector<16x128xf32>
    %197 = vector.shape_cast %189 : vector<16x128xf32> to vector<1x16x128xf32>
    tpu.vector_store %arg4[%c0_71, %c0_72, %c0_73], %197 {strides = array<i32>} : memref<1x16x128xf32, #tpu.memory_space<vmem>>, vector<1x16x128xf32>,
    %c0_74 = arith.constant 0 : index
    %c0_75 = arith.constant 0 : index
    %c0_76 = arith.constant 0 : index
    %198 = vector.load %arg5[%c0_74, %c0_75, %c0_76] : memref<1x16x128xf32, #tpu.memory_space<vmem>>, vector<1x16x128xf32>
    %199 = vector.shape_cast %198 : vector<1x16x128xf32> to vector<16x128xf32>
    %200 = vector.shape_cast %191 : vector<16x128xf32> to vector<1x16x128xf32>
    tpu.vector_store %arg5[%c0_74, %c0_75, %c0_76], %200 {strides = array<i32>} : memref<1x16x128xf32, #tpu.memory_space<vmem>>, vector<1x16x128xf32>,
    return
  }
  func.func @transform_0(%arg0: i32) -> (i32, i32) {
    %c0_i32 = arith.constant 0 : i32
    %c0_i32_0 = arith.constant 0 : i32
    return %arg0, %c0_i32 : i32, i32
  }
  func.func @transform_1(%arg0: i32) -> (i32, i32) {
    %c0_i32 = arith.constant 0 : i32
    %c0_i32_0 = arith.constant 0 : i32
    return %arg0, %c0_i32 : i32, i32
  }
  func.func @transform_2(%arg0: i32) -> (i32, i32, i32) {
    %c0_i32 = arith.constant 0 : i32
    %c0_i32_0 = arith.constant 0 : i32
    %c0_i32_1 = arith.constant 0 : i32
    return %arg0, %c0_i32, %c0_i32_0 : i32, i32, i32
  }
  func.func @transform_3(%arg0: i32) -> (i32, i32, i32) {
    %c0_i32 = arith.constant 0 : i32
    %c0_i32_0 = arith.constant 0 : i32
    %c0_i32_1 = arith.constant 0 : i32
    return %arg0, %c0_i32, %c0_i32_0 : i32, i32, i32
  }
  func.func @transform_4(%arg0: i32) -> (i32, i32, i32) {
    %c0_i32 = arith.constant 0 : i32
    %c0_i32_0 = arith.constant 0 : i32
    %c0_i32_1 = arith.constant 0 : i32
    return %arg0, %c0_i32, %c0_i32_0 : i32, i32, i32
  }
}

</mosaic_0001>

<llo_original>
// kernel: eq.1
$region0: #{eq.1}
  #allocation4 [shape = 's32[1]{0}', space=sflag, size = 0x4, scoped, tag = 'scoped memory for eq.1']
  %s0 = inlined_call_operand.hbm [shape: s32[2000], index: 0, kind: input, shape index: {}]
  %s1 = inlined_call_operand.hbm [shape: s32[2000], index: 1, kind: input, shape index: {}]
  %s2 = inlined_call_operand.vmem [shape: pred[2000], index: 2, kind: output, shape index: {}]
  $region1: #{eq.1} parent=0
    #allocation0 [shape = 'u8[8192]{0}', space=vmem, size = 0x2000, scoped, tag = 'operand span for operand 0']
    #allocation1 [shape = 's32[1]{0}', space=sflag, size = 0x4, scoped, tag = 'scoped memory for eq.1']
    #allocation2 [shape = 'u8[8192]{0}', space=vmem, size = 0x2000, scoped, tag = 'operand span for operand 1']
    #allocation3 [shape = 's32[1]{0}', space=sflag, size = 0x4, scoped, tag = 'scoped memory for eq.1']
    %3 = vsyncpa [#allocation1], 0
    %4 = vsyncpa [#allocation3], 0
    %s6 = ssub.s32 256, 256
    %7 = vsyncadd [#allocation1], %s6
    %s9 = sshll.u32 [#allocation0], 4
    %s10 = int_to_ptr.vmem [resolvable:$true] %s9
    %12 = dma.hbm_to_vmem [thread:$0]  %s0, 256, %s10, [#allocation1]
    %s14 = ssub.s32 256, 256
    %15 = vsyncadd [#allocation3], %s14
    %s17 = sshll.u32 [#allocation2], 4
    %s18 = int_to_ptr.vmem [resolvable:$true] %s17
    %20 = dma.hbm_to_vmem [thread:$0]  %s1, 256, %s18, [#allocation3]
    %21 = dma.done [#allocation1], 256
    %22 = dma.done [#allocation3], 256
    %v23 = vld [vmem:[#allocation0] sm:$0xff]
    %v24 = vld [vmem:[#allocation2] sm:$0xff]
    %25 = xla_tuple %v23, %v24
    %26 = xla_tuple %25
    %vm27 = vcmp.eq.s32.totalorder %v23, %v24
    %v28 = vsel %vm27, 1, 0
    %29 = xla_tuple %v28
    %v30 = vpack.c.b16 0, %v28
    %v31 = vpack.c.b8 0, %v30
    %33 = vst [vmem:[%s2] sm:$0x3] %v31
    %s34 = scalar_lea.vmem [#allocation0], 8
    %v35 = vld [vmem:[%s34] sm:$0xff]
    %s36 = scalar_lea.vmem [#allocation2], 8
    %v37 = vld [vmem:[%s36] sm:$0xff]
    %38 = xla_tuple %v35, %v37
    %39 = xla_tuple %38
    %vm40 = vcmp.eq.s32.totalorder %v35, %v37
    %v41 = vsel %vm40, 1, 0
    %42 = xla_tuple %v41
    %s43 = scalar_lea.vmem %s2, 2
    %v44 = vpack.c.b16 0, %v41
    %v45 = vpack.c.b8 0, %v44
    %47 = vst [vmem:[%s43] sm:$0x3] %v45
    %48 = vsyncpa [#allocation1], 1
    %49 = vsyncpa [#allocation3], 1

// kernel: ece_loss_pallas.1
$region0: #{ece_loss_pallas.1}
  #allocation0 [shape = 'u32[]', space=smem, size = 0x4, offset = 0x4, fixed_abs, tag = 'smem constant byte address 0x4 - core index']
  #allocation1 [shape = 'u32[144,128]{1,0:T(1,128)}', space=vmem, size = 0x12000, scoped, tag = 'internal scratch']
  %s0 = inlined_call_operand.vmem [shape: f32[64,128], index: 0, kind: input, shape index: {}]
  %s1 = inlined_call_operand.vmem [shape: bf16[64,128], index: 1, kind: input, shape index: {}]
  %s2 = inlined_call_operand.vmem [shape: f32[1,16,128], index: 2, kind: output, shape index: {0}]
  %s3 = inlined_call_operand.vmem [shape: f32[1,16,128], index: 3, kind: output, shape index: {1}]
  %s4 = inlined_call_operand.vmem [shape: f32[1,16,128], index: 4, kind: output, shape index: {2}]
  %5 = xla_tuple %s2, %s3, %s4
  %s6 = sld [smem:[#allocation0]]
  $region34: #{ece_loss_pallas.1} parent=0
    _
  %s8 = ssub.s32 1, %s6
  %s9 = scalar_select 0, %s8, %s6
  // Predicated region
  $region2: #{ece_loss_pallas.1} parent=0 // pred_check
    _
  $region3: #{ece_loss_pallas.1} parent=0 // pred_check_branch
    %11 = sbr.rel (0) target = $region5
  $region4: #{ece_loss_pallas.1} parent=0 // pred_region
    _
  $region5: #{ece_loss_pallas.1} parent=0 // pred_fallthru
    _
  // Predicated region
  $region6: #{ece_loss_pallas.1} parent=0 // pred_check
    _
  $region7: #{ece_loss_pallas.1} parent=0 // pred_check_branch
    %13 = sbr.rel (0) target = $region9
  $region8: #{ece_loss_pallas.1} parent=0 // pred_region
    _
  $region9: #{ece_loss_pallas.1} parent=0 // pred_fallthru
    _
  %v16 = vld [vmem:[%s0] sm:$0xff]
  %v17 = vld [vmem:[%s0 + $0x8] sm:$0xff]
  %v18 = vld [vmem:[%s0 + $0x10] sm:$0xff]
  %v19 = vld [vmem:[%s0 + $0x18] sm:$0xff]
  %v20 = vld [vmem:[%s0 + $0x20] sm:$0xff]
  %v21 = vld [vmem:[%s0 + $0x28] sm:$0xff]
  %v22 = vld [vmem:[%s0 + $0x30] sm:$0xff]
  %v23 = vld [vmem:[%s0 + $0x38] sm:$0xff]
  %v24 = vld [vmem:[%s1] sm:$0xf]
  %v25 = vld [vmem:[%s1 + $0x4] sm:$0xf]
  %v26 = vld [vmem:[%s1 + $0x8] sm:$0xf]
  %v27 = vld [vmem:[%s1 + $0xc] sm:$0xf]
  %v28 = vld [vmem:[%s1 + $0x10] sm:$0xf]
  %v29 = vld [vmem:[%s1 + $0x14] sm:$0xf]
  %v30 = vld [vmem:[%s1 + $0x18] sm:$0xf]
  %v31 = vld [vmem:[%s1 + $0x1c] sm:$0xf]
  %vm32 = vcmp.gt.f32.partialorder %v16, 0.0
  %vm33 = vcmp.gt.f32.partialorder %v17, 0.0
  %vm34 = vcmp.gt.f32.partialorder %v18, 0.0
  %vm35 = vcmp.gt.f32.partialorder %v19, 0.0
  %vm36 = vcmp.gt.f32.partialorder %v20, 0.0
  %vm37 = vcmp.gt.f32.partialorder %v21, 0.0
  %vm38 = vcmp.gt.f32.partialorder %v22, 0.0
  %vm39 = vcmp.gt.f32.partialorder %v23, 0.0
  %v40 = vsel %vm32, 1, 0
  %v41 = vsel %vm33, 1, 0
  %v42 = vsel %vm34, 1, 0
  %v43 = vsel %vm35, 1, 0
  %v44 = vsel %vm36, 1, 0
  %v45 = vsel %vm37, 1, 0
  %v46 = vsel %vm38, 1, 0
  %v47 = vsel %vm39, 1, 0
  %v48 = vcvt.s32.f32 %v40
  %v49 = vcvt.s32.f32 %v41
  %v50 = vcvt.s32.f32 %v42
  %v51 = vcvt.s32.f32 %v43
  %v52 = vcvt.s32.f32 %v44
  %v53 = vcvt.s32.f32 %v45
  %v54 = vcvt.s32.f32 %v46
  %v55 = vcvt.s32.f32 %v47
  %v56 = vpack.c.bf16 %v49, %v48
  %v57 = vpack.c.bf16 %v51, %v50
  %v58 = vpack.c.bf16 %v53, %v52
  %v59 = vpack.c.bf16 %v55, %v54
  %vm60 = vmpackc.low %vm32, %vm32
  %vm61 = vmpackc.low %vm33, %vm33
  %vm62 = vmpackc.low %vm34, %vm34
  %vm63 = vmpackc.low %vm35, %vm35
  %vm64 = vmpackc.low %vm36, %vm36
  %vm65 = vmpackc.low %vm37, %vm37
  %vm66 = vmpackc.low %vm38, %vm38
  %vm67 = vmpackc.low %vm39, %vm39
  %v68 = vsel %vm60, %v24, 0
  %v69 = vsel %vm61, %v25, 0
  %v70 = vsel %vm62, %v26, 0
  %v71 = vsel %vm63, %v27, 0
  %v72 = vsel %vm64, %v28, 0
  %v73 = vsel %vm65, %v29, 0
  %v74 = vsel %vm66, %v30, 0
  %v75 = vsel %vm67, %v31, 0
  %v76 = vsel %vm32, %v16, 0.0
  %v77 = vsel %vm33, %v17, 0.0
  %v78 = vsel %vm34, %v18, 0.0
  %v79 = vsel %vm35, %v19, 0.0
  %v80 = vsel %vm36, %v20, 0.0
  %v81 = vsel %vm37, %v21, 0.0
  %v82 = vsel %vm38, %v22, 0.0
  %v83 = vsel %vm39, %v23, 0.0
  %vm84 = vcmask 523264
  %v86 = vsel %vm84, 1065369472, 0
  %88 = vmatprep.subr.bf16.mxu0 0
  %89 = vmatpush1.bf16.msra.mxu0 %v56
  %90 = vmatprep.subr.bf16.mxu0 0
  %91 = vmatpush1.bf16.msra.mxu0 %v57
  %92 = vmatprep.subr.bf16.mxu0 0
  %93 = vmatpush1.bf16.msra.mxu0 %v58
  %94 = vmatprep.subr.bf16.mxu0 0
  %95 = vmatpush1.bf16.msra.mxu0 %v59
  %96 = vmatprep.subr.bf16.mxu0 0
  %97 = vmatpush1.bf16.msra.mxu0 0
  %98 = vmatprep.subr.bf16.mxu0 0
  %99 = vmatpush1.bf16.msra.mxu0 0
  %100 = vmatprep.subr.bf16.mxu0 0
  %101 = vmatpush1.bf16.msra.mxu0 0
  %102 = vmatprep.subr.bf16.mxu0 0
  %103 = vmatpush1.bf16.msra.mxu0 0
  %104 = vmatprep.subr.bf16.mxu0 0
  %105 = vmatpush1.bf16.msra.mxu0 0
  %106 = vmatprep.subr.bf16.mxu0 0
  %107 = vmatpush1.bf16.msra.mxu0 0
  %108 = vmatprep.subr.bf16.mxu0 0
  %109 = vmatpush1.bf16.msra.mxu0 0
  %110 = vmatprep.subr.bf16.mxu0 0
  %111 = vmatpush1.bf16.msra.mxu0 0
  %112 = vmatprep.subr.bf16.mxu0 0
  %113 = vmatpush1.bf16.msra.mxu0 0
  %114 = vmatprep.subr.bf16.mxu0 0
  %115 = vmatpush1.bf16.msra.mxu0 0
  %116 = vmatprep.subr.bf16.mxu0 0
  %117 = vmatpush1.bf16.msra.mxu0 0
  %118 = vmatprep.subr.bf16.mxu0 0
  %119 = vmatpush1.bf16.msra.mxu0 0
  %120 = vmatprep.mubr.bf16.mxu0 0
  %121 = vmatmul.mubr.bf16.gmra.mrb[0].mxu0 %v86
  %v122 = vpop.f32.mrb[0].mxu0
  %v123 = vadd.f32 0.0, %v122
  %v124 = vpop.f32.mrb[0].mxu0
  %v125 = vpop.f32.mrb[0].mxu0
  %v126 = vpop.f32.mrb[0].mxu0
  %127 = vdwg.mxu0
  %v136 = vunpack.c.l.b16 %v68
  %v137 = vunpack.c.l.b16 %v69
  %v138 = vunpack.c.l.b16 %v70
  %v139 = vunpack.c.l.b16 %v71
  %v140 = vunpack.c.l.b16 %v72
  %v141 = vunpack.c.l.b16 %v73
  %v142 = vunpack.c.l.b16 %v74
  %v143 = vunpack.c.l.b16 %v75
  %v144 = vpack.c.b16 %v137, %v136
  %v145 = vpack.c.b16 %v139, %v138
  %v146 = vpack.c.b16 %v141, %v140
  %v147 = vpack.c.b16 %v143, %v142
  %152 = vmatprep.subr.bf16.mxu0 0
  %153 = vmatpush1.bf16.msra.mxu0 %v144
  %154 = vmatprep.subr.bf16.mxu0 0
  %155 = vmatpush1.bf16.msra.mxu0 %v145
  %156 = vmatprep.subr.bf16.mxu0 0
  %157 = vmatpush1.bf16.msra.mxu0 %v146
  %158 = vmatprep.subr.bf16.mxu0 0
  %159 = vmatpush1.bf16.msra.mxu0 %v147
  %160 = vmatprep.subr.bf16.mxu0 0
  %161 = vmatpush1.bf16.msra.mxu0 0
  %162 = vmatprep.subr.bf16.mxu0 0
  %163 = vmatpush1.bf16.msra.mxu0 0
  %164 = vmatprep.subr.bf16.mxu0 0
  %165 = vmatpush1.bf16.msra.mxu0 0
  %166 = vmatprep.subr.bf16.mxu0 0
  %167 = vmatpush1.bf16.msra.mxu0 0
  %168 = vmatprep.subr.bf16.mxu0 0
  %169 = vmatpush1.bf16.msra.mxu0 0
  %170 = vmatprep.subr.bf16.mxu0 0
  %171 = vmatpush1.bf16.msra.mxu0 0
  %172 = vmatprep.subr.bf16.mxu0 0
  %173 = vmatpush1.bf16.msra.mxu0 0
  %174 = vmatprep.subr.bf16.mxu0 0
  %175 = vmatpush1.bf16.msra.mxu0 0
  %176 = vmatprep.subr.bf16.mxu0 0
  %177 = vmatpush1.bf16.msra.mxu0 0
  %178 = vmatprep.subr.bf16.mxu0 0
  %179 = vmatpush1.bf16.msra.mxu0 0
  %180 = vmatprep.subr.bf16.mxu0 0
  %181 = vmatpush1.bf16.msra.mxu0 0
  %182 = vmatprep.subr.bf16.mxu0 0
  %183 = vmatpush1.bf16.msra.mxu0 0
  %184 = vmatprep.mubr.bf16.mxu0 0
  %185 = vmatmul.mubr.bf16.gmra.mrb[0].mxu0 %v86
  %v186 = vpop.f32.mrb[0].mxu0
  %v187 = vadd.f32 0.0, %v186
  %v188 = vpop.f32.mrb[0].mxu0
  %v189 = vpop.f32.mrb[0].mxu0
  %v190 = vpop.f32.mrb[0].mxu0
  %191 = vdwg.mxu0
  %v192 = vadd.f32 %v76, %v77
  %v193 = vadd.f32 %v192, %v78
  %v194 = vadd.f32 %v193, %v79
  %v195 = vadd.f32 %v194, %v80
  %v196 = vadd.f32 %v195, %v81
  %v197 = vadd.f32 %v196, %v82
  %v198 = vadd.f32 %v197, %v83
  %v199 = vrot.slane %v198, 4
  %v200 = vadd.f32 %v198, %v199
  %v201 = vrot.slane %v200, 2
  %v202 = vadd.f32 %v200, %v201
  %v203 = vrot.slane %v202, 1
  %v204 = vadd.f32 %v202, %v203
  %vm205 = vcmp.gt.f32.partialorder %v16, 0.06666667
  %vm206 = vcmp.gt.f32.partialorder %v17, 0.06666667
  %vm207 = vcmp.gt.f32.partialorder %v18, 0.06666667
  %vm208 = vcmp.gt.f32.partialorder %v19, 0.06666667
  %vm209 = vcmp.gt.f32.partialorder %v20, 0.06666667
  %vm210 = vcmp.gt.f32.partialorder %v21, 0.06666667
  %vm211 = vcmp.gt.f32.partialorder %v22, 0.06666667
  %vm212 = vcmp.gt.f32.partialorder %v23, 0.06666667
  %v213 = vsel %vm205, 1, 0
  %v214 = vsel %vm206, 1, 0
  %v215 = vsel %vm207, 1, 0
  %v216 = vsel %vm208, 1, 0
  %v217 = vsel %vm209, 1, 0
  %v218 = vsel %vm210, 1, 0
  %v219 = vsel %vm211, 1, 0
  %v220 = vsel %vm212, 1, 0
  %v221 = vcvt.s32.f32 %v213
  %v222 = vcvt.s32.f32 %v214
  %v223 = vcvt.s32.f32 %v215
  %v224 = vcvt.s32.f32 %v216
  %v225 = vcvt.s32.f32 %v217
  %v226 = vcvt.s32.f32 %v218
  %v227 = vcvt.s32.f32 %v219
  %v228 = vcvt.s32.f32 %v220
  %v229 = vpack.c.bf16 %v222, %v221
  %v230 = vpack.c.bf16 %v224, %v223
  %v231 = vpack.c.bf16 %v226, %v225
  %v232 = vpack.c.bf16 %v228, %v227
  %vm233 = vmpackc.low %vm205, %vm205
  %vm234 = vmpackc.low %vm206, %vm206
  %vm235 = vmpackc.low %vm207, %vm207
  %vm236 = vmpackc.low %vm208, %vm208
  %vm237 = vmpackc.low %vm209, %vm209
  %vm238 = vmpackc.low %vm210, %vm210
  %vm239 = vmpackc.low %vm211, %vm211
  %vm240 = vmpackc.low %vm212, %vm212
  %v241 = vsel %vm233, %v24, 0
  %v242 = vsel %vm234, %v25, 0
  %v243 = vsel %vm235, %v26, 0
  %v244 = vsel %vm236, %v27, 0
  %v245 = vsel %vm237, %v28, 0
  %v246 = vsel %vm238, %v29, 0
  %v247 = vsel %vm239, %v30, 0
  %v248 = vsel %vm240, %v31, 0
  %v249 = vsel %vm205, %v16, 0.0
  %v250 = vsel %vm206, %v17, 0.0
  %v251 = vsel %vm207, %v18, 0.0
  %v252 = vsel %vm208, %v19, 0.0
  %v253 = vsel %vm209, %v20, 0.0
  %v254 = vsel %vm210, %v21, 0.0
  %v255 = vsel %vm211, %v22, 0.0
  %v256 = vsel %vm212, %v23, 0.0
  %257 = vmatprep.subr.bf16.mxu0 0
  %258 = vmatpush1.bf16.msra.mxu0 %v229
  %259 = vmatprep.subr.bf16.mxu0 0
  %260 = vmatpush1.bf16.msra.mxu0 %v230
  %261 = vmatprep.subr.bf16.mxu0 0
  %262 = vmatpush1.bf16.msra.mxu0 %v231
  %263 = vmatprep.subr.bf16.mxu0 0
  %264 = vmatpush1.bf16.msra.mxu0 %v232
  %265 = vmatprep.subr.bf16.mxu0 0
  %266 = vmatpush1.bf16.msra.mxu0 0
  %267 = vmatprep.subr.bf16.mxu0 0
  %268 = vmatpush1.bf16.msra.mxu0 0
  %269 = vmatprep.subr.bf16.mxu0 0
  %270 = vmatpush1.bf16.msra.mxu0 0
  %271 = vmatprep.subr.bf16.mxu0 0
  %272 = vmatpush1.bf16.msra.mxu0 0
  %273 = vmatprep.subr.bf16.mxu0 0
  %274 = vmatpush1.bf16.msra.mxu0 0
  %275 = vmatprep.subr.bf16.mxu0 0
  %276 = vmatpush1.bf16.msra.mxu0 0
  %277 = vmatprep.subr.bf16.mxu0 0
  %278 = vmatpush1.bf16.msra.mxu0 0
  %279 = vmatprep.subr.bf16.mxu0 0
  %280 = vmatpush1.bf16.msra.mxu0 0
  %281 = vmatprep.subr.bf16.mxu0 0
  %282 = vmatpush1.bf16.msra.mxu0 0
  %283 = vmatprep.subr.bf16.mxu0 0
  %284 = vmatpush1.bf16.msra.mxu0 0
  %285 = vmatprep.subr.bf16.mxu0 0
  %286 = vmatpush1.bf16.msra.mxu0 0
  %287 = vmatprep.subr.bf16.mxu0 0
  %288 = vmatpush1.bf16.msra.mxu0 0
  %289 = vmatprep.mubr.bf16.mxu0 0
  %290 = vmatmul.mubr.bf16.gmra.mrb[0].mxu0 %v86
  %v291 = vpop.f32.mrb[0].mxu0
  %v292 = vadd.f32 0.0, %v291
  %v293 = vpop.f32.mrb[0].mxu0
  %v294 = vpop.f32.mrb[0].mxu0
  %v295 = vpop.f32.mrb[0].mxu0
  %296 = vdwg.mxu0
  %v305 = vunpack.c.l.b16 %v241
  %v306 = vunpack.c.l.b16 %v242
  %v307 = vunpack.c.l.b16 %v243
  %v308 = vunpack.c.l.b16 %v244
  %v309 = vunpack.c.l.b16 %v245
  %v310 = vunpack.c.l.b16 %v246
  %v311 = vunpack.c.l.b16 %v247
  %v312 = vunpack.c.l.b16 %v248
  %v313 = vpack.c.b16 %v306, %v305
  %v314 = vpack.c.b16 %v308, %v307
  %v315 = vpack.c.b16 %v310, %v309
  %v316 = vpack.c.b16 %v312, %v311
  %321 = vmatprep.subr.bf16.mxu0 0
  %322 = vmatpush1.bf16.msra.mxu0 %v313
  %323 = vmatprep.subr.bf16.mxu0 0
  %324 = vmatpush1.bf16.msra.mxu0 %v314
  %325 = vmatprep.subr.bf16.mxu0 0
  %326 = vmatpush1.bf16.msra.mxu0 %v315
  %327 = vmatprep.subr.bf16.mxu0 0
  %328 = vmatpush1.bf16.msra.mxu0 %v316
  %329 = vmatprep.subr.bf16.mxu0 0
  %330 = vmatpush1.bf16.msra.mxu0 0
  %331 = vmatprep.subr.bf16.mxu0 0
  %332 = vmatpush1.bf16.msra.mxu0 0
  %333 = vmatprep.subr.bf16.mxu0 0
  %334 = vmatpush1.bf16.msra.mxu0 0
  %335 = vmatprep.subr.bf16.mxu0 0
  %336 = vmatpush1.bf16.msra.mxu0 0
  %337 = vmatprep.subr.bf16.mxu0 0
  %338 = vmatpush1.bf16.msra.mxu0 0
  %339 = vmatprep.subr.bf16.mxu0 0
  %340 = vmatpush1.bf16.msra.mxu0 0
  %341 = vmatprep.subr.bf16.mxu0 0
  %342 = vmatpush1.bf16.msra.mxu0 0
  %343 = vmatprep.subr.bf16.mxu0 0
  %344 = vmatpush1.bf16.msra.mxu0 0
  %345 = vmatprep.subr.bf16.mxu0 0
  %346 = vmatpush1.bf16.msra.mxu0 0
  %347 = vmatprep.subr.bf16.mxu0 0
  %348 = vmatpush1.bf16.msra.mxu0 0
  %349 = vmatprep.subr.bf16.mxu0 0
  %350 = vmatpush1.bf16.msra.mxu0 0
  %351 = vmatprep.subr.bf16.mxu0 0
  %352 = vmatpush1.bf16.msra.mxu0 0
  %353 = vmatprep.mubr.bf16.mxu0 0
  %354 = vmatmul.mubr.bf16.gmra.mrb[0].mxu0 %v86
  %v355 = vpop.f32.mrb[0].mxu0
  %v356 = vadd.f32 0.0, %v355
  %v357 = vpop.f32.mrb[0].mxu0
  %v358 = vpop.f32.mrb[0].mxu0
  %v359 = vpop.f32.mrb[0].mxu0
  %360 = vdwg.mxu0
  %v361 = vadd.f32 %v249, %v250
  %v362 = vadd.f32 %v361, %v251
  %v363 = vadd.f32 %v362, %v252
  %v364 = vadd.f32 %v363, %v253
  %v365 = vadd.f32 %v364, %v254
  %v366 = vadd.f32 %v365, %v255
  %v367 = vadd.f32 %v366, %v256
  %v368 = vrot.slane %v367, 4
  %v369 = vadd.f32 %v367, %v368
  %v370 = vrot.slane %v369, 2
  %v371 = vadd.f32 %v369, %v370
  %v372 = vrot.slane %v371, 1
  %v373 = vadd.f32 %v371, %v372
  %vm374 = vcmp.gt.f32.partialorder %v16, 0.13333334
  %vm375 = vcmp.gt.f32.partialorder %v17, 0.13333334
  %vm376 = vcmp.gt.f32.partialorder %v18, 0.13333334
  %vm377 = vcmp.gt.f32.partialorder %v19, 0.13333334
  %vm378 = vcmp.gt.f32.partialorder %v20, 0.13333334
  %vm379 = vcmp.gt.f32.partialorder %v21, 0.13333334
  %vm380 = vcmp.gt.f32.partialorder %v22, 0.13333334
  %vm381 = vcmp.gt.f32.partialorder %v23, 0.13333334
  %v382 = vsel %vm374, 1, 0
  %v383 = vsel %vm375, 1, 0
  %v384 = vsel %vm376, 1, 0
  %v385 = vsel %vm377, 1, 0
  %v386 = vsel %vm378, 1, 0
  %v387 = vsel %vm379, 1, 0
  %v388 = vsel %vm380, 1, 0
  %v389 = vsel %vm381, 1, 0
  %v390 = vcvt.s32.f32 %v382
  %v391 = vcvt.s32.f32 %v383
  %v392 = vcvt.s32.f32 %v384
  %v393 = vcvt.s32.f32 %v385
  %v394 = vcvt.s32.f32 %v386
  %v395 = vcvt.s32.f32 %v387
  %v396 = vcvt.s32.f32 %v388
  %v397 = vcvt.s32.f32 %v389
  %v398 = vpack.c.bf16 %v391, %v390
  %v399 = vpack.c.bf16 %v393, %v392
  %v400 = vpack.c.bf16 %v395, %v394
  %v401 = vpack.c.bf16 %v397, %v396
  %vm402 = vmpackc.low %vm374, %vm374
  %vm403 = vmpackc.low %vm375, %vm375
  %vm404 = vmpackc.low %vm376, %vm376
  %vm405 = vmpackc.low %vm377, %vm377
  %vm406 = vmpackc.low %vm378, %vm378
  %vm407 = vmpackc.low %vm379, %vm379
  %vm408 = vmpackc.low %vm380, %vm380
  %vm409 = vmpackc.low %vm381, %vm381
  %v410 = vsel %vm402, %v24, 0
  %v411 = vsel %vm403, %v25, 0
  %v412 = vsel %vm404, %v26, 0
  %v413 = vsel %vm405, %v27, 0
  %v414 = vsel %vm406, %v28, 0
  %v415 = vsel %vm407, %v29, 0
  %v416 = vsel %vm408, %v30, 0
  %v417 = vsel %vm409, %v31, 0
  %v418 = vsel %vm374, %v16, 0.0
  %v419 = vsel %vm375, %v17, 0.0
  %v420 = vsel %vm376, %v18, 0.0
  %v421 = vsel %vm377, %v19, 0.0
  %v422 = vsel %vm378, %v20, 0.0
  %v423 = vsel %vm379, %v21, 0.0
  %v424 = vsel %vm380, %v22, 0.0
  %v425 = vsel %vm381, %v23, 0.0
  %426 = vmatprep.subr.bf16.mxu0 0
  %427 = vmatpush1.bf16.msra.mxu0 %v398
  %428 = vmatprep.subr.bf16.mxu0 0
  %429 = vmatpush1.bf16.msra.mxu0 %v399
  %430 = vmatprep.subr.bf16.mxu0 0
  %431 = vmatpush1.bf16.msra.mxu0 %v400
  %432 = vmatprep.subr.bf16.mxu0 0
  %433 = vmatpush1.bf16.msra.mxu0 %v401
  %434 = vmatprep.subr.bf16.mxu0 0
  %435 = vmatpush1.bf16.msra.mxu0 0
  %436 = vmatprep.subr.bf16.mxu0 0
  %437 = vmatpush1.bf16.msra.mxu0 0
  %438 = vmatprep.subr.bf16.mxu0 0
  %439 = vmatpush1.bf16.msra.mxu0 0
  %440 = vmatprep.subr.bf16.mxu0 0
  %441 = vmatpush1.bf16.msra.mxu0 0
  %442 = vmatprep.subr.bf16.mxu0 0
  %443 = vmatpush1.bf16.msra.mxu0 0
  %444 = vmatprep.subr.bf16.mxu0 0
  %445 = vmatpush1.bf16.msra.mxu0 0
  %446 = vmatprep.subr.bf16.mxu0 0
  %447 = vmatpush1.bf16.msra.mxu0 0
  %448 = vmatprep.subr.bf16.mxu0 0
  %449 = vmatpush1.bf16.msra.mxu0 0
  %450 = vmatprep.subr.bf16.mxu0 0
  %451 = vmatpush1.bf16.msra.mxu0 0
  %452 = vmatprep.subr.bf16.mxu0 0
  %453 = vmatpush1.bf16.msra.mxu0 0
  %454 = vmatprep.subr.bf16.mxu0 0
  %455 = vmatpush1.bf16.msra.mxu0 0
  %456 = vmatprep.subr.bf16.mxu0 0
  %457 = vmatpush1.bf16.msra.mxu0 0
  %458 = vmatprep.mubr.bf16.mxu0 0
  %459 = vmatmul.mubr.bf16.gmra.mrb[0].mxu0 %v86
  %v460 = vpop.f32.mrb[0].mxu0
  %v461 = vadd.f32 0.0, %v460
  %v462 = vpop.f32.mrb[0].mxu0
  %v463 = vpop.f32.mrb[0].mxu0
  %v464 = vpop.f32.mrb[0].mxu0
  %465 = vdwg.mxu0
  %v474 = vunpack.c.l.b16 %v410
  %v475 = vunpack.c.l.b16 %v411
  %v476 = vunpack.c.l.b16 %v412
  %v477 = vunpack.c.l.b16 %v413
  %v478 = vunpack.c.l.b16 %v414
  %v479 = vunpack.c.l.b16 %v415
  %v480 = vunpack.c.l.b16 %v416
  %v481 = vunpack.c.l.b16 %v417
  %v482 = vpack.c.b16 %v475, %v474
  %v483 = vpack.c.b16 %v477, %v476
  %v484 = vpack.c.b16 %v479, %v478
  %v485 = vpack.c.b16 %v481, %v480
  %490 = vmatprep.subr.bf16.mxu0 0
  %491 = vmatpush1.bf16.msra.mxu0 %v482
  %492 = vmatprep.subr.bf16.mxu0 0
  %493 = vmatpush1.bf16.msra.mxu0 %v483
  %494 = vmatprep.subr.bf16.mxu0 0
  %495 = vmatpush1.bf16.msra.mxu0 %v484
  %496 = vmatprep.subr.bf16.mxu0 0
  %497 = vmatpush1.bf16.msra.mxu0 %v485
  %498 = vmatprep.subr.bf16.mxu0 0
  %499 = vmatpush1.bf16.msra.mxu0 0
  %500 = vmatprep.subr.bf16.mxu0 0
  %501 = vmatpush1.bf16.msra.mxu0 0
  %502 = vmatprep.subr.bf16.mxu0 0
  %503 = vmatpush1.bf16.msra.mxu0 0
  %504 = vmatprep.subr.bf16.mxu0 0
  %505 = vmatpush1.bf16.msra.mxu0 0
  %506 = vmatprep.subr.bf16.mxu0 0
  %507 = vmatpush1.bf16.msra.mxu0 0
  %508 = vmatprep.subr.bf16.mxu0 0
  %509 = vmatpush1.bf16.msra.mxu0 0
  %510 = vmatprep.subr.bf16.mxu0 0
  %511 = vmatpush1.bf16.msra.mxu0 0
  %512 = vmatprep.subr.bf16.mxu0 0
  %513 = vmatpush1.bf16.msra.mxu0 0
  %514 = vmatprep.subr.bf16.mxu0 0
  %515 = vmatpush1.bf16.msra.mxu0 0
  %516 = vmatprep.subr.bf16.mxu0 0
  %517 = vmatpush1.bf16.msra.mxu0 0
  %518 = vmatprep.subr.bf16.mxu0 0
  %519 = vmatpush1.bf16.msra.mxu0 0
  %520 = vmatprep.subr.bf16.mxu0 0
  %521 = vmatpush1.bf16.msra.mxu0 0
  %522 = vmatprep.mubr.bf16.mxu0 0
  %523 = vmatmul.mubr.bf16.gmra.mrb[0].mxu0 %v86
  %v524 = vpop.f32.mrb[0].mxu0
  %v525 = vadd.f32 0.0, %v524
  %v526 = vpop.f32.mrb[0].mxu0
  %v527 = vpop.f32.mrb[0].mxu0
  %v528 = vpop.f32.mrb[0].mxu0
  %529 = vdwg.mxu0
  %v530 = vadd.f32 %v418, %v419
  %v531 = vadd.f32 %v530, %v420
  %v532 = vadd.f32 %v531, %v421
  %v533 = vadd.f32 %v532, %v422
  %v534 = vadd.f32 %v533, %v423
  %v535 = vadd.f32 %v534, %v424
  %v536 = vadd.f32 %v535, %v425
  %v537 = vrot.slane %v536, 4
  %v538 = vadd.f32 %v536, %v537
  %v539 = vrot.slane %v538, 2
  %v540 = vadd.f32 %v538, %v539
  %v541 = vrot.slane %v540, 1
  %v542 = vadd.f32 %v540, %v541
  %vm543 = vcmp.gt.f32.partialorder %v16, 0.2
  %vm544 = vcmp.gt.f32.partialorder %v17, 0.2
  %vm545 = vcmp.gt.f32.partialorder %v18, 0.2
  %vm546 = vcmp.gt.f32.partialorder %v19, 0.2
  %vm547 = vcmp.gt.f32.partialorder %v20, 0.2
  %vm548 = vcmp.gt.f32.partialorder %v21, 0.2
  %vm549 = vcmp.gt.f32.partialorder %v22, 0.2
  %vm550 = vcmp.gt.f32.partialorder %v23, 0.2
  %v551 = vsel %vm543, 1, 0
  %v552 = vsel %vm544, 1, 0
  %v553 = vsel %vm545, 1, 0
  %v554 = vsel %vm546, 1, 0
  %v555 = vsel %vm547, 1, 0
  %v556 = vsel %vm548, 1, 0
  %v557 = vsel %vm549, 1, 0
  %v558 = vsel %vm550, 1, 0
  %v559 = vcvt.s32.f32 %v551
  %v560 = vcvt.s32.f32 %v552
  %v561 = vcvt.s32.f32 %v553
  %v562 = vcvt.s32.f32 %v554
  %v563 = vcvt.s32.f32 %v555
  %v564 = vcvt.s32.f32 %v556
  %v565 = vcvt.s32.f32 %v557
  %v566 = vcvt.s32.f32 %v558
  %v567 = vpack.c.bf16 %v560, %v559
  %v568 = vpack.c.bf16 %v562, %v561
  %v569 = vpack.c.bf16 %v564, %v563
  %v570 = vpack.c.bf16 %v566, %v565
  %vm571 = vmpackc.low %vm543, %vm543
  %vm572 = vmpackc.low %vm544, %vm544
  %vm573 = vmpackc.low %vm545, %vm545
  %vm574 = vmpackc.low %vm546, %vm546
  %vm575 = vmpackc.low %vm547, %vm547
  %vm576 = vmpackc.low %vm548, %vm548
  %vm577 = vmpackc.low %vm549, %vm549
  %vm578 = vmpackc.low %vm550, %vm550
  %v579 = vsel %vm571, %v24, 0
  %v580 = vsel %vm572, %v25, 0
  %v581 = vsel %vm573, %v26, 0
  %v582 = vsel %vm574, %v27, 0
  %v583 = vsel %vm575, %v28, 0
  %v584 = vsel %vm576, %v29, 0
  %v585 = vsel %vm577, %v30, 0
  %v586 = vsel %vm578, %v31, 0
  %v587 = vsel %vm543, %v16, 0.0
  %v588 = vsel %vm544, %v17, 0.0
  %v589 = vsel %vm545, %v18, 0.0
  %v590 = vsel %vm546, %v19, 0.0
  %v591 = vsel %vm547, %v20, 0.0
  %v592 = vsel %vm548, %v21, 0.0
  %v593 = vsel %vm549, %v22, 0.0
  %v594 = vsel %vm550, %v23, 0.0
  %595 = vmatprep.subr.bf16.mxu0 0
  %596 = vmatpush1.bf16.msra.mxu0 %v567
  %597 = vmatprep.subr.bf16.mxu0 0
  %598 = vmatpush1.bf16.msra.mxu0 %v568
  %599 = vmatprep.subr.bf16.mxu0 0
  %600 = vmatpush1.bf16.msra.mxu0 %v569
  %601 = vmatprep.subr.bf16.mxu0 0
  %602 = vmatpush1.bf16.msra.mxu0 %v570
  %603 = vmatprep.subr.bf16.mxu0 0
  %604 = vmatpush1.bf16.msra.mxu0 0
  %605 = vmatprep.subr.bf16.mxu0 0
  %606 = vmatpush1.bf16.msra.mxu0 0
  %607 = vmatprep.subr.bf16.mxu0 0
  %608 = vmatpush1.bf16.msra.mxu0 0
  %609 = vmatprep.subr.bf16.mxu0 0
  %610 = vmatpush1.bf16.msra.mxu0 0
  %611 = vmatprep.subr.bf16.mxu0 0
  %612 = vmatpush1.bf16.msra.mxu0 0
  %613 = vmatprep.subr.bf16.mxu0 0
  %614 = vmatpush1.bf16.msra.mxu0 0
  %615 = vmatprep.subr.bf16.mxu0 0
  %616 = vmatpush1.bf16.msra.mxu0 0
  %617 = vmatprep.subr.bf16.mxu0 0
  %618 = vmatpush1.bf16.msra.mxu0 0
  %619 = vmatprep.subr.bf16.mxu0 0
  %620 = vmatpush1.bf16.msra.mxu0 0
  %621 = vmatprep.subr.bf16.mxu0 0
  %622 = vmatpush1.bf16.msra.mxu0 0
  %623 = vmatprep.subr.bf16.mxu0 0
  %624 = vmatpush1.bf16.msra.mxu0 0
  %625 = vmatprep.subr.bf16.mxu0 0
  %626 = vmatpush1.bf16.msra.mxu0 0
  %627 = vmatprep.mubr.bf16.mxu0 0
  %628 = vmatmul.mubr.bf16.gmra.mrb[0].mxu0 %v86
  %v629 = vpop.f32.mrb[0].mxu0
  %v630 = vadd.f32 0.0, %v629
  %v631 = vpop.f32.mrb[0].mxu0
  %v632 = vpop.f32.mrb[0].mxu0
  %v633 = vpop.f32.mrb[0].mxu0
  %634 = vdwg.mxu0
  %v643 = vunpack.c.l.b16 %v579
  %v644 = vunpack.c.l.b16 %v580
  %v645 = vunpack.c.l.b16 %v581
  %v646 = vunpack.c.l.b16 %v582
  %v647 = vunpack.c.l.b16 %v583
  %v648 = vunpack.c.l.b16 %v584
  %v649 = vunpack.c.l.b16 %v585
  %v650 = vunpack.c.l.b16 %v586
  %v651 = vpack.c.b16 %v644, %v643
  %v652 = vpack.c.b16 %v646, %v645
  %v653 = vpack.c.b16 %v648, %v647
  %v654 = vpack.c.b16 %v650, %v649
  %659 = vmatprep.subr.bf16.mxu0 0
  %660 = vmatpush1.bf16.msra.mxu0 %v651
  %661 = vmatprep.subr.bf16.mxu0 0
  %662 = vmatpush1.bf16.msra.mxu0 %v652
  %663 = vmatprep.subr.bf16.mxu0 0
  %664 = vmatpush1.bf16.msra.mxu0 %v653
  %665 = vmatprep.subr.bf16.mxu0 0
  %666 = vmatpush1.bf16.msra.mxu0 %v654
  %667 = vmatprep.subr.bf16.mxu0 0
  %668 = vmatpush1.bf16.msra.mxu0 0
  %669 = vmatprep.subr.bf16.mxu0 0
  %670 = vmatpush1.bf16.msra.mxu0 0
  %671 = vmatprep.subr.bf16.mxu0 0
  %672 = vmatpush1.bf16.msra.mxu0 0
  %673 = vmatprep.subr.bf16.mxu0 0
  %674 = vmatpush1.bf16.msra.mxu0 0
  %675 = vmatprep.subr.bf16.mxu0 0
  %676 = vmatpush1.bf16.msra.mxu0 0
  %677 = vmatprep.subr.bf16.mxu0 0
  %678 = vmatpush1.bf16.msra.mxu0 0
  %679 = vmatprep.subr.bf16.mxu0 0
  %680 = vmatpush1.bf16.msra.mxu0 0
  %681 = vmatprep.subr.bf16.mxu0 0
  %682 = vmatpush1.bf16.msra.mxu0 0
  %683 = vmatprep.subr.bf16.mxu0 0
  %684 = vmatpush1.bf16.msra.mxu0 0
  %685 = vmatprep.subr.bf16.mxu0 0
  %686 = vmatpush1.bf16.msra.mxu0 0
  %687 = vmatprep.subr.bf16.mxu0 0
  %688 = vmatpush1.bf16.msra.mxu0 0
  %689 = vmatprep.subr.bf16.mxu0 0
  %690 = vmatpush1.bf16.msra.mxu0 0
  %691 = vmatprep.mubr.bf16.mxu0 0
  %692 = vmatmul.mubr.bf16.gmra.mrb[0].mxu0 %v86
  %v693 = vpop.f32.mrb[0].mxu0
  %v694 = vadd.f32 0.0, %v693
  %v695 = vpop.f32.mrb[0].mxu0
  %v696 = vpop.f32.mrb[0].mxu0
  %v697 = vpop.f32.mrb[0].mxu0
  %698 = vdwg.mxu0
  %v699 = vadd.f32 %v587, %v588
  %v700 = vadd.f32 %v699, %v589
  %v701 = vadd.f32 %v700, %v590
  %v702 = vadd.f32 %v701, %v591
  %v703 = vadd.f32 %v702, %v592
  %v704 = vadd.f32 %v703, %v593
  %v705 = vadd.f32 %v704, %v594
  %v706 = vrot.slane %v705, 4
  %v707 = vadd.f32 %v705, %v706
  %v708 = vrot.slane %v707, 2
  %v709 = vadd.f32 %v707, %v708
  %v710 = vrot.slane %v709, 1
  %v711 = vadd.f32 %v709, %v710
  %vm712 = vcmp.gt.f32.partialorder %v16, 0.26666668
  %vm713 = vcmp.gt.f32.partialorder %v17, 0.26666668
  %vm714 = vcmp.gt.f32.partialorder %v18, 0.26666668
  %vm715 = vcmp.gt.f32.partialorder %v19, 0.26666668
  %vm716 = vcmp.gt.f32.partialorder %v20, 0.26666668
  %vm717 = vcmp.gt.f32.partialorder %v21, 0.26666668
  %vm718 = vcmp.gt.f32.partialorder %v22, 0.26666668
  %vm719 = vcmp.gt.f32.partialorder %v23, 0.26666668
  %v720 = vsel %vm712, 1, 0
  %v721 = vsel %vm713, 1, 0
  %v722 = vsel %vm714, 1, 0
  %v723 = vsel %vm715, 1, 0
  %v724 = vsel %vm716, 1, 0
  %v725 = vsel %vm717, 1, 0
  %v726 = vsel %vm718, 1, 0
  %v727 = vsel %vm719, 1, 0
  %v728 = vcvt.s32.f32 %v720
  %v729 = vcvt.s32.f32 %v721
  %v730 = vcvt.s32.f32 %v722
  %v731 = vcvt.s32.f32 %v723
  %v732 = vcvt.s32.f32 %v724
  %v733 = vcvt.s32.f32 %v725
  %v734 = vcvt.s32.f32 %v726
  %v735 = vcvt.s32.f32 %v727
  %v736 = vpack.c.bf16 %v729, %v728
  %v737 = vpack.c.bf16 %v731, %v730
  %v738 = vpack.c.bf16 %v733, %v732
  %v739 = vpack.c.bf16 %v735, %v734
  %vm740 = vmpackc.low %vm712, %vm712
  %vm741 = vmpackc.low %vm713, %vm713
  %vm742 = vmpackc.low %vm714, %vm714
  %vm743 = vmpackc.low %vm715, %vm715
  %vm744 = vmpackc.low %vm716, %vm716
  %vm745 = vmpackc.low %vm717, %vm717
  %vm746 = vmpackc.low %vm718, %vm718
  %vm747 = vmpackc.low %vm719, %vm719
  %v748 = vsel %vm740, %v24, 0
  %v749 = vsel %vm741, %v25, 0
  %v750 = vsel %vm742, %v26, 0
  %v751 = vsel %vm743, %v27, 0
  %v752 = vsel %vm744, %v28, 0
  %v753 = vsel %vm745, %v29, 0
  %v754 = vsel %vm746, %v30, 0
  %v755 = vsel %vm747, %v31, 0
  %v756 = vsel %vm712, %v16, 0.0
  %v757 = vsel %vm713, %v17, 0.0
  %v758 = vsel %vm714, %v18, 0.0
  %v759 = vsel %vm715, %v19, 0.0
  %v760 = vsel %vm716, %v20, 0.0
  %v761 = vsel %vm717, %v21, 0.0
  %v762 = vsel %vm718, %v22, 0.0
  %v763 = vsel %vm719, %v23, 0.0
  %764 = vmatprep.subr.bf16.mxu0 0
  %765 = vmatpush1.bf16.msra.mxu0 %v736
  %766 = vmatprep.subr.bf16.mxu0 0
  %767 = vmatpush1.bf16.msra.mxu0 %v737
  %768 = vmatprep.subr.bf16.mxu0 0
  %769 = vmatpush1.bf16.msra.mxu0 %v738
  %770 = vmatprep.subr.bf16.mxu0 0
  %771 = vmatpush1.bf16.msra.mxu0 %v739
  %772 = vmatprep.subr.bf16.mxu0 0
  %773 = vmatpush1.bf16.msra.mxu0 0
  %774 = vmatprep.subr.bf16.mxu0 0
  %775 = vmatpush1.bf16.msra.mxu0 0
  %776 = vmatprep.subr.bf16.mxu0 0
  %777 = vmatpush1.bf16.msra.mxu0 0
  %778 = vmatprep.subr.bf16.mxu0 0
  %779 = vmatpush1.bf16.msra.mxu0 0
  %780 = vmatprep.subr.bf16.mxu0 0
  %781 = vmatpush1.bf16.msra.mxu0 0
  %782 = vmatprep.subr.bf16.mxu0 0
  %783 = vmatpush1.bf16.msra.mxu0 0
  %784 = vmatprep.subr.bf16.mxu0 0
  %785 = vmatpush1.bf16.msra.mxu0 0
  %786 = vmatprep.subr.bf16.mxu0 0
  %787 = vmatpush1.bf16.msra.mxu0 0
  %788 = vmatprep.subr.bf16.mxu0 0
  %789 = vmatpush1.bf16.msra.mxu0 0
  %790 = vmatprep.subr.bf16.mxu0 0
  %791 = vmatpush1.bf16.msra.mxu0 0
  %792 = vmatprep.subr.bf16.mxu0 0
  %793 = vmatpush1.bf16.msra.mxu0 0
  %794 = vmatprep.subr.bf16.mxu0 0
  %795 = vmatpush1.bf16.msra.mxu0 0
  %796 = vmatprep.mubr.bf16.mxu0 0
  %797 = vmatmul.mubr.bf16.gmra.mrb[0].mxu0 %v86
  %v798 = vpop.f32.mrb[0].mxu0
  %v799 = vadd.f32 0.0, %v798
  %v800 = vpop.f32.mrb[0].mxu0
  %v801 = vpop.f32.mrb[0].mxu0
  %v802 = vpop.f32.mrb[0].mxu0
  %803 = vdwg.mxu0
  %v812 = vunpack.c.l.b16 %v748
  %v813 = vunpack.c.l.b16 %v749
  %v814 = vunpack.c.l.b16 %v750
  %v815 = vunpack.c.l.b16 %v751
  %v816 = vunpack.c.l.b16 %v752
  %v817 = vunpack.c.l.b16 %v753
  %v818 = vunpack.c.l.b16 %v754
  %v819 = vunpack.c.l.b16 %v755
  %v820 = vpack.c.b16 %v813, %v812
  %v821 = vpack.c.b16 %v815, %v814
  %v822 = vpack.c.b16 %v817, %v816
  %v823 = vpack.c.b16 %v819, %v818
  %828 = vmatprep.subr.bf16.mxu0 0
  %829 = vmatpush1.bf16.msra.mxu0 %v820
  %830 = vmatprep.subr.bf16.mxu0 0
  %831 = vmatpush1.bf16.msra.mxu0 %v821
  %832 = vmatprep.subr.bf16.mxu0 0
  %833 = vmatpush1.bf16.msra.mxu0 %v822
  %834 = vmatprep.subr.bf16.mxu0 0
  %835 = vmatpush1.bf16.msra.mxu0 %v823
  %836 = vmatprep.subr.bf16.mxu0 0
  %837 = vmatpush1.bf16.msra.mxu0 0
  %838 = vmatprep.subr.bf16.mxu0 0
  %839 = vmatpush1.bf16.msra.mxu0 0
  %840 = vmatprep.subr.bf16.mxu0 0
  %841 = vmatpush1.bf16.msra.mxu0 0
  %842 = vmatprep.subr.bf16.mxu0 0
  %843 = vmatpush1.bf16.msra.mxu0 0
  %844 = vmatprep.subr.bf16.mxu0 0
  %845 = vmatpush1.bf16.msra.mxu0 0
  %846 = vmatprep.subr.bf16.mxu0 0
  %847 = vmatpush1.bf16.msra.mxu0 0
  %848 = vmatprep.subr.bf16.mxu0 0
  %849 = vmatpush1.bf16.msra.mxu0 0
  %850 = vmatprep.subr.bf16.mxu0 0
  %851 = vmatpush1.bf16.msra.mxu0 0
  %852 = vmatprep.subr.bf16.mxu0 0
  %853 = vmatpush1.bf16.msra.mxu0 0
  %854 = vmatprep.subr.bf16.mxu0 0
  %855 = vmatpush1.bf16.msra.mxu0 0
  %856 = vmatprep.subr.bf16.mxu0 0
  %857 = vmatpush1.bf16.msra.mxu0 0
  %858 = vmatprep.subr.bf16.mxu0 0
  %859 = vmatpush1.bf16.msra.mxu0 0
  %860 = vmatprep.mubr.bf16.mxu0 0
  %861 = vmatmul.mubr.bf16.gmra.mrb[0].mxu0 %v86
  %v862 = vpop.f32.mrb[0].mxu0
  %v863 = vadd.f32 0.0, %v862
  %v864 = vpop.f32.mrb[0].mxu0
  %v865 = vpop.f32.mrb[0].mxu0
  %v866 = vpop.f32.mrb[0].mxu0
  %867 = vdwg.mxu0
  %v868 = vadd.f32 %v756, %v757
  %v869 = vadd.f32 %v868, %v758
  %v870 = vadd.f32 %v869, %v759
  %v871 = vadd.f32 %v870, %v760
  %v872 = vadd.f32 %v871, %v761
  %v873 = vadd.f32 %v872, %v762
  %v874 = vadd.f32 %v873, %v763
  %v875 = vrot.slane %v874, 4
  %v876 = vadd.f32 %v874, %v875
  %v877 = vrot.slane %v876, 2
  %v878 = vadd.f32 %v876, %v877
  %v879 = vrot.slane %v878, 1
  %v880 = vadd.f32 %v878, %v879
  %vm881 = vcmp.gt.f32.partialorder %v16, 0.33333334
  %vm882 = vcmp.gt.f32.partialorder %v17, 0.33333334
  %vm883 = vcmp.gt.f32.partialorder %v18, 0.33333334
  %vm884 = vcmp.gt.f32.partialorder %v19, 0.33333334
  %vm885 = vcmp.gt.f32.partialorder %v20, 0.33333334
  %vm886 = vcmp.gt.f32.partialorder %v21, 0.33333334
  %vm887 = vcmp.gt.f32.partialorder %v22, 0.33333334
  %vm888 = vcmp.gt.f32.partialorder %v23, 0.33333334
  %v889 = vsel %vm881, 1, 0
  %v890 = vsel %vm882, 1, 0
  %v891 = vsel %vm883, 1, 0
  %v892 = vsel %vm884, 1, 0
  %v893 = vsel %vm885, 1, 0
  %v894 = vsel %vm886, 1, 0
  %v895 = vsel %vm887, 1, 0
  %v896 = vsel %vm888, 1, 0
  %v897 = vcvt.s32.f32 %v889
  %v898 = vcvt.s32.f32 %v890
  %v899 = vcvt.s32.f32 %v891
  %v900 = vcvt.s32.f32 %v892
  %v901 = vcvt.s32.f32 %v893
  %v902 = vcvt.s32.f32 %v894
  %v903 = vcvt.s32.f32 %v895
  %v904 = vcvt.s32.f32 %v896
  %v905 = vpack.c.bf16 %v898, %v897
  %v906 = vpack.c.bf16 %v900, %v899
  %v907 = vpack.c.bf16 %v902, %v901
  %v908 = vpack.c.bf16 %v904, %v903
  %vm909 = vmpackc.low %vm881, %vm881
  %vm910 = vmpackc.low %vm882, %vm882
  %vm911 = vmpackc.low %vm883, %vm883
  %vm912 = vmpackc.low %vm884, %vm884
  %vm913 = vmpackc.low %vm885, %vm885
  %vm914 = vmpackc.low %vm886, %vm886
  %vm915 = vmpackc.low %vm887, %vm887
  %vm916 = vmpackc.low %vm888, %vm888
  %v917 = vsel %vm909, %v24, 0
  %v918 = vsel %vm910, %v25, 0
  %v919 = vsel %vm911, %v26, 0
  %v920 = vsel %vm912, %v27, 0
  %v921 = vsel %vm913, %v28, 0
  %v922 = vsel %vm914, %v29, 0
  %v923 = vsel %vm915, %v30, 0
  %v924 = vsel %vm916, %v31, 0
  %v925 = vsel %vm881, %v16, 0.0
  %v926 = vsel %vm882, %v17, 0.0
  %v927 = vsel %vm883, %v18, 0.0
  %v928 = vsel %vm884, %v19, 0.0
  %v929 = vsel %vm885, %v20, 0.0
  %v930 = vsel %vm886, %v21, 0.0
  %v931 = vsel %vm887, %v22, 0.0
  %v932 = vsel %vm888, %v23, 0.0
  %933 = vmatprep.subr.bf16.mxu0 0
  %934 = vmatpush1.bf16.msra.mxu0 %v905
  %935 = vmatprep.subr.bf16.mxu0 0
  %936 = vmatpush1.bf16.msra.mxu0 %v906
  %937 = vmatprep.subr.bf16.mxu0 0
  %938 = vmatpush1.bf16.msra.mxu0 %v907
  %939 = vmatprep.subr.bf16.mxu0 0
  %940 = vmatpush1.bf16.msra.mxu0 %v908
  %941 = vmatprep.subr.bf16.mxu0 0
  %942 = vmatpush1.bf16.msra.mxu0 0
  %943 = vmatprep.subr.bf16.mxu0 0
  %944 = vmatpush1.bf16.msra.mxu0 0
  %945 = vmatprep.subr.bf16.mxu0 0
  %946 = vmatpush1.bf16.msra.mxu0 0
  %947 = vmatprep.subr.bf16.mxu0 0
  %948 = vmatpush1.bf16.msra.mxu0 0
  %949 = vmatprep.subr.bf16.mxu0 0
  %950 = vmatpush1.bf16.msra.mxu0 0
  %951 = vmatprep.subr.bf16.mxu0 0
  %952 = vmatpush1.bf16.msra.mxu0 0
  %953 = vmatprep.subr.bf16.mxu0 0
  %954 = vmatpush1.bf16.msra.mxu0 0
  %955 = vmatprep.subr.bf16.mxu0 0
  %956 = vmatpush1.bf16.msra.mxu0 0
  %957 = vmatprep.subr.bf16.mxu0 0
  %958 = vmatpush1.bf16.msra.mxu0 0
  %959 = vmatprep.subr.bf16.mxu0 0
  %960 = vmatpush1.bf16.msra.mxu0 0
  %961 = vmatprep.subr.bf16.mxu0 0
  %962 = vmatpush1.bf16.msra.mxu0 0
  %963 = vmatprep.subr.bf16.mxu0 0
  %964 = vmatpush1.bf16.msra.mxu0 0
  %965 = vmatprep.mubr.bf16.mxu0 0
  %966 = vmatmul.mubr.bf16.gmra.mrb[0].mxu0 %v86
  %v967 = vpop.f32.mrb[0].mxu0
  %v968 = vadd.f32 0.0, %v967
  %v969 = vpop.f32.mrb[0].mxu0
  %v970 = vpop.f32.mrb[0].mxu0
  %v971 = vpop.f32.mrb[0].mxu0
  %972 = vdwg.mxu0
  %v981 = vunpack.c.l.b16 %v917
  %v982 = vunpack.c.l.b16 %v918
  %v983 = vunpack.c.l.b16 %v919
  %v984 = vunpack.c.l.b16 %v920
  %v985 = vunpack.c.l.b16 %v921
  %v986 = vunpack.c.l.b16 %v922
  %v987 = vunpack.c.l.b16 %v923
  %v988 = vunpack.c.l.b16 %v924
  %v989 = vpack.c.b16 %v982, %v981
  %v990 = vpack.c.b16 %v984, %v983
  %v991 = vpack.c.b16 %v986, %v985
  %v992 = vpack.c.b16 %v988, %v987
  %997 = vmatprep.subr.bf16.mxu0 0
  %998 = vmatpush1.bf16.msra.mxu0 %v989
  %999 = vmatprep.subr.bf16.mxu0 0
  %1000 = vmatpush1.bf16.msra.mxu0 %v990
  %1001 = vmatprep.subr.bf16.mxu0 0
  %1002 = vmatpush1.bf16.msra.mxu0 %v991
  %1003 = vmatprep.subr.bf16.mxu0 0
  %1004 = vmatpush1.bf16.msra.mxu0 %v992
  %1005 = vmatprep.subr.bf16.mxu0 0
  %1006 = vmatpush1.bf16.msra.mxu0 0
  %1007 = vmatprep.subr.bf16.mxu0 0
  %1008 = vmatpush1.bf16.msra.mxu0 0
  %1009 = vmatprep.subr.bf16.mxu0 0
  %1010 = vmatpush1.bf16.msra.mxu0 0
  %1011 = vmatprep.subr.bf16.mxu0 0
  %1012 = vmatpush1.bf16.msra.mxu0 0
  %1013 = vmatprep.subr.bf16.mxu0 0
  %1014 = vmatpush1.bf16.msra.mxu0 0
  %1015 = vmatprep.subr.bf16.mxu0 0
  %1016 = vmatpush1.bf16.msra.mxu0 0
  %1017 = vmatprep.subr.bf16.mxu0 0
  %1018 = vmatpush1.bf16.msra.mxu0 0
  %1019 = vmatprep.subr.bf16.mxu0 0
  %1020 = vmatpush1.bf16.msra.mxu0 0
  %1021 = vmatprep.subr.bf16.mxu0 0
  %1022 = vmatpush1.bf16.msra.mxu0 0
  %1023 = vmatprep.subr.bf16.mxu0 0
  %1024 = vmatpush1.bf16.msra.mxu0 0
  %1025 = vmatprep.subr.bf16.mxu0 0
  %1026 = vmatpush1.bf16.msra.mxu0 0
  %1027 = vmatprep.subr.bf16.mxu0 0
  %1028 = vmatpush1.bf16.msra.mxu0 0
  %1029 = vmatprep.mubr.bf16.mxu0 0
  %1030 = vmatmul.mubr.bf16.gmra.mrb[0].mxu0 %v86
  %v1031 = vpop.f32.mrb[0].mxu0
  %v1032 = vadd.f32 0.0, %v1031
  %v1033 = vpop.f32.mrb[0].mxu0
  %v1034 = vpop.f32.mrb[0].mxu0
  %v1035 = vpop.f32.mrb[0].mxu0
  %1036 = vdwg.mxu0
  %v1037 = vadd.f32 %v925, %v926
  %v1038 = vadd.f32 %v1037, %v927
  %v1039 = vadd.f32 %v1038, %v928
  %v1040 = vadd.f32 %v1039, %v929
  %v1041 = vadd.f32 %v1040, %v930
  %v1042 = vadd.f32 %v1041, %v931
  %v1043 = vadd.f32 %v1042, %v932
  %v1044 = vrot.slane %v1043, 4
  %v1045 = vadd.f32 %v1043, %v1044
  %v1046 = vrot.slane %v1045, 2
  %v1047 = vadd.f32 %v1045, %v1046
  %v1048 = vrot.slane %v1047, 1
  %v1049 = vadd.f32 %v1047, %v1048
  %vm1050 = vcmp.gt.f32.partialorder %v16, 0.4
  %vm1051 = vcmp.gt.f32.partialorder %v17, 0.4
  %vm1052 = vcmp.gt.f32.partialorder %v18, 0.4
  %vm1053 = vcmp.gt.f32.partialorder %v19, 0.4
  %vm1054 = vcmp.gt.f32.partialorder %v20, 0.4
  %vm1055 = vcmp.gt.f32.partialorder %v21, 0.4
  %vm1056 = vcmp.gt.f32.partialorder %v22, 0.4
  %vm1057 = vcmp.gt.f32.partialorder %v23, 0.4
  %v1058 = vsel %vm1050, 1, 0
  %v1059 = vsel %vm1051, 1, 0
  %v1060 = vsel %vm1052, 1, 0
  %v1061 = vsel %vm1053, 1, 0
  %v1062 = vsel %vm1054, 1, 0
  %v1063 = vsel %vm1055, 1, 0
  %v1064 = vsel %vm1056, 1, 0
  %v1065 = vsel %vm1057, 1, 0
  %v1066 = vcvt.s32.f32 %v1058
  %v1067 = vcvt.s32.f32 %v1059
  %v1068 = vcvt.s32.f32 %v1060
  %v1069 = vcvt.s32.f32 %v1061
  %v1070 = vcvt.s32.f32 %v1062
  %v1071 = vcvt.s32.f32 %v1063
  %v1072 = vcvt.s32.f32 %v1064
  %v1073 = vcvt.s32.f32 %v1065
  %v1074 = vpack.c.bf16 %v1067, %v1066
  %v1075 = vpack.c.bf16 %v1069, %v1068
  %v1076 = vpack.c.bf16 %v1071, %v1070
  %v1077 = vpack.c.bf16 %v1073, %v1072
  %vm1078 = vmpackc.low %vm1050, %vm1050
  %vm1079 = vmpackc.low %vm1051, %vm1051
  %vm1080 = vmpackc.low %vm1052, %vm1052
  %vm1081 = vmpackc.low %vm1053, %vm1053
  %vm1082 = vmpackc.low %vm1054, %vm1054
  %vm1083 = vmpackc.low %vm1055, %vm1055
  %vm1084 = vmpackc.low %vm1056, %vm1056
  %vm1085 = vmpackc.low %vm1057, %vm1057
  %v1086 = vsel %vm1078, %v24, 0
  %v1087 = vsel %vm1079, %v25, 0
  %v1088 = vsel %vm1080, %v26, 0
  %v1089 = vsel %vm1081, %v27, 0
  %v1090 = vsel %vm1082, %v28, 0
  %v1091 = vsel %vm1083, %v29, 0
  %v1092 = vsel %vm1084, %v30, 0
  %v1093 = vsel %vm1085, %v31, 0
  %v1094 = vsel %vm1050, %v16, 0.0
  %v1095 = vsel %vm1051, %v17, 0.0
  %v1096 = vsel %vm1052, %v18, 0.0
  %v1097 = vsel %vm1053, %v19, 0.0
  %v1098 = vsel %vm1054, %v20, 0.0
  %v1099 = vsel %vm1055, %v21, 0.0
  %v1100 = vsel %vm1056, %v22, 0.0
  %v1101 = vsel %vm1057, %v23, 0.0
  %1102 = vmatprep.subr.bf16.mxu0 0
  %1103 = vmatpush1.bf16.msra.mxu0 %v1074
  %1104 = vmatprep.subr.bf16.mxu0 0
  %1105 = vmatpush1.bf16.msra.mxu0 %v1075
  %1106 = vmatprep.subr.bf16.mxu0 0
  %1107 = vmatpush1.bf16.msra.mxu0 %v1076
  %1108 = vmatprep.subr.bf16.mxu0 0
  %1109 = vmatpush1.bf16.msra.mxu0 %v1077
  %1110 = vmatprep.subr.bf16.mxu0 0
  %1111 = vmatpush1.bf16.msra.mxu0 0
  %1112 = vmatprep.subr.bf16.mxu0 0
  %1113 = vmatpush1.bf16.msra.mxu0 0
  %1114 = vmatprep.subr.bf16.mxu0 0
  %1115 = vmatpush1.bf16.msra.mxu0 0
  %1116 = vmatprep.subr.bf16.mxu0 0
  %1117 = vmatpush1.bf16.msra.mxu0 0
  %1118 = vmatprep.subr.bf16.mxu0 0
  %1119 = vmatpush1.bf16.msra.mxu0 0
  %1120 = vmatprep.subr.bf16.mxu0 0
  %1121 = vmatpush1.bf16.msra.mxu0 0
  %1122 = vmatprep.subr.bf16.mxu0 0
  %1123 = vmatpush1.bf16.msra.mxu0 0
  %1124 = vmatprep.subr.bf16.mxu0 0
  %1125 = vmatpush1.bf16.msra.mxu0 0
  %1126 = vmatprep.subr.bf16.mxu0 0
  %1127 = vmatpush1.bf16.msra.mxu0 0
  %1128 = vmatprep.subr.bf16.mxu0 0
  %1129 = vmatpush1.bf16.msra.mxu0 0
  %1130 = vmatprep.subr.bf16.mxu0 0
  %1131 = vmatpush1.bf16.msra.mxu0 0
  %1132 = vmatprep.subr.bf16.mxu0 0
  %1133 = vmatpush1.bf16.msra.mxu0 0
  %1134 = vmatprep.mubr.bf16.mxu0 0
  %1135 = vmatmul.mubr.bf16.gmra.mrb[0].mxu0 %v86
  %v1136 = vpop.f32.mrb[0].mxu0
  %v1137 = vadd.f32 0.0, %v1136
  %v1138 = vpop.f32.mrb[0].mxu0
  %v1139 = vpop.f32.mrb[0].mxu0
  %v1140 = vpop.f32.mrb[0].mxu0
  %1141 = vdwg.mxu0
  %v1150 = vunpack.c.l.b16 %v1086
  %v1151 = vunpack.c.l.b16 %v1087
  %v1152 = vunpack.c.l.b16 %v1088
  %v1153 = vunpack.c.l.b16 %v1089
  %v1154 = vunpack.c.l.b16 %v1090
  %v1155 = vunpack.c.l.b16 %v1091
  %v1156 = vunpack.c.l.b16 %v1092
  %v1157 = vunpack.c.l.b16 %v1093
  %v1158 = vpack.c.b16 %v1151, %v1150
  %v1159 = vpack.c.b16 %v1153, %v1152
  %v1160 = vpack.c.b16 %v1155, %v1154
  %v1161 = vpack.c.b16 %v1157, %v1156
  %1166 = vmatprep.subr.bf16.mxu0 0
  %1167 = vmatpush1.bf16.msra.mxu0 %v1158
  %1168 = vmatprep.subr.bf16.mxu0 0
  %1169 = vmatpush1.bf16.msra.mxu0 %v1159
  %1170 = vmatprep.subr.bf16.mxu0 0
  %1171 = vmatpush1.bf16.msra.mxu0 %v1160
  %1172 = vmatprep.subr.bf16.mxu0 0
  %1173 = vmatpush1.bf16.msra.mxu0 %v1161
  %1174 = vmatprep.subr.bf16.mxu0 0
  %1175 = vmatpush1.bf16.msra.mxu0 0
  %1176 = vmatprep.subr.bf16.mxu0 0
  %1177 = vmatpush1.bf16.msra.mxu0 0
  %1178 = vmatprep.subr.bf16.mxu0 0
  %1179 = vmatpush1.bf16.msra.mxu0 0
  %1180 = vmatprep.subr.bf16.mxu0 0
  %1181 = vmatpush1.bf16.msra.mxu0 0
  %1182 = vmatprep.subr.bf16.mxu0 0
  %1183 = vmatpush1.bf16.msra.mxu0 0
  %1184 = vmatprep.subr.bf16.mxu0 0
  %1185 = vmatpush1.bf16.msra.mxu0 0
  %1186 = vmatprep.subr.bf16.mxu0 0
  %1187 = vmatpush1.bf16.msra.mxu0 0
  %1188 = vmatprep.subr.bf16.mxu0 0
  %1189 = vmatpush1.bf16.msra.mxu0 0
  %1190 = vmatprep.subr.bf16.mxu0 0
  %1191 = vmatpush1.bf16.msra.mxu0 0
  %1192 = vmatprep.subr.bf16.mxu0 0
  %1193 = vmatpush1.bf16.msra.mxu0 0
  %1194 = vmatprep.subr.bf16.mxu0 0
  %1195 = vmatpush1.bf16.msra.mxu0 0
  %1196 = vmatprep.subr.bf16.mxu0 0
  %1197 = vmatpush1.bf16.msra.mxu0 0
  %1198 = vmatprep.mubr.bf16.mxu0 0
  %1199 = vmatmul.mubr.bf16.gmra.mrb[0].mxu0 %v86
  %v1200 = vpop.f32.mrb[0].mxu0
  %v1201 = vadd.f32 0.0, %v1200
  %v1202 = vpop.f32.mrb[0].mxu0
  %v1203 = vpop.f32.mrb[0].mxu0
  %v1204 = vpop.f32.mrb[0].mxu0
  %1205 = vdwg.mxu0
  %v1206 = vadd.f32 %v1094, %v1095
  %v1207 = vadd.f32 %v1206, %v1096
  %v1208 = vadd.f32 %v1207, %v1097
  %v1209 = vadd.f32 %v1208, %v1098
  %v1210 = vadd.f32 %v1209, %v1099
  %v1211 = vadd.f32 %v1210, %v1100
  %v1212 = vadd.f32 %v1211, %v1101
  %v1213 = vrot.slane %v1212, 4
  %v1214 = vadd.f32 %v1212, %v1213
  %v1215 = vrot.slane %v1214, 2
  %v1216 = vadd.f32 %v1214, %v1215
  %v1217 = vrot.slane %v1216, 1
  %v1218 = vadd.f32 %v1216, %v1217
  %vm1219 = vcmp.gt.f32.partialorder %v16, 0.46666667
  %vm1220 = vcmp.gt.f32.partialorder %v17, 0.46666667
  %vm1221 = vcmp.gt.f32.partialorder %v18, 0.46666667
  %vm1222 = vcmp.gt.f32.partialorder %v19, 0.46666667
  %vm1223 = vcmp.gt.f32.partialorder %v20, 0.46666667
  %vm1224 = vcmp.gt.f32.partialorder %v21, 0.46666667
  %vm1225 = vcmp.gt.f32.partialorder %v22, 0.46666667
  %vm1226 = vcmp.gt.f32.partialorder %v23, 0.46666667
  %v1227 = vsel %vm1219, 1, 0
  %v1228 = vsel %vm1220, 1, 0
  %v1229 = vsel %vm1221, 1, 0
  %v1230 = vsel %vm1222, 1, 0
  %v1231 = vsel %vm1223, 1, 0
  %v1232 = vsel %vm1224, 1, 0
  %v1233 = vsel %vm1225, 1, 0
  %v1234 = vsel %vm1226, 1, 0
  %v1235 = vcvt.s32.f32 %v1227
  %v1236 = vcvt.s32.f32 %v1228
  %v1237 = vcvt.s32.f32 %v1229
  %v1238 = vcvt.s32.f32 %v1230
  %v1239 = vcvt.s32.f32 %v1231
  %v1240 = vcvt.s32.f32 %v1232
  %v1241 = vcvt.s32.f32 %v1233
  %v1242 = vcvt.s32.f32 %v1234
  %v1243 = vpack.c.bf16 %v1236, %v1235
  %v1244 = vpack.c.bf16 %v1238, %v1237
  %v1245 = vpack.c.bf16 %v1240, %v1239
  %v1246 = vpack.c.bf16 %v1242, %v1241
  %vm1247 = vmpackc.low %vm1219, %vm1219
  %vm1248 = vmpackc.low %vm1220, %vm1220
  %vm1249 = vmpackc.low %vm1221, %vm1221
  %vm1250 = vmpackc.low %vm1222, %vm1222
  %vm1251 = vmpackc.low %vm1223, %vm1223
  %vm1252 = vmpackc.low %vm1224, %vm1224
  %vm1253 = vmpackc.low %vm1225, %vm1225
  %vm1254 = vmpackc.low %vm1226, %vm1226
  %v1255 = vsel %vm1247, %v24, 0
  %v1256 = vsel %vm1248, %v25, 0
  %v1257 = vsel %vm1249, %v26, 0
  %v1258 = vsel %vm1250, %v27, 0
  %v1259 = vsel %vm1251, %v28, 0
  %v1260 = vsel %vm1252, %v29, 0
  %v1261 = vsel %vm1253, %v30, 0
  %v1262 = vsel %vm1254, %v31, 0
  %v1263 = vsel %vm1219, %v16, 0.0
  %v1264 = vsel %vm1220, %v17, 0.0
  %v1265 = vsel %vm1221, %v18, 0.0
  %v1266 = vsel %vm1222, %v19, 0.0
  %v1267 = vsel %vm1223, %v20, 0.0
  %v1268 = vsel %vm1224, %v21, 0.0
  %v1269 = vsel %vm1225, %v22, 0.0
  %v1270 = vsel %vm1226, %v23, 0.0
  %1271 = vmatprep.subr.bf16.mxu0 0
  %1272 = vmatpush1.bf16.msra.mxu0 %v1243
  %1273 = vmatprep.subr.bf16.mxu0 0
  %1274 = vmatpush1.bf16.msra.mxu0 %v1244
  %1275 = vmatprep.subr.bf16.mxu0 0
  %1276 = vmatpush1.bf16.msra.mxu0 %v1245
  %1277 = vmatprep.subr.bf16.mxu0 0
  %1278 = vmatpush1.bf16.msra.mxu0 %v1246
  %1279 = vmatprep.subr.bf16.mxu0 0
  %1280 = vmatpush1.bf16.msra.mxu0 0
  %1281 = vmatprep.subr.bf16.mxu0 0
  %1282 = vmatpush1.bf16.msra.mxu0 0
  %1283 = vmatprep.subr.bf16.mxu0 0
  %1284 = vmatpush1.bf16.msra.mxu0 0
  %1285 = vmatprep.subr.bf16.mxu0 0
  %1286 = vmatpush1.bf16.msra.mxu0 0
  %1287 = vmatprep.subr.bf16.mxu0 0
  %1288 = vmatpush1.bf16.msra.mxu0 0
  %1289 = vmatprep.subr.bf16.mxu0 0
  %1290 = vmatpush1.bf16.msra.mxu0 0
  %1291 = vmatprep.subr.bf16.mxu0 0
  %1292 = vmatpush1.bf16.msra.mxu0 0
  %1293 = vmatprep.subr.bf16.mxu0 0
  %1294 = vmatpush1.bf16.msra.mxu0 0
  %1295 = vmatprep.subr.bf16.mxu0 0
  %1296 = vmatpush1.bf16.msra.mxu0 0
  %1297 = vmatprep.subr.bf16.mxu0 0
  %1298 = vmatpush1.bf16.msra.mxu0 0
  %1299 = vmatprep.subr.bf16.mxu0 0
  %1300 = vmatpush1.bf16.msra.mxu0 0
  %1301 = vmatprep.subr.bf16.mxu0 0
  %1302 = vmatpush1.bf16.msra.mxu0 0
  %1303 = vmatprep.mubr.bf16.mxu0 0
  %1304 = vmatmul.mubr.bf16.gmra.mrb[0].mxu0 %v86
  %v1305 = vpop.f32.mrb[0].mxu0
  %v1306 = vadd.f32 0.0, %v1305
  %v1307 = vpop.f32.mrb[0].mxu0
  %v1308 = vpop.f32.mrb[0].mxu0
  %v1309 = vpop.f32.mrb[0].mxu0
  %1310 = vdwg.mxu0
  %v1319 = vunpack.c.l.b16 %v1255
  %v1320 = vunpack.c.l.b16 %v1256
  %v1321 = vunpack.c.l.b16 %v1257
  %v1322 = vunpack.c.l.b16 %v1258
  %v1323 = vunpack.c.l.b16 %v1259
  %v1324 = vunpack.c.l.b16 %v1260
  %v1325 = vunpack.c.l.b16 %v1261
  %v1326 = vunpack.c.l.b16 %v1262
  %v1327 = vpack.c.b16 %v1320, %v1319
  %v1328 = vpack.c.b16 %v1322, %v1321
  %v1329 = vpack.c.b16 %v1324, %v1323
  %v1330 = vpack.c.b16 %v1326, %v1325
  %1335 = vmatprep.subr.bf16.mxu0 0
  %1336 = vmatpush1.bf16.msra.mxu0 %v1327
  %1337 = vmatprep.subr.bf16.mxu0 0
  %1338 = vmatpush1.bf16.msra.mxu0 %v1328
  %1339 = vmatprep.subr.bf16.mxu0 0
  %1340 = vmatpush1.bf16.msra.mxu0 %v1329
  %1341 = vmatprep.subr.bf16.mxu0 0
  %1342 = vmatpush1.bf16.msra.mxu0 %v1330
  %1343 = vmatprep.subr.bf16.mxu0 0
  %1344 = vmatpush1.bf16.msra.mxu0 0
  %1345 = vmatprep.subr.bf16.mxu0 0
  %1346 = vmatpush1.bf16.msra.mxu0 0
  %1347 = vmatprep.subr.bf16.mxu0 0
  %1348 = vmatpush1.bf16.msra.mxu0 0
  %1349 = vmatprep.subr.bf16.mxu0 0
  %1350 = vmatpush1.bf16.msra.mxu0 0
  %1351 = vmatprep.subr.bf16.mxu0 0
  %1352 = vmatpush1.bf16.msra.mxu0 0
  %1353 = vmatprep.subr.bf16.mxu0 0
  %1354 = vmatpush1.bf16.msra.mxu0 0
  %1355 = vmatprep.subr.bf16.mxu0 0
  %1356 = vmatpush1.bf16.msra.mxu0 0
  %1357 = vmatprep.subr.bf16.mxu0 0
  %1358 = vmatpush1.bf16.msra.mxu0 0
  %1359 = vmatprep.subr.bf16.mxu0 0
  %1360 = vmatpush1.bf16.msra.mxu0 0
  %1361 = vmatprep.subr.bf16.mxu0 0
  %1362 = vmatpush1.bf16.msra.mxu0 0
  %1363 = vmatprep.subr.bf16.mxu0 0
  %1364 = vmatpush1.bf16.msra.mxu0 0
  %1365 = vmatprep.subr.bf16.mxu0 0
  %1366 = vmatpush1.bf16.msra.mxu0 0
  %1367 = vmatprep.mubr.bf16.mxu0 0
  %1368 = vmatmul.mubr.bf16.gmra.mrb[0].mxu0 %v86
  %v1369 = vpop.f32.mrb[0].mxu0
  %v1370 = vadd.f32 0.0, %v1369
  %v1371 = vpop.f32.mrb[0].mxu0
  %v1372 = vpop.f32.mrb[0].mxu0
  %v1373 = vpop.f32.mrb[0].mxu0
  %1374 = vdwg.mxu0
  %v1375 = vadd.f32 %v1263, %v1264
  %v1376 = vadd.f32 %v1375, %v1265
  %v1377 = vadd.f32 %v1376, %v1266
  %v1378 = vadd.f32 %v1377, %v1267
  %v1379 = vadd.f32 %v1378, %v1268
  %v1380 = vadd.f32 %v1379, %v1269
  %v1381 = vadd.f32 %v1380, %v1270
  %v1382 = vrot.slane %v1381, 4
  %v1383 = vadd.f32 %v1381, %v1382
  %v1384 = vrot.slane %v1383, 2
  %v1385 = vadd.f32 %v1383, %v1384
  %v1386 = vrot.slane %v1385, 1
  %v1387 = vadd.f32 %v1385, %v1386
  %vm1388 = vcmp.gt.f32.partialorder %v16, 0.53333336
  %vm1389 = vcmp.gt.f32.partialorder %v17, 0.53333336
  %vm1390 = vcmp.gt.f32.partialorder %v18, 0.53333336
  %vm1391 = vcmp.gt.f32.partialorder %v19, 0.53333336
  %vm1392 = vcmp.gt.f32.partialorder %v20, 0.53333336
  %vm1393 = vcmp.gt.f32.partialorder %v21, 0.53333336
  %vm1394 = vcmp.gt.f32.partialorder %v22, 0.53333336
  %vm1395 = vcmp.gt.f32.partialorder %v23, 0.53333336
  %v1396 = vsel %vm1388, 1, 0
  %v1397 = vsel %vm1389, 1, 0
  %v1398 = vsel %vm1390, 1, 0
  %v1399 = vsel %vm1391, 1, 0
  %v1400 = vsel %vm1392, 1, 0
  %v1401 = vsel %vm1393, 1, 0
  %v1402 = vsel %vm1394, 1, 0
  %v1403 = vsel %vm1395, 1, 0
  %v1404 = vcvt.s32.f32 %v1396
  %v1405 = vcvt.s32.f32 %v1397
  %v1406 = vcvt.s32.f32 %v1398
  %v1407 = vcvt.s32.f32 %v1399
  %v1408 = vcvt.s32.f32 %v1400
  %v1409 = vcvt.s32.f32 %v1401
  %v1410 = vcvt.s32.f32 %v1402
  %v1411 = vcvt.s32.f32 %v1403
  %v1412 = vpack.c.bf16 %v1405, %v1404
  %v1413 = vpack.c.bf16 %v1407, %v1406
  %v1414 = vpack.c.bf16 %v1409, %v1408
  %v1415 = vpack.c.bf16 %v1411, %v1410
  %vm1416 = vmpackc.low %vm1388, %vm1388
  %vm1417 = vmpackc.low %vm1389, %vm1389
  %vm1418 = vmpackc.low %vm1390, %vm1390
  %vm1419 = vmpackc.low %vm1391, %vm1391
  %vm1420 = vmpackc.low %vm1392, %vm1392
  %vm1421 = vmpackc.low %vm1393, %vm1393
  %vm1422 = vmpackc.low %vm1394, %vm1394
  %vm1423 = vmpackc.low %vm1395, %vm1395
  %v1424 = vsel %vm1416, %v24, 0
  %v1425 = vsel %vm1417, %v25, 0
  %v1426 = vsel %vm1418, %v26, 0
  %v1427 = vsel %vm1419, %v27, 0
  %v1428 = vsel %vm1420, %v28, 0
  %v1429 = vsel %vm1421, %v29, 0
  %v1430 = vsel %vm1422, %v30, 0
  %v1431 = vsel %vm1423, %v31, 0
  %v1432 = vsel %vm1388, %v16, 0.0
  %v1433 = vsel %vm1389, %v17, 0.0
  %v1434 = vsel %vm1390, %v18, 0.0
  %v1435 = vsel %vm1391, %v19, 0.0
  %v1436 = vsel %vm1392, %v20, 0.0
  %v1437 = vsel %vm1393, %v21, 0.0
  %v1438 = vsel %vm1394, %v22, 0.0
  %v1439 = vsel %vm1395, %v23, 0.0
  %1440 = vmatprep.subr.bf16.mxu0 0
  %1441 = vmatpush1.bf16.msra.mxu0 %v1412
  %1442 = vmatprep.subr.bf16.mxu0 0
  %1443 = vmatpush1.bf16.msra.mxu0 %v1413
  %1444 = vmatprep.subr.bf16.mxu0 0
  %1445 = vmatpush1.bf16.msra.mxu0 %v1414
  %1446 = vmatprep.subr.bf16.mxu0 0
  %1447 = vmatpush1.bf16.msra.mxu0 %v1415
  %1448 = vmatprep.subr.bf16.mxu0 0
  %1449 = vmatpush1.bf16.msra.mxu0 0
  %1450 = vmatprep.subr.bf16.mxu0 0
  %1451 = vmatpush1.bf16.msra.mxu0 0
  %1452 = vmatprep.subr.bf16.mxu0 0
  %1453 = vmatpush1.bf16.msra.mxu0 0
  %1454 = vmatprep.subr.bf16.mxu0 0
  %1455 = vmatpush1.bf16.msra.mxu0 0
  %1456 = vmatprep.subr.bf16.mxu0 0
  %1457 = vmatpush1.bf16.msra.mxu0 0
  %1458 = vmatprep.subr.bf16.mxu0 0
  %1459 = vmatpush1.bf16.msra.mxu0 0
  %1460 = vmatprep.subr.bf16.mxu0 0
  %1461 = vmatpush1.bf16.msra.mxu0 0
  %1462 = vmatprep.subr.bf16.mxu0 0
  %1463 = vmatpush1.bf16.msra.mxu0 0
  %1464 = vmatprep.subr.bf16.mxu0 0
  %1465 = vmatpush1.bf16.msra.mxu0 0
  %1466 = vmatprep.subr.bf16.mxu0 0
  %1467 = vmatpush1.bf16.msra.mxu0 0
  %1468 = vmatprep.subr.bf16.mxu0 0
  %1469 = vmatpush1.bf16.msra.mxu0 0
  %1470 = vmatprep.subr.bf16.mxu0 0
  %1471 = vmatpush1.bf16.msra.mxu0 0
  %1472 = vmatprep.mubr.bf16.mxu0 0
  %1473 = vmatmul.mubr.bf16.gmra.mrb[0].mxu0 %v86
  %v1474 = vpop.f32.mrb[0].mxu0
  %v1475 = vadd.f32 0.0, %v1474
  %v1476 = vpop.f32.mrb[0].mxu0
  %v1477 = vpop.f32.mrb[0].mxu0
  %v1478 = vpop.f32.mrb[0].mxu0
  %1479 = vdwg.mxu0
  %v1488 = vunpack.c.l.b16 %v1424
  %v1489 = vunpack.c.l.b16 %v1425
  %v1490 = vunpack.c.l.b16 %v1426
  %v1491 = vunpack.c.l.b16 %v1427
  %v1492 = vunpack.c.l.b16 %v1428
  %v1493 = vunpack.c.l.b16 %v1429
  %v1494 = vunpack.c.l.b16 %v1430
  %v1495 = vunpack.c.l.b16 %v1431
  %v1496 = vpack.c.b16 %v1489, %v1488
  %v1497 = vpack.c.b16 %v1491, %v1490
  %v1498 = vpack.c.b16 %v1493, %v1492
  %v1499 = vpack.c.b16 %v1495, %v1494
  %1504 = vmatprep.subr.bf16.mxu0 0
  %1505 = vmatpush1.bf16.msra.mxu0 %v1496
  %1506 = vmatprep.subr.bf16.mxu0 0
  %1507 = vmatpush1.bf16.msra.mxu0 %v1497
  %1508 = vmatprep.subr.bf16.mxu0 0
  %1509 = vmatpush1.bf16.msra.mxu0 %v1498
  %1510 = vmatprep.subr.bf16.mxu0 0
  %1511 = vmatpush1.bf16.msra.mxu0 %v1499
  %1512 = vmatprep.subr.bf16.mxu0 0
  %1513 = vmatpush1.bf16.msra.mxu0 0
  %1514 = vmatprep.subr.bf16.mxu0 0
  %1515 = vmatpush1.bf16.msra.mxu0 0
  %1516 = vmatprep.subr.bf16.mxu0 0
  %1517 = vmatpush1.bf16.msra.mxu0 0
  %1518 = vmatprep.subr.bf16.mxu0 0
  %1519 = vmatpush1.bf16.msra.mxu0 0
  %1520 = vmatprep.subr.bf16.mxu0 0
  %1521 = vmatpush1.bf16.msra.mxu0 0
  %1522 = vmatprep.subr.bf16.mxu0 0
  %1523 = vmatpush1.bf16.msra.mxu0 0
  %1524 = vmatprep.subr.bf16.mxu0 0
  %1525 = vmatpush1.bf16.msra.mxu0 0
  %1526 = vmatprep.subr.bf16.mxu0 0
  %1527 = vmatpush1.bf16.msra.mxu0 0
  %1528 = vmatprep.subr.bf16.mxu0 0
  %1529 = vmatpush1.bf16.msra.mxu0 0
  %1530 = vmatprep.subr.bf16.mxu0 0
  %1531 = vmatpush1.bf16.msra.mxu0 0
  %1532 = vmatprep.subr.bf16.mxu0 0
  %1533 = vmatpush1.bf16.msra.mxu0 0
  %1534 = vmatprep.subr.bf16.mxu0 0
  %1535 = vmatpush1.bf16.msra.mxu0 0
  %1536 = vmatprep.mubr.bf16.mxu0 0
  %1537 = vmatmul.mubr.bf16.gmra.mrb[0].mxu0 %v86
  %v1538 = vpop.f32.mrb[0].mxu0
  %v1539 = vadd.f32 0.0, %v1538
  %v1540 = vpop.f32.mrb[0].mxu0
  %v1541 = vpop.f32.mrb[0].mxu0
  %v1542 = vpop.f32.mrb[0].mxu0
  %1543 = vdwg.mxu0
  %v1544 = vadd.f32 %v1432, %v1433
  %v1545 = vadd.f32 %v1544, %v1434
  %v1546 = vadd.f32 %v1545, %v1435
  %v1547 = vadd.f32 %v1546, %v1436
  %v1548 = vadd.f32 %v1547, %v1437
  %v1549 = vadd.f32 %v1548, %v1438
  %v1550 = vadd.f32 %v1549, %v1439
  %v1551 = vrot.slane %v1550, 4
  %v1552 = vadd.f32 %v1550, %v1551
  %v1553 = vrot.slane %v1552, 2
  %v1554 = vadd.f32 %v1552, %v1553
  %v1555 = vrot.slane %v1554, 1
  %v1556 = vadd.f32 %v1554, %v1555
  %vm1557 = vcmp.gt.f32.partialorder %v16, 0.6
  %vm1558 = vcmp.gt.f32.partialorder %v17, 0.6
  %vm1559 = vcmp.gt.f32.partialorder %v18, 0.6
  %vm1560 = vcmp.gt.f32.partialorder %v19, 0.6
  %vm1561 = vcmp.gt.f32.partialorder %v20, 0.6
  %vm1562 = vcmp.gt.f32.partialorder %v21, 0.6
  %vm1563 = vcmp.gt.f32.partialorder %v22, 0.6
  %vm1564 = vcmp.gt.f32.partialorder %v23, 0.6
  %v1565 = vsel %vm1557, 1, 0
  %v1566 = vsel %vm1558, 1, 0
  %v1567 = vsel %vm1559, 1, 0
  %v1568 = vsel %vm1560, 1, 0
  %v1569 = vsel %vm1561, 1, 0
  %v1570 = vsel %vm1562, 1, 0
  %v1571 = vsel %vm1563, 1, 0
  %v1572 = vsel %vm1564, 1, 0
  %v1573 = vcvt.s32.f32 %v1565
  %v1574 = vcvt.s32.f32 %v1566
  %v1575 = vcvt.s32.f32 %v1567
  %v1576 = vcvt.s32.f32 %v1568
  %v1577 = vcvt.s32.f32 %v1569
  %v1578 = vcvt.s32.f32 %v1570
  %v1579 = vcvt.s32.f32 %v1571
  %v1580 = vcvt.s32.f32 %v1572
  %v1581 = vpack.c.bf16 %v1574, %v1573
  %v1582 = vpack.c.bf16 %v1576, %v1575
  %v1583 = vpack.c.bf16 %v1578, %v1577
  %v1584 = vpack.c.bf16 %v1580, %v1579
  %vm1585 = vmpackc.low %vm1557, %vm1557
  %vm1586 = vmpackc.low %vm1558, %vm1558
  %vm1587 = vmpackc.low %vm1559, %vm1559
  %vm1588 = vmpackc.low %vm1560, %vm1560
  %vm1589 = vmpackc.low %vm1561, %vm1561
  %vm1590 = vmpackc.low %vm1562, %vm1562
  %vm1591 = vmpackc.low %vm1563, %vm1563
  %vm1592 = vmpackc.low %vm1564, %vm1564
  %v1593 = vsel %vm1585, %v24, 0
  %v1594 = vsel %vm1586, %v25, 0
  %v1595 = vsel %vm1587, %v26, 0
  %v1596 = vsel %vm1588, %v27, 0
  %v1597 = vsel %vm1589, %v28, 0
  %v1598 = vsel %vm1590, %v29, 0
  %v1599 = vsel %vm1591, %v30, 0
  %v1600 = vsel %vm1592, %v31, 0
  %v1601 = vsel %vm1557, %v16, 0.0
  %v1602 = vsel %vm1558, %v17, 0.0
  %v1603 = vsel %vm1559, %v18, 0.0
  %v1604 = vsel %vm1560, %v19, 0.0
  %v1605 = vsel %vm1561, %v20, 0.0
  %v1606 = vsel %vm1562, %v21, 0.0
  %v1607 = vsel %vm1563, %v22, 0.0
  %v1608 = vsel %vm1564, %v23, 0.0
  %1609 = vmatprep.subr.bf16.mxu0 0
  %1610 = vmatpush1.bf16.msra.mxu0 %v1581
  %1611 = vmatprep.subr.bf16.mxu0 0
  %1612 = vmatpush1.bf16.msra.mxu0 %v1582
  %1613 = vmatprep.subr.bf16.mxu0 0
  %1614 = vmatpush1.bf16.msra.mxu0 %v1583
  %1615 = vmatprep.subr.bf16.mxu0 0
  %1616 = vmatpush1.bf16.msra.mxu0 %v1584
  %1617 = vmatprep.subr.bf16.mxu0 0
  %1618 = vmatpush1.bf16.msra.mxu0 0
  %1619 = vmatprep.subr.bf16.mxu0 0
  %1620 = vmatpush1.bf16.msra.mxu0 0
  %1621 = vmatprep.subr.bf16.mxu0 0
  %1622 = vmatpush1.bf16.msra.mxu0 0
  %1623 = vmatprep.subr.bf16.mxu0 0
  %1624 = vmatpush1.bf16.msra.mxu0 0
  %1625 = vmatprep.subr.bf16.mxu0 0
  %1626 = vmatpush1.bf16.msra.mxu0 0
  %1627 = vmatprep.subr.bf16.mxu0 0
  %1628 = vmatpush1.bf16.msra.mxu0 0
  %1629 = vmatprep.subr.bf16.mxu0 0
  %1630 = vmatpush1.bf16.msra.mxu0 0
  %1631 = vmatprep.subr.bf16.mxu0 0
  %1632 = vmatpush1.bf16.msra.mxu0 0
  %1633 = vmatprep.subr.bf16.mxu0 0
  %1634 = vmatpush1.bf16.msra.mxu0 0
  %1635 = vmatprep.subr.bf16.mxu0 0
  %1636 = vmatpush1.bf16.msra.mxu0 0
  %1637 = vmatprep.subr.bf16.mxu0 0
  %1638 = vmatpush1.bf16.msra.mxu0 0
  %1639 = vmatprep.subr.bf16.mxu0 0
  %1640 = vmatpush1.bf16.msra.mxu0 0
  %1641 = vmatprep.mubr.bf16.mxu0 0
  %1642 = vmatmul.mubr.bf16.gmra.mrb[0].mxu0 %v86
  %v1643 = vpop.f32.mrb[0].mxu0
  %v1644 = vadd.f32 0.0, %v1643
  %v1645 = vpop.f32.mrb[0].mxu0
  %v1646 = vpop.f32.mrb[0].mxu0
  %v1647 = vpop.f32.mrb[0].mxu0
  %1648 = vdwg.mxu0
  %v1657 = vunpack.c.l.b16 %v1593
  %v1658 = vunpack.c.l.b16 %v1594
  %v1659 = vunpack.c.l.b16 %v1595
  %v1660 = vunpack.c.l.b16 %v1596
  %v1661 = vunpack.c.l.b16 %v1597
  %v1662 = vunpack.c.l.b16 %v1598
  %v1663 = vunpack.c.l.b16 %v1599
  %v1664 = vunpack.c.l.b16 %v1600
  %v1665 = vpack.c.b16 %v1658, %v1657
  %v1666 = vpack.c.b16 %v1660, %v1659
  %v1667 = vpack.c.b16 %v1662, %v1661
  %v1668 = vpack.c.b16 %v1664, %v1663
  %1673 = vmatprep.subr.bf16.mxu0 0
  %1674 = vmatpush1.bf16.msra.mxu0 %v1665
  %1675 = vmatprep.subr.bf16.mxu0 0
  %1676 = vmatpush1.bf16.msra.mxu0 %v1666
  %1677 = vmatprep.subr.bf16.mxu0 0
  %1678 = vmatpush1.bf16.msra.mxu0 %v1667
  %1679 = vmatprep.subr.bf16.mxu0 0
  %1680 = vmatpush1.bf16.msra.mxu0 %v1668
  %1681 = vmatprep.subr.bf16.mxu0 0
  %1682 = vmatpush1.bf16.msra.mxu0 0
  %1683 = vmatprep.subr.bf16.mxu0 0
  %1684 = vmatpush1.bf16.msra.mxu0 0
  %1685 = vmatprep.subr.bf16.mxu0 0
  %1686 = vmatpush1.bf16.msra.mxu0 0
  %1687 = vmatprep.subr.bf16.mxu0 0
  %1688 = vmatpush1.bf16.msra.mxu0 0
  %1689 = vmatprep.subr.bf16.mxu0 0
  %1690 = vmatpush1.bf16.msra.mxu0 0
  %1691 = vmatprep.subr.bf16.mxu0 0
  %1692 = vmatpush1.bf16.msra.mxu0 0
  %1693 = vmatprep.subr.bf16.mxu0 0
  %1694 = vmatpush1.bf16.msra.mxu0 0
  %1695 = vmatprep.subr.bf16.mxu0 0
  %1696 = vmatpush1.bf16.msra.mxu0 0
  %1697 = vmatprep.subr.bf16.mxu0 0
  %1698 = vmatpush1.bf16.msra.mxu0 0
  %1699 = vmatprep.subr.bf16.mxu0 0
  %1700 = vmatpush1.bf16.msra.mxu0 0
  %1701 = vmatprep.subr.bf16.mxu0 0
  %1702 = vmatpush1.bf16.msra.mxu0 0
  %1703 = vmatprep.subr.bf16.mxu0 0
  %1704 = vmatpush1.bf16.msra.mxu0 0
  %1705 = vmatprep.mubr.bf16.mxu0 0
  %1706 = vmatmul.mubr.bf16.gmra.mrb[0].mxu0 %v86
  %v1707 = vpop.f32.mrb[0].mxu0
  %v1708 = vadd.f32 0.0, %v1707
  %v1709 = vpop.f32.mrb[0].mxu0
  %v1710 = vpop.f32.mrb[0].mxu0
  %v1711 = vpop.f32.mrb[0].mxu0
  %1712 = vdwg.mxu0
  %v1713 = vadd.f32 %v1601, %v1602
  %v1714 = vadd.f32 %v1713, %v1603
  %v1715 = vadd.f32 %v1714, %v1604
  %v1716 = vadd.f32 %v1715, %v1605
  %v1717 = vadd.f32 %v1716, %v1606
  %v1718 = vadd.f32 %v1717, %v1607
  %v1719 = vadd.f32 %v1718, %v1608
  %v1720 = vrot.slane %v1719, 4
  %v1721 = vadd.f32 %v1719, %v1720
  %v1722 = vrot.slane %v1721, 2
  %v1723 = vadd.f32 %v1721, %v1722
  %v1724 = vrot.slane %v1723, 1
  %v1725 = vadd.f32 %v1723, %v1724
  %vm1726 = vcmp.gt.f32.partialorder %v16, 0.6666667
  %vm1727 = vcmp.gt.f32.partialorder %v17, 0.6666667
  %vm1728 = vcmp.gt.f32.partialorder %v18, 0.6666667
  %vm1729 = vcmp.gt.f32.partialorder %v19, 0.6666667
  %vm1730 = vcmp.gt.f32.partialorder %v20, 0.6666667
  %vm1731 = vcmp.gt.f32.partialorder %v21, 0.6666667
  %vm1732 = vcmp.gt.f32.partialorder %v22, 0.6666667
  %vm1733 = vcmp.gt.f32.partialorder %v23, 0.6666667
  %v1734 = vsel %vm1726, 1, 0
  %v1735 = vsel %vm1727, 1, 0
  %v1736 = vsel %vm1728, 1, 0
  %v1737 = vsel %vm1729, 1, 0
  %v1738 = vsel %vm1730, 1, 0
  %v1739 = vsel %vm1731, 1, 0
  %v1740 = vsel %vm1732, 1, 0
  %v1741 = vsel %vm1733, 1, 0
  %v1742 = vcvt.s32.f32 %v1734
  %v1743 = vcvt.s32.f32 %v1735
  %v1744 = vcvt.s32.f32 %v1736
  %v1745 = vcvt.s32.f32 %v1737
  %v1746 = vcvt.s32.f32 %v1738
  %v1747 = vcvt.s32.f32 %v1739
  %v1748 = vcvt.s32.f32 %v1740
  %v1749 = vcvt.s32.f32 %v1741
  %v1750 = vpack.c.bf16 %v1743, %v1742
  %v1751 = vpack.c.bf16 %v1745, %v1744
  %v1752 = vpack.c.bf16 %v1747, %v1746
  %v1753 = vpack.c.bf16 %v1749, %v1748
  %vm1754 = vmpackc.low %vm1726, %vm1726
  %vm1755 = vmpackc.low %vm1727, %vm1727
  %vm1756 = vmpackc.low %vm1728, %vm1728
  %vm1757 = vmpackc.low %vm1729, %vm1729
  %vm1758 = vmpackc.low %vm1730, %vm1730
  %vm1759 = vmpackc.low %vm1731, %vm1731
  %vm1760 = vmpackc.low %vm1732, %vm1732
  %vm1761 = vmpackc.low %vm1733, %vm1733
  %v1762 = vsel %vm1754, %v24, 0
  %v1763 = vsel %vm1755, %v25, 0
  %v1764 = vsel %vm1756, %v26, 0
  %v1765 = vsel %vm1757, %v27, 0
  %v1766 = vsel %vm1758, %v28, 0
  %v1767 = vsel %vm1759, %v29, 0
  %v1768 = vsel %vm1760, %v30, 0
  %v1769 = vsel %vm1761, %v31, 0
  %v1770 = vsel %vm1726, %v16, 0.0
  %v1771 = vsel %vm1727, %v17, 0.0
  %v1772 = vsel %vm1728, %v18, 0.0
  %v1773 = vsel %vm1729, %v19, 0.0
  %v1774 = vsel %vm1730, %v20, 0.0
  %v1775 = vsel %vm1731, %v21, 0.0
  %v1776 = vsel %vm1732, %v22, 0.0
  %v1777 = vsel %vm1733, %v23, 0.0
  %1778 = vmatprep.subr.bf16.mxu0 0
  %1779 = vmatpush1.bf16.msra.mxu0 %v1750
  %1780 = vmatprep.subr.bf16.mxu0 0
  %1781 = vmatpush1.bf16.msra.mxu0 %v1751
  %1782 = vmatprep.subr.bf16.mxu0 0
  %1783 = vmatpush1.bf16.msra.mxu0 %v1752
  %1784 = vmatprep.subr.bf16.mxu0 0
  %1785 = vmatpush1.bf16.msra.mxu0 %v1753
  %1786 = vmatprep.subr.bf16.mxu0 0
  %1787 = vmatpush1.bf16.msra.mxu0 0
  %1788 = vmatprep.subr.bf16.mxu0 0
  %1789 = vmatpush1.bf16.msra.mxu0 0
  %1790 = vmatprep.subr.bf16.mxu0 0
  %1791 = vmatpush1.bf16.msra.mxu0 0
  %1792 = vmatprep.subr.bf16.mxu0 0
  %1793 = vmatpush1.bf16.msra.mxu0 0
  %1794 = vmatprep.subr.bf16.mxu0 0
  %1795 = vmatpush1.bf16.msra.mxu0 0
  %1796 = vmatprep.subr.bf16.mxu0 0
  %1797 = vmatpush1.bf16.msra.mxu0 0
  %1798 = vmatprep.subr.bf16.mxu0 0
  %1799 = vmatpush1.bf16.msra.mxu0 0
  %1800 = vmatprep.subr.bf16.mxu0 0
  %1801 = vmatpush1.bf16.msra.mxu0 0
  %1802 = vmatprep.subr.bf16.mxu0 0
  %1803 = vmatpush1.bf16.msra.mxu0 0
  %1804 = vmatprep.subr.bf16.mxu0 0
  %1805 = vmatpush1.bf16.msra.mxu0 0
  %1806 = vmatprep.subr.bf16.mxu0 0
  %1807 = vmatpush1.bf16.msra.mxu0 0
  %1808 = vmatprep.subr.bf16.mxu0 0
  %1809 = vmatpush1.bf16.msra.mxu0 0
  %1810 = vmatprep.mubr.bf16.mxu0 0
  %1811 = vmatmul.mubr.bf16.gmra.mrb[0].mxu0 %v86
  %v1812 = vpop.f32.mrb[0].mxu0
  %v1813 = vadd.f32 0.0, %v1812
  %v1814 = vpop.f32.mrb[0].mxu0
  %v1815 = vpop.f32.mrb[0].mxu0
  %v1816 = vpop.f32.mrb[0].mxu0
  %1817 = vdwg.mxu0
  %v1826 = vunpack.c.l.b16 %v1762
  %v1827 = vunpack.c.l.b16 %v1763
  %v1828 = vunpack.c.l.b16 %v1764
  %v1829 = vunpack.c.l.b16 %v1765
  %v1830 = vunpack.c.l.b16 %v1766
  %v1831 = vunpack.c.l.b16 %v1767
  %v1832 = vunpack.c.l.b16 %v1768
  %v1833 = vunpack.c.l.b16 %v1769
  %v1834 = vpack.c.b16 %v1827, %v1826
  %v1835 = vpack.c.b16 %v1829, %v1828
  %v1836 = vpack.c.b16 %v1831, %v1830
  %v1837 = vpack.c.b16 %v1833, %v1832
  %1842 = vmatprep.subr.bf16.mxu0 0
  %1843 = vmatpush1.bf16.msra.mxu0 %v1834
  %1844 = vmatprep.subr.bf16.mxu0 0
  %1845 = vmatpush1.bf16.msra.mxu0 %v1835
  %1846 = vmatprep.subr.bf16.mxu0 0
  %1847 = vmatpush1.bf16.msra.mxu0 %v1836
  %1848 = vmatprep.subr.bf16.mxu0 0
  %1849 = vmatpush1.bf16.msra.mxu0 %v1837
  %1850 = vmatprep.subr.bf16.mxu0 0
  %1851 = vmatpush1.bf16.msra.mxu0 0
  %1852 = vmatprep.subr.bf16.mxu0 0
  %1853 = vmatpush1.bf16.msra.mxu0 0
  %1854 = vmatprep.subr.bf16.mxu0 0
  %1855 = vmatpush1.bf16.msra.mxu0 0
  %1856 = vmatprep.subr.bf16.mxu0 0
  %1857 = vmatpush1.bf16.msra.mxu0 0
  %1858 = vmatprep.subr.bf16.mxu0 0
  %1859 = vmatpush1.bf16.msra.mxu0 0
  %1860 = vmatprep.subr.bf16.mxu0 0
  %1861 = vmatpush1.bf16.msra.mxu0 0
  %1862 = vmatprep.subr.bf16.mxu0 0
  %1863 = vmatpush1.bf16.msra.mxu0 0
  %1864 = vmatprep.subr.bf16.mxu0 0
  %1865 = vmatpush1.bf16.msra.mxu0 0
  %1866 = vmatprep.subr.bf16.mxu0 0
  %1867 = vmatpush1.bf16.msra.mxu0 0
  %1868 = vmatprep.subr.bf16.mxu0 0
  %1869 = vmatpush1.bf16.msra.mxu0 0
  %1870 = vmatprep.subr.bf16.mxu0 0
  %1871 = vmatpush1.bf16.msra.mxu0 0
  %1872 = vmatprep.subr.bf16.mxu0 0
  %1873 = vmatpush1.bf16.msra.mxu0 0
  %1874 = vmatprep.mubr.bf16.mxu0 0
  %1875 = vmatmul.mubr.bf16.gmra.mrb[0].mxu0 %v86
  %v1876 = vpop.f32.mrb[0].mxu0
  %v1877 = vadd.f32 0.0, %v1876
  %v1878 = vpop.f32.mrb[0].mxu0
  %v1879 = vpop.f32.mrb[0].mxu0
  %v1880 = vpop.f32.mrb[0].mxu0
  %1881 = vdwg.mxu0
  %v1882 = vadd.f32 %v1770, %v1771
  %v1883 = vadd.f32 %v1882, %v1772
  %v1884 = vadd.f32 %v1883, %v1773
  %v1885 = vadd.f32 %v1884, %v1774
  %v1886 = vadd.f32 %v1885, %v1775
  %v1887 = vadd.f32 %v1886, %v1776
  %v1888 = vadd.f32 %v1887, %v1777
  %v1889 = vrot.slane %v1888, 4
  %v1890 = vadd.f32 %v1888, %v1889
  %v1891 = vrot.slane %v1890, 2
  %v1892 = vadd.f32 %v1890, %v1891
  %v1893 = vrot.slane %v1892, 1
  %v1894 = vadd.f32 %v1892, %v1893
  %vm1895 = vcmp.gt.f32.partialorder %v16, 0.73333335
  %vm1896 = vcmp.gt.f32.partialorder %v17, 0.73333335
  %vm1897 = vcmp.gt.f32.partialorder %v18, 0.73333335
  %vm1898 = vcmp.gt.f32.partialorder %v19, 0.73333335
  %vm1899 = vcmp.gt.f32.partialorder %v20, 0.73333335
  %vm1900 = vcmp.gt.f32.partialorder %v21, 0.73333335
  %vm1901 = vcmp.gt.f32.partialorder %v22, 0.73333335
  %vm1902 = vcmp.gt.f32.partialorder %v23, 0.73333335
  %v1903 = vsel %vm1895, 1, 0
  %v1904 = vsel %vm1896, 1, 0
  %v1905 = vsel %vm1897, 1, 0
  %v1906 = vsel %vm1898, 1, 0
  %v1907 = vsel %vm1899, 1, 0
  %v1908 = vsel %vm1900, 1, 0
  %v1909 = vsel %vm1901, 1, 0
  %v1910 = vsel %vm1902, 1, 0
  %v1911 = vcvt.s32.f32 %v1903
  %v1912 = vcvt.s32.f32 %v1904
  %v1913 = vcvt.s32.f32 %v1905
  %v1914 = vcvt.s32.f32 %v1906
  %v1915 = vcvt.s32.f32 %v1907
  %v1916 = vcvt.s32.f32 %v1908
  %v1917 = vcvt.s32.f32 %v1909
  %v1918 = vcvt.s32.f32 %v1910
  %v1919 = vpack.c.bf16 %v1912, %v1911
  %v1920 = vpack.c.bf16 %v1914, %v1913
  %v1921 = vpack.c.bf16 %v1916, %v1915
  %v1922 = vpack.c.bf16 %v1918, %v1917
  %vm1923 = vmpackc.low %vm1895, %vm1895
  %vm1924 = vmpackc.low %vm1896, %vm1896
  %vm1925 = vmpackc.low %vm1897, %vm1897
  %vm1926 = vmpackc.low %vm1898, %vm1898
  %vm1927 = vmpackc.low %vm1899, %vm1899
  %vm1928 = vmpackc.low %vm1900, %vm1900
  %vm1929 = vmpackc.low %vm1901, %vm1901
  %vm1930 = vmpackc.low %vm1902, %vm1902
  %v1931 = vsel %vm1923, %v24, 0
  %v1932 = vsel %vm1924, %v25, 0
  %v1933 = vsel %vm1925, %v26, 0
  %v1934 = vsel %vm1926, %v27, 0
  %v1935 = vsel %vm1927, %v28, 0
  %v1936 = vsel %vm1928, %v29, 0
  %v1937 = vsel %vm1929, %v30, 0
  %v1938 = vsel %vm1930, %v31, 0
  %v1939 = vsel %vm1895, %v16, 0.0
  %v1940 = vsel %vm1896, %v17, 0.0
  %v1941 = vsel %vm1897, %v18, 0.0
  %v1942 = vsel %vm1898, %v19, 0.0
  %v1943 = vsel %vm1899, %v20, 0.0
  %v1944 = vsel %vm1900, %v21, 0.0
  %v1945 = vsel %vm1901, %v22, 0.0
  %v1946 = vsel %vm1902, %v23, 0.0
  %1947 = vmatprep.subr.bf16.mxu0 0
  %1948 = vmatpush1.bf16.msra.mxu0 %v1919
  %1949 = vmatprep.subr.bf16.mxu0 0
  %1950 = vmatpush1.bf16.msra.mxu0 %v1920
  %1951 = vmatprep.subr.bf16.mxu0 0
  %1952 = vmatpush1.bf16.msra.mxu0 %v1921
  %1953 = vmatprep.subr.bf16.mxu0 0
  %1954 = vmatpush1.bf16.msra.mxu0 %v1922
  %1955 = vmatprep.subr.bf16.mxu0 0
  %1956 = vmatpush1.bf16.msra.mxu0 0
  %1957 = vmatprep.subr.bf16.mxu0 0
  %1958 = vmatpush1.bf16.msra.mxu0 0
  %1959 = vmatprep.subr.bf16.mxu0 0
  %1960 = vmatpush1.bf16.msra.mxu0 0
  %1961 = vmatprep.subr.bf16.mxu0 0
  %1962 = vmatpush1.bf16.msra.mxu0 0
  %1963 = vmatprep.subr.bf16.mxu0 0
  %1964 = vmatpush1.bf16.msra.mxu0 0
  %1965 = vmatprep.subr.bf16.mxu0 0
  %1966 = vmatpush1.bf16.msra.mxu0 0
  %1967 = vmatprep.subr.bf16.mxu0 0
  %1968 = vmatpush1.bf16.msra.mxu0 0
  %1969 = vmatprep.subr.bf16.mxu0 0
  %1970 = vmatpush1.bf16.msra.mxu0 0
  %1971 = vmatprep.subr.bf16.mxu0 0
  %1972 = vmatpush1.bf16.msra.mxu0 0
  %1973 = vmatprep.subr.bf16.mxu0 0
  %1974 = vmatpush1.bf16.msra.mxu0 0
  %1975 = vmatprep.subr.bf16.mxu0 0
  %1976 = vmatpush1.bf16.msra.mxu0 0
  %1977 = vmatprep.subr.bf16.mxu0 0
  %1978 = vmatpush1.bf16.msra.mxu0 0
  %1979 = vmatprep.mubr.bf16.mxu0 0
  %1980 = vmatmul.mubr.bf16.gmra.mrb[0].mxu0 %v86
  %v1981 = vpop.f32.mrb[0].mxu0
  %v1982 = vadd.f32 0.0, %v1981
  %v1983 = vpop.f32.mrb[0].mxu0
  %v1984 = vpop.f32.mrb[0].mxu0
  %v1985 = vpop.f32.mrb[0].mxu0
  %1986 = vdwg.mxu0
  %v1995 = vunpack.c.l.b16 %v1931
  %v1996 = vunpack.c.l.b16 %v1932
  %v1997 = vunpack.c.l.b16 %v1933
  %v1998 = vunpack.c.l.b16 %v1934
  %v1999 = vunpack.c.l.b16 %v1935
  %v2000 = vunpack.c.l.b16 %v1936
  %v2001 = vunpack.c.l.b16 %v1937
  %v2002 = vunpack.c.l.b16 %v1938
  %v2003 = vpack.c.b16 %v1996, %v1995
  %v2004 = vpack.c.b16 %v1998, %v1997
  %v2005 = vpack.c.b16 %v2000, %v1999
  %v2006 = vpack.c.b16 %v2002, %v2001
  %2011 = vmatprep.subr.bf16.mxu0 0
  %2012 = vmatpush1.bf16.msra.mxu0 %v2003
  %2013 = vmatprep.subr.bf16.mxu0 0
  %2014 = vmatpush1.bf16.msra.mxu0 %v2004
  %2015 = vmatprep.subr.bf16.mxu0 0
  %2016 = vmatpush1.bf16.msra.mxu0 %v2005
  %2017 = vmatprep.subr.bf16.mxu0 0
  %2018 = vmatpush1.bf16.msra.mxu0 %v2006
  %2019 = vmatprep.subr.bf16.mxu0 0
  %2020 = vmatpush1.bf16.msra.mxu0 0
  %2021 = vmatprep.subr.bf16.mxu0 0
  %2022 = vmatpush1.bf16.msra.mxu0 0
  %2023 = vmatprep.subr.bf16.mxu0 0
  %2024 = vmatpush1.bf16.msra.mxu0 0
  %2025 = vmatprep.subr.bf16.mxu0 0
  %2026 = vmatpush1.bf16.msra.mxu0 0
  %2027 = vmatprep.subr.bf16.mxu0 0
  %2028 = vmatpush1.bf16.msra.mxu0 0
  %2029 = vmatprep.subr.bf16.mxu0 0
  %2030 = vmatpush1.bf16.msra.mxu0 0
  %2031 = vmatprep.subr.bf16.mxu0 0
  %2032 = vmatpush1.bf16.msra.mxu0 0
  %2033 = vmatprep.subr.bf16.mxu0 0
  %2034 = vmatpush1.bf16.msra.mxu0 0
  %2035 = vmatprep.subr.bf16.mxu0 0
  %2036 = vmatpush1.bf16.msra.mxu0 0
  %2037 = vmatprep.subr.bf16.mxu0 0
  %2038 = vmatpush1.bf16.msra.mxu0 0
  %2039 = vmatprep.subr.bf16.mxu0 0
  %2040 = vmatpush1.bf16.msra.mxu0 0
  %2041 = vmatprep.subr.bf16.mxu0 0
  %2042 = vmatpush1.bf16.msra.mxu0 0
  %2043 = vmatprep.mubr.bf16.mxu0 0
  %2044 = vmatmul.mubr.bf16.gmra.mrb[0].mxu0 %v86
  %v2045 = vpop.f32.mrb[0].mxu0
  %v2046 = vadd.f32 0.0, %v2045
  %v2047 = vpop.f32.mrb[0].mxu0
  %v2048 = vpop.f32.mrb[0].mxu0
  %v2049 = vpop.f32.mrb[0].mxu0
  %2050 = vdwg.mxu0
  %v2051 = vadd.f32 %v1939, %v1940
  %v2052 = vadd.f32 %v2051, %v1941
  %v2053 = vadd.f32 %v2052, %v1942
  %v2054 = vadd.f32 %v2053, %v1943
  %v2055 = vadd.f32 %v2054, %v1944
  %v2056 = vadd.f32 %v2055, %v1945
  %v2057 = vadd.f32 %v2056, %v1946
  %v2058 = vrot.slane %v2057, 4
  %v2059 = vadd.f32 %v2057, %v2058
  %v2060 = vrot.slane %v2059, 2
  %v2061 = vadd.f32 %v2059, %v2060
  %v2062 = vrot.slane %v2061, 1
  %v2063 = vadd.f32 %v2061, %v2062
  %vm2064 = vcmp.gt.f32.partialorder %v16, 0.8
  %vm2065 = vcmp.gt.f32.partialorder %v17, 0.8
  %vm2066 = vcmp.gt.f32.partialorder %v18, 0.8
  %vm2067 = vcmp.gt.f32.partialorder %v19, 0.8
  %vm2068 = vcmp.gt.f32.partialorder %v20, 0.8
  %vm2069 = vcmp.gt.f32.partialorder %v21, 0.8
  %vm2070 = vcmp.gt.f32.partialorder %v22, 0.8
  %vm2071 = vcmp.gt.f32.partialorder %v23, 0.8
  %v2072 = vsel %vm2064, 1, 0
  %v2073 = vsel %vm2065, 1, 0
  %v2074 = vsel %vm2066, 1, 0
  %v2075 = vsel %vm2067, 1, 0
  %v2076 = vsel %vm2068, 1, 0
  %v2077 = vsel %vm2069, 1, 0
  %v2078 = vsel %vm2070, 1, 0
  %v2079 = vsel %vm2071, 1, 0
  %v2080 = vcvt.s32.f32 %v2072
  %v2081 = vcvt.s32.f32 %v2073
  %v2082 = vcvt.s32.f32 %v2074
  %v2083 = vcvt.s32.f32 %v2075
  %v2084 = vcvt.s32.f32 %v2076
  %v2085 = vcvt.s32.f32 %v2077
  %v2086 = vcvt.s32.f32 %v2078
  %v2087 = vcvt.s32.f32 %v2079
  %v2088 = vpack.c.bf16 %v2081, %v2080
  %v2089 = vpack.c.bf16 %v2083, %v2082
  %v2090 = vpack.c.bf16 %v2085, %v2084
  %v2091 = vpack.c.bf16 %v2087, %v2086
  %vm2092 = vmpackc.low %vm2064, %vm2064
  %vm2093 = vmpackc.low %vm2065, %vm2065
  %vm2094 = vmpackc.low %vm2066, %vm2066
  %vm2095 = vmpackc.low %vm2067, %vm2067
  %vm2096 = vmpackc.low %vm2068, %vm2068
  %vm2097 = vmpackc.low %vm2069, %vm2069
  %vm2098 = vmpackc.low %vm2070, %vm2070
  %vm2099 = vmpackc.low %vm2071, %vm2071
  %v2100 = vsel %vm2092, %v24, 0
  %v2101 = vsel %vm2093, %v25, 0
  %v2102 = vsel %vm2094, %v26, 0
  %v2103 = vsel %vm2095, %v27, 0
  %v2104 = vsel %vm2096, %v28, 0
  %v2105 = vsel %vm2097, %v29, 0
  %v2106 = vsel %vm2098, %v30, 0
  %v2107 = vsel %vm2099, %v31, 0
  %v2108 = vsel %vm2064, %v16, 0.0
  %v2109 = vsel %vm2065, %v17, 0.0
  %v2110 = vsel %vm2066, %v18, 0.0
  %v2111 = vsel %vm2067, %v19, 0.0
  %v2112 = vsel %vm2068, %v20, 0.0
  %v2113 = vsel %vm2069, %v21, 0.0
  %v2114 = vsel %vm2070, %v22, 0.0
  %v2115 = vsel %vm2071, %v23, 0.0
  %2116 = vmatprep.subr.bf16.mxu0 0
  %2117 = vmatpush1.bf16.msra.mxu0 %v2088
  %2118 = vmatprep.subr.bf16.mxu0 0
  %2119 = vmatpush1.bf16.msra.mxu0 %v2089
  %2120 = vmatprep.subr.bf16.mxu0 0
  %2121 = vmatpush1.bf16.msra.mxu0 %v2090
  %2122 = vmatprep.subr.bf16.mxu0 0
  %2123 = vmatpush1.bf16.msra.mxu0 %v2091
  %2124 = vmatprep.subr.bf16.mxu0 0
  %2125 = vmatpush1.bf16.msra.mxu0 0
  %2126 = vmatprep.subr.bf16.mxu0 0
  %2127 = vmatpush1.bf16.msra.mxu0 0
  %2128 = vmatprep.subr.bf16.mxu0 0
  %2129 = vmatpush1.bf16.msra.mxu0 0
  %2130 = vmatprep.subr.bf16.mxu0 0
  %2131 = vmatpush1.bf16.msra.mxu0 0
  %2132 = vmatprep.subr.bf16.mxu0 0
  %2133 = vmatpush1.bf16.msra.mxu0 0
  %2134 = vmatprep.subr.bf16.mxu0 0
  %2135 = vmatpush1.bf16.msra.mxu0 0
  %2136 = vmatprep.subr.bf16.mxu0 0
  %2137 = vmatpush1.bf16.msra.mxu0 0
  %2138 = vmatprep.subr.bf16.mxu0 0
  %2139 = vmatpush1.bf16.msra.mxu0 0
  %2140 = vmatprep.subr.bf16.mxu0 0
  %2141 = vmatpush1.bf16.msra.mxu0 0
  %2142 = vmatprep.subr.bf16.mxu0 0
  %2143 = vmatpush1.bf16.msra.mxu0 0
  %2144 = vmatprep.subr.bf16.mxu0 0
  %2145 = vmatpush1.bf16.msra.mxu0 0
  %2146 = vmatprep.subr.bf16.mxu0 0
  %2147 = vmatpush1.bf16.msra.mxu0 0
  %2148 = vmatprep.mubr.bf16.mxu0 0
  %2149 = vmatmul.mubr.bf16.gmra.mrb[0].mxu0 %v86
  %v2150 = vpop.f32.mrb[0].mxu0
  %v2151 = vadd.f32 0.0, %v2150
  %v2152 = vpop.f32.mrb[0].mxu0
  %v2153 = vpop.f32.mrb[0].mxu0
  %v2154 = vpop.f32.mrb[0].mxu0
  %2155 = vdwg.mxu0
  %v2164 = vunpack.c.l.b16 %v2100
  %v2165 = vunpack.c.l.b16 %v2101
  %v2166 = vunpack.c.l.b16 %v2102
  %v2167 = vunpack.c.l.b16 %v2103
  %v2168 = vunpack.c.l.b16 %v2104
  %v2169 = vunpack.c.l.b16 %v2105
  %v2170 = vunpack.c.l.b16 %v2106
  %v2171 = vunpack.c.l.b16 %v2107
  %v2172 = vpack.c.b16 %v2165, %v2164
  %v2173 = vpack.c.b16 %v2167, %v2166
  %v2174 = vpack.c.b16 %v2169, %v2168
  %v2175 = vpack.c.b16 %v2171, %v2170
  %2180 = vmatprep.subr.bf16.mxu0 0
  %2181 = vmatpush1.bf16.msra.mxu0 %v2172
  %2182 = vmatprep.subr.bf16.mxu0 0
  %2183 = vmatpush1.bf16.msra.mxu0 %v2173
  %2184 = vmatprep.subr.bf16.mxu0 0
  %2185 = vmatpush1.bf16.msra.mxu0 %v2174
  %2186 = vmatprep.subr.bf16.mxu0 0
  %2187 = vmatpush1.bf16.msra.mxu0 %v2175
  %2188 = vmatprep.subr.bf16.mxu0 0
  %2189 = vmatpush1.bf16.msra.mxu0 0
  %2190 = vmatprep.subr.bf16.mxu0 0
  %2191 = vmatpush1.bf16.msra.mxu0 0
  %2192 = vmatprep.subr.bf16.mxu0 0
  %2193 = vmatpush1.bf16.msra.mxu0 0
  %2194 = vmatprep.subr.bf16.mxu0 0
  %2195 = vmatpush1.bf16.msra.mxu0 0
  %2196 = vmatprep.subr.bf16.mxu0 0
  %2197 = vmatpush1.bf16.msra.mxu0 0
  %2198 = vmatprep.subr.bf16.mxu0 0
  %2199 = vmatpush1.bf16.msra.mxu0 0
  %2200 = vmatprep.subr.bf16.mxu0 0
  %2201 = vmatpush1.bf16.msra.mxu0 0
  %2202 = vmatprep.subr.bf16.mxu0 0
  %2203 = vmatpush1.bf16.msra.mxu0 0
  %2204 = vmatprep.subr.bf16.mxu0 0
  %2205 = vmatpush1.bf16.msra.mxu0 0
  %2206 = vmatprep.subr.bf16.mxu0 0
  %2207 = vmatpush1.bf16.msra.mxu0 0
  %2208 = vmatprep.subr.bf16.mxu0 0
  %2209 = vmatpush1.bf16.msra.mxu0 0
  %2210 = vmatprep.subr.bf16.mxu0 0
  %2211 = vmatpush1.bf16.msra.mxu0 0
  %2212 = vmatprep.mubr.bf16.mxu0 0
  %2213 = vmatmul.mubr.bf16.gmra.mrb[0].mxu0 %v86
  %v2214 = vpop.f32.mrb[0].mxu0
  %v2215 = vadd.f32 0.0, %v2214
  %v2216 = vpop.f32.mrb[0].mxu0
  %v2217 = vpop.f32.mrb[0].mxu0
  %v2218 = vpop.f32.mrb[0].mxu0
  %2219 = vdwg.mxu0
  %v2220 = vadd.f32 %v2108, %v2109
  %v2221 = vadd.f32 %v2220, %v2110
  %v2222 = vadd.f32 %v2221, %v2111
  %v2223 = vadd.f32 %v2222, %v2112
  %v2224 = vadd.f32 %v2223, %v2113
  %v2225 = vadd.f32 %v2224, %v2114
  %v2226 = vadd.f32 %v2225, %v2115
  %v2227 = vrot.slane %v2226, 4
  %v2228 = vadd.f32 %v2226, %v2227
  %v2229 = vrot.slane %v2228, 2
  %v2230 = vadd.f32 %v2228, %v2229
  %v2231 = vrot.slane %v2230, 1
  %v2232 = vadd.f32 %v2230, %v2231
  %vm2233 = vcmp.gt.f32.partialorder %v16, 0.8666667
  %vm2234 = vcmp.gt.f32.partialorder %v17, 0.8666667
  %vm2235 = vcmp.gt.f32.partialorder %v18, 0.8666667
  %vm2236 = vcmp.gt.f32.partialorder %v19, 0.8666667
  %vm2237 = vcmp.gt.f32.partialorder %v20, 0.8666667
  %vm2238 = vcmp.gt.f32.partialorder %v21, 0.8666667
  %vm2239 = vcmp.gt.f32.partialorder %v22, 0.8666667
  %vm2240 = vcmp.gt.f32.partialorder %v23, 0.8666667
  %v2241 = vsel %vm2233, 1, 0
  %v2242 = vsel %vm2234, 1, 0
  %v2243 = vsel %vm2235, 1, 0
  %v2244 = vsel %vm2236, 1, 0
  %v2245 = vsel %vm2237, 1, 0
  %v2246 = vsel %vm2238, 1, 0
  %v2247 = vsel %vm2239, 1, 0
  %v2248 = vsel %vm2240, 1, 0
  %v2249 = vcvt.s32.f32 %v2241
  %v2250 = vcvt.s32.f32 %v2242
  %v2251 = vcvt.s32.f32 %v2243
  %v2252 = vcvt.s32.f32 %v2244
  %v2253 = vcvt.s32.f32 %v2245
  %v2254 = vcvt.s32.f32 %v2246
  %v2255 = vcvt.s32.f32 %v2247
  %v2256 = vcvt.s32.f32 %v2248
  %v2257 = vpack.c.bf16 %v2250, %v2249
  %v2258 = vpack.c.bf16 %v2252, %v2251
  %v2259 = vpack.c.bf16 %v2254, %v2253
  %v2260 = vpack.c.bf16 %v2256, %v2255
  %vm2261 = vmpackc.low %vm2233, %vm2233
  %vm2262 = vmpackc.low %vm2234, %vm2234
  %vm2263 = vmpackc.low %vm2235, %vm2235
  %vm2264 = vmpackc.low %vm2236, %vm2236
  %vm2265 = vmpackc.low %vm2237, %vm2237
  %vm2266 = vmpackc.low %vm2238, %vm2238
  %vm2267 = vmpackc.low %vm2239, %vm2239
  %vm2268 = vmpackc.low %vm2240, %vm2240
  %v2269 = vsel %vm2261, %v24, 0
  %v2270 = vsel %vm2262, %v25, 0
  %v2271 = vsel %vm2263, %v26, 0
  %v2272 = vsel %vm2264, %v27, 0
  %v2273 = vsel %vm2265, %v28, 0
  %v2274 = vsel %vm2266, %v29, 0
  %v2275 = vsel %vm2267, %v30, 0
  %v2276 = vsel %vm2268, %v31, 0
  %v2277 = vsel %vm2233, %v16, 0.0
  %v2278 = vsel %vm2234, %v17, 0.0
  %v2279 = vsel %vm2235, %v18, 0.0
  %v2280 = vsel %vm2236, %v19, 0.0
  %v2281 = vsel %vm2237, %v20, 0.0
  %v2282 = vsel %vm2238, %v21, 0.0
  %v2283 = vsel %vm2239, %v22, 0.0
  %v2284 = vsel %vm2240, %v23, 0.0
  %2285 = vmatprep.subr.bf16.mxu0 0
  %2286 = vmatpush1.bf16.msra.mxu0 %v2257
  %2287 = vmatprep.subr.bf16.mxu0 0
  %2288 = vmatpush1.bf16.msra.mxu0 %v2258
  %2289 = vmatprep.subr.bf16.mxu0 0
  %2290 = vmatpush1.bf16.msra.mxu0 %v2259
  %2291 = vmatprep.subr.bf16.mxu0 0
  %2292 = vmatpush1.bf16.msra.mxu0 %v2260
  %2293 = vmatprep.subr.bf16.mxu0 0
  %2294 = vmatpush1.bf16.msra.mxu0 0
  %2295 = vmatprep.subr.bf16.mxu0 0
  %2296 = vmatpush1.bf16.msra.mxu0 0
  %2297 = vmatprep.subr.bf16.mxu0 0
  %2298 = vmatpush1.bf16.msra.mxu0 0
  %2299 = vmatprep.subr.bf16.mxu0 0
  %2300 = vmatpush1.bf16.msra.mxu0 0
  %2301 = vmatprep.subr.bf16.mxu0 0
  %2302 = vmatpush1.bf16.msra.mxu0 0
  %2303 = vmatprep.subr.bf16.mxu0 0
  %2304 = vmatpush1.bf16.msra.mxu0 0
  %2305 = vmatprep.subr.bf16.mxu0 0
  %2306 = vmatpush1.bf16.msra.mxu0 0
  %2307 = vmatprep.subr.bf16.mxu0 0
  %2308 = vmatpush1.bf16.msra.mxu0 0
  %2309 = vmatprep.subr.bf16.mxu0 0
  %2310 = vmatpush1.bf16.msra.mxu0 0
  %2311 = vmatprep.subr.bf16.mxu0 0
  %2312 = vmatpush1.bf16.msra.mxu0 0
  %2313 = vmatprep.subr.bf16.mxu0 0
  %2314 = vmatpush1.bf16.msra.mxu0 0
  %2315 = vmatprep.subr.bf16.mxu0 0
  %2316 = vmatpush1.bf16.msra.mxu0 0
  %2317 = vmatprep.mubr.bf16.mxu0 0
  %2318 = vmatmul.mubr.bf16.gmra.mrb[0].mxu0 %v86
  %v2319 = vpop.f32.mrb[0].mxu0
  %v2320 = vadd.f32 0.0, %v2319
  %v2321 = vpop.f32.mrb[0].mxu0
  %v2322 = vpop.f32.mrb[0].mxu0
  %v2323 = vpop.f32.mrb[0].mxu0
  %2324 = vdwg.mxu0
  %v2333 = vunpack.c.l.b16 %v2269
  %v2334 = vunpack.c.l.b16 %v2270
  %v2335 = vunpack.c.l.b16 %v2271
  %v2336 = vunpack.c.l.b16 %v2272
  %v2337 = vunpack.c.l.b16 %v2273
  %v2338 = vunpack.c.l.b16 %v2274
  %v2339 = vunpack.c.l.b16 %v2275
  %v2340 = vunpack.c.l.b16 %v2276
  %v2341 = vpack.c.b16 %v2334, %v2333
  %v2342 = vpack.c.b16 %v2336, %v2335
  %v2343 = vpack.c.b16 %v2338, %v2337
  %v2344 = vpack.c.b16 %v2340, %v2339
  %2349 = vmatprep.subr.bf16.mxu0 0
  %2350 = vmatpush1.bf16.msra.mxu0 %v2341
  %2351 = vmatprep.subr.bf16.mxu0 0
  %2352 = vmatpush1.bf16.msra.mxu0 %v2342
  %2353 = vmatprep.subr.bf16.mxu0 0
  %2354 = vmatpush1.bf16.msra.mxu0 %v2343
  %2355 = vmatprep.subr.bf16.mxu0 0
  %2356 = vmatpush1.bf16.msra.mxu0 %v2344
  %2357 = vmatprep.subr.bf16.mxu0 0
  %2358 = vmatpush1.bf16.msra.mxu0 0
  %2359 = vmatprep.subr.bf16.mxu0 0
  %2360 = vmatpush1.bf16.msra.mxu0 0
  %2361 = vmatprep.subr.bf16.mxu0 0
  %2362 = vmatpush1.bf16.msra.mxu0 0
  %2363 = vmatprep.subr.bf16.mxu0 0
  %2364 = vmatpush1.bf16.msra.mxu0 0
  %2365 = vmatprep.subr.bf16.mxu0 0
  %2366 = vmatpush1.bf16.msra.mxu0 0
  %2367 = vmatprep.subr.bf16.mxu0 0
  %2368 = vmatpush1.bf16.msra.mxu0 0
  %2369 = vmatprep.subr.bf16.mxu0 0
  %2370 = vmatpush1.bf16.msra.mxu0 0
  %2371 = vmatprep.subr.bf16.mxu0 0
  %2372 = vmatpush1.bf16.msra.mxu0 0
  %2373 = vmatprep.subr.bf16.mxu0 0
  %2374 = vmatpush1.bf16.msra.mxu0 0
  %2375 = vmatprep.subr.bf16.mxu0 0
  %2376 = vmatpush1.bf16.msra.mxu0 0
  %2377 = vmatprep.subr.bf16.mxu0 0
  %2378 = vmatpush1.bf16.msra.mxu0 0
  %2379 = vmatprep.subr.bf16.mxu0 0
  %2380 = vmatpush1.bf16.msra.mxu0 0
  %2381 = vmatprep.mubr.bf16.mxu0 0
  %2382 = vmatmul.mubr.bf16.gmra.mrb[0].mxu0 %v86
  %v2383 = vpop.f32.mrb[0].mxu0
  %v2384 = vadd.f32 0.0, %v2383
  %v2385 = vpop.f32.mrb[0].mxu0
  %v2386 = vpop.f32.mrb[0].mxu0
  %v2387 = vpop.f32.mrb[0].mxu0
  %2388 = vdwg.mxu0
  %v2389 = vadd.f32 %v2277, %v2278
  %v2390 = vadd.f32 %v2389, %v2279
  %v2391 = vadd.f32 %v2390, %v2280
  %v2392 = vadd.f32 %v2391, %v2281
  %v2393 = vadd.f32 %v2392, %v2282
  %v2394 = vadd.f32 %v2393, %v2283
  %v2395 = vadd.f32 %v2394, %v2284
  %v2396 = vrot.slane %v2395, 4
  %v2397 = vadd.f32 %v2395, %v2396
  %v2398 = vrot.slane %v2397, 2
  %v2399 = vadd.f32 %v2397, %v2398
  %v2400 = vrot.slane %v2399, 1
  %v2401 = vadd.f32 %v2399, %v2400
  %vm2402 = vcmp.gt.f32.partialorder %v16, 0.93333334
  %vm2403 = vcmp.gt.f32.partialorder %v17, 0.93333334
  %vm2404 = vcmp.gt.f32.partialorder %v18, 0.93333334
  %vm2405 = vcmp.gt.f32.partialorder %v19, 0.93333334
  %vm2406 = vcmp.gt.f32.partialorder %v20, 0.93333334
  %vm2407 = vcmp.gt.f32.partialorder %v21, 0.93333334
  %vm2408 = vcmp.gt.f32.partialorder %v22, 0.93333334
  %vm2409 = vcmp.gt.f32.partialorder %v23, 0.93333334
  %v2410 = vsel %vm2402, 1, 0
  %v2411 = vsel %vm2403, 1, 0
  %v2412 = vsel %vm2404, 1, 0
  %v2413 = vsel %vm2405, 1, 0
  %v2414 = vsel %vm2406, 1, 0
  %v2415 = vsel %vm2407, 1, 0
  %v2416 = vsel %vm2408, 1, 0
  %v2417 = vsel %vm2409, 1, 0
  %v2418 = vcvt.s32.f32 %v2410
  %v2419 = vcvt.s32.f32 %v2411
  %v2420 = vcvt.s32.f32 %v2412
  %v2421 = vcvt.s32.f32 %v2413
  %v2422 = vcvt.s32.f32 %v2414
  %v2423 = vcvt.s32.f32 %v2415
  %v2424 = vcvt.s32.f32 %v2416
  %v2425 = vcvt.s32.f32 %v2417
  %v2426 = vpack.c.bf16 %v2419, %v2418
  %v2427 = vpack.c.bf16 %v2421, %v2420
  %v2428 = vpack.c.bf16 %v2423, %v2422
  %v2429 = vpack.c.bf16 %v2425, %v2424
  %vm2430 = vmpackc.low %vm2402, %vm2402
  %vm2431 = vmpackc.low %vm2403, %vm2403
  %vm2432 = vmpackc.low %vm2404, %vm2404
  %vm2433 = vmpackc.low %vm2405, %vm2405
  %vm2434 = vmpackc.low %vm2406, %vm2406
  %vm2435 = vmpackc.low %vm2407, %vm2407
  %vm2436 = vmpackc.low %vm2408, %vm2408
  %vm2437 = vmpackc.low %vm2409, %vm2409
  %v2438 = vsel %vm2430, %v24, 0
  %v2439 = vsel %vm2431, %v25, 0
  %v2440 = vsel %vm2432, %v26, 0
  %v2441 = vsel %vm2433, %v27, 0
  %v2442 = vsel %vm2434, %v28, 0
  %v2443 = vsel %vm2435, %v29, 0
  %v2444 = vsel %vm2436, %v30, 0
  %v2445 = vsel %vm2437, %v31, 0
  %v2446 = vsel %vm2402, %v16, 0.0
  %v2447 = vsel %vm2403, %v17, 0.0
  %v2448 = vsel %vm2404, %v18, 0.0
  %v2449 = vsel %vm2405, %v19, 0.0
  %v2450 = vsel %vm2406, %v20, 0.0
  %v2451 = vsel %vm2407, %v21, 0.0
  %v2452 = vsel %vm2408, %v22, 0.0
  %v2453 = vsel %vm2409, %v23, 0.0
  %2454 = vmatprep.subr.bf16.mxu0 0
  %2455 = vmatpush1.bf16.msra.mxu0 %v2426
  %2456 = vmatprep.subr.bf16.mxu0 0
  %2457 = vmatpush1.bf16.msra.mxu0 %v2427
  %2458 = vmatprep.subr.bf16.mxu0 0
  %2459 = vmatpush1.bf16.msra.mxu0 %v2428
  %2460 = vmatprep.subr.bf16.mxu0 0
  %2461 = vmatpush1.bf16.msra.mxu0 %v2429
  %2462 = vmatprep.subr.bf16.mxu0 0
  %2463 = vmatpush1.bf16.msra.mxu0 0
  %2464 = vmatprep.subr.bf16.mxu0 0
  %2465 = vmatpush1.bf16.msra.mxu0 0
  %2466 = vmatprep.subr.bf16.mxu0 0
  %2467 = vmatpush1.bf16.msra.mxu0 0
  %2468 = vmatprep.subr.bf16.mxu0 0
  %2469 = vmatpush1.bf16.msra.mxu0 0
  %2470 = vmatprep.subr.bf16.mxu0 0
  %2471 = vmatpush1.bf16.msra.mxu0 0
  %2472 = vmatprep.subr.bf16.mxu0 0
  %2473 = vmatpush1.bf16.msra.mxu0 0
  %2474 = vmatprep.subr.bf16.mxu0 0
  %2475 = vmatpush1.bf16.msra.mxu0 0
  %2476 = vmatprep.subr.bf16.mxu0 0
  %2477 = vmatpush1.bf16.msra.mxu0 0
  %2478 = vmatprep.subr.bf16.mxu0 0
  %2479 = vmatpush1.bf16.msra.mxu0 0
  %2480 = vmatprep.subr.bf16.mxu0 0
  %2481 = vmatpush1.bf16.msra.mxu0 0
  %2482 = vmatprep.subr.bf16.mxu0 0
  %2483 = vmatpush1.bf16.msra.mxu0 0
  %2484 = vmatprep.subr.bf16.mxu0 0
  %2485 = vmatpush1.bf16.msra.mxu0 0
  %2486 = vmatprep.mubr.bf16.mxu0 0
  %2487 = vmatmul.mubr.bf16.gmra.mrb[0].mxu0 %v86
  %v2488 = vpop.f32.mrb[0].mxu0
  %v2489 = vadd.f32 0.0, %v2488
  %v2490 = vpop.f32.mrb[0].mxu0
  %v2491 = vpop.f32.mrb[0].mxu0
  %v2492 = vpop.f32.mrb[0].mxu0
  %2493 = vdwg.mxu0
  %v2502 = vunpack.c.l.b16 %v2438
  %v2503 = vunpack.c.l.b16 %v2439
  %v2504 = vunpack.c.l.b16 %v2440
  %v2505 = vunpack.c.l.b16 %v2441
  %v2506 = vunpack.c.l.b16 %v2442
  %v2507 = vunpack.c.l.b16 %v2443
  %v2508 = vunpack.c.l.b16 %v2444
  %v2509 = vunpack.c.l.b16 %v2445
  %v2510 = vpack.c.b16 %v2503, %v2502
  %v2511 = vpack.c.b16 %v2505, %v2504
  %v2512 = vpack.c.b16 %v2507, %v2506
  %v2513 = vpack.c.b16 %v2509, %v2508
  %2518 = vmatprep.subr.bf16.mxu0 0
  %2519 = vmatpush1.bf16.msra.mxu0 %v2510
  %2520 = vmatprep.subr.bf16.mxu0 0
  %2521 = vmatpush1.bf16.msra.mxu0 %v2511
  %2522 = vmatprep.subr.bf16.mxu0 0
  %2523 = vmatpush1.bf16.msra.mxu0 %v2512
  %2524 = vmatprep.subr.bf16.mxu0 0
  %2525 = vmatpush1.bf16.msra.mxu0 %v2513
  %2526 = vmatprep.subr.bf16.mxu0 0
  %2527 = vmatpush1.bf16.msra.mxu0 0
  %2528 = vmatprep.subr.bf16.mxu0 0
  %2529 = vmatpush1.bf16.msra.mxu0 0
  %2530 = vmatprep.subr.bf16.mxu0 0
  %2531 = vmatpush1.bf16.msra.mxu0 0
  %2532 = vmatprep.subr.bf16.mxu0 0
  %2533 = vmatpush1.bf16.msra.mxu0 0
  %2534 = vmatprep.subr.bf16.mxu0 0
  %2535 = vmatpush1.bf16.msra.mxu0 0
  %2536 = vmatprep.subr.bf16.mxu0 0
  %2537 = vmatpush1.bf16.msra.mxu0 0
  %2538 = vmatprep.subr.bf16.mxu0 0
  %2539 = vmatpush1.bf16.msra.mxu0 0
  %2540 = vmatprep.subr.bf16.mxu0 0
  %2541 = vmatpush1.bf16.msra.mxu0 0
  %2542 = vmatprep.subr.bf16.mxu0 0
  %2543 = vmatpush1.bf16.msra.mxu0 0
  %2544 = vmatprep.subr.bf16.mxu0 0
  %2545 = vmatpush1.bf16.msra.mxu0 0
  %2546 = vmatprep.subr.bf16.mxu0 0
  %2547 = vmatpush1.bf16.msra.mxu0 0
  %2548 = vmatprep.subr.bf16.mxu0 0
  %2549 = vmatpush1.bf16.msra.mxu0 0
  %2550 = vmatprep.mubr.bf16.mxu0 0
  %2551 = vmatmul.mubr.bf16.gmra.mrb[0].mxu0 %v86
  %v2552 = vpop.f32.mrb[0].mxu0
  %v2553 = vadd.f32 0.0, %v2552
  %v2554 = vpop.f32.mrb[0].mxu0
  %v2555 = vpop.f32.mrb[0].mxu0
  %v2556 = vpop.f32.mrb[0].mxu0
  %2557 = vdwg.mxu0
  %v2558 = vadd.f32 %v2446, %v2447
  %v2559 = vadd.f32 %v2558, %v2448
  %v2560 = vadd.f32 %v2559, %v2449
  %v2561 = vadd.f32 %v2560, %v2450
  %v2562 = vadd.f32 %v2561, %v2451
  %v2563 = vadd.f32 %v2562, %v2452
  %v2564 = vadd.f32 %v2563, %v2453
  %v2565 = vrot.slane %v2564, 4
  %v2566 = vadd.f32 %v2564, %v2565
  %v2567 = vrot.slane %v2566, 2
  %v2568 = vadd.f32 %v2566, %v2567
  %v2569 = vrot.slane %v2568, 1
  %v2570 = vadd.f32 %v2568, %v2569
  %vm2571 = vcmp.gt.f32.partialorder %v16, 1.0
  %vm2572 = vcmp.gt.f32.partialorder %v17, 1.0
  %vm2573 = vcmp.gt.f32.partialorder %v18, 1.0
  %vm2574 = vcmp.gt.f32.partialorder %v19, 1.0
  %vm2575 = vcmp.gt.f32.partialorder %v20, 1.0
  %vm2576 = vcmp.gt.f32.partialorder %v21, 1.0
  %vm2577 = vcmp.gt.f32.partialorder %v22, 1.0
  %vm2578 = vcmp.gt.f32.partialorder %v23, 1.0
  %v2579 = vsel %vm2571, 1, 0
  %v2580 = vsel %vm2572, 1, 0
  %v2581 = vsel %vm2573, 1, 0
  %v2582 = vsel %vm2574, 1, 0
  %v2583 = vsel %vm2575, 1, 0
  %v2584 = vsel %vm2576, 1, 0
  %v2585 = vsel %vm2577, 1, 0
  %v2586 = vsel %vm2578, 1, 0
  %v2587 = vcvt.s32.f32 %v2579
  %v2588 = vcvt.s32.f32 %v2580
  %v2589 = vcvt.s32.f32 %v2581
  %v2590 = vcvt.s32.f32 %v2582
  %v2591 = vcvt.s32.f32 %v2583
  %v2592 = vcvt.s32.f32 %v2584
  %v2593 = vcvt.s32.f32 %v2585
  %v2594 = vcvt.s32.f32 %v2586
  %v2595 = vpack.c.bf16 %v2588, %v2587
  %v2596 = vpack.c.bf16 %v2590, %v2589
  %v2597 = vpack.c.bf16 %v2592, %v2591
  %v2598 = vpack.c.bf16 %v2594, %v2593
  %vm2599 = vmpackc.low %vm2571, %vm2571
  %vm2600 = vmpackc.low %vm2572, %vm2572
  %vm2601 = vmpackc.low %vm2573, %vm2573
  %vm2602 = vmpackc.low %vm2574, %vm2574
  %vm2603 = vmpackc.low %vm2575, %vm2575
  %vm2604 = vmpackc.low %vm2576, %vm2576
  %vm2605 = vmpackc.low %vm2577, %vm2577
  %vm2606 = vmpackc.low %vm2578, %vm2578
  %v2607 = vsel %vm2599, %v24, 0
  %v2608 = vsel %vm2600, %v25, 0
  %v2609 = vsel %vm2601, %v26, 0
  %v2610 = vsel %vm2602, %v27, 0
  %v2611 = vsel %vm2603, %v28, 0
  %v2612 = vsel %vm2604, %v29, 0
  %v2613 = vsel %vm2605, %v30, 0
  %v2614 = vsel %vm2606, %v31, 0
  %v2615 = vsel %vm2571, %v16, 0.0
  %v2616 = vsel %vm2572, %v17, 0.0
  %v2617 = vsel %vm2573, %v18, 0.0
  %v2618 = vsel %vm2574, %v19, 0.0
  %v2619 = vsel %vm2575, %v20, 0.0
  %v2620 = vsel %vm2576, %v21, 0.0
  %v2621 = vsel %vm2577, %v22, 0.0
  %v2622 = vsel %vm2578, %v23, 0.0
  %2623 = vmatprep.subr.bf16.mxu0 0
  %2624 = vmatpush1.bf16.msra.mxu0 %v2595
  %2625 = vmatprep.subr.bf16.mxu0 0
  %2626 = vmatpush1.bf16.msra.mxu0 %v2596
  %2627 = vmatprep.subr.bf16.mxu0 0
  %2628 = vmatpush1.bf16.msra.mxu0 %v2597
  %2629 = vmatprep.subr.bf16.mxu0 0
  %2630 = vmatpush1.bf16.msra.mxu0 %v2598
  %2631 = vmatprep.subr.bf16.mxu0 0
  %2632 = vmatpush1.bf16.msra.mxu0 0
  %2633 = vmatprep.subr.bf16.mxu0 0
  %2634 = vmatpush1.bf16.msra.mxu0 0
  %2635 = vmatprep.subr.bf16.mxu0 0
  %2636 = vmatpush1.bf16.msra.mxu0 0
  %2637 = vmatprep.subr.bf16.mxu0 0
  %2638 = vmatpush1.bf16.msra.mxu0 0
  %2639 = vmatprep.subr.bf16.mxu0 0
  %2640 = vmatpush1.bf16.msra.mxu0 0
  %2641 = vmatprep.subr.bf16.mxu0 0
  %2642 = vmatpush1.bf16.msra.mxu0 0
  %2643 = vmatprep.subr.bf16.mxu0 0
  %2644 = vmatpush1.bf16.msra.mxu0 0
  %2645 = vmatprep.subr.bf16.mxu0 0
  %2646 = vmatpush1.bf16.msra.mxu0 0
  %2647 = vmatprep.subr.bf16.mxu0 0
  %2648 = vmatpush1.bf16.msra.mxu0 0
  %2649 = vmatprep.subr.bf16.mxu0 0
  %2650 = vmatpush1.bf16.msra.mxu0 0
  %2651 = vmatprep.subr.bf16.mxu0 0
  %2652 = vmatpush1.bf16.msra.mxu0 0
  %2653 = vmatprep.subr.bf16.mxu0 0
  %2654 = vmatpush1.bf16.msra.mxu0 0
  %2655 = vmatprep.mubr.bf16.mxu0 0
  %2656 = vmatmul.mubr.bf16.gmra.mrb[0].mxu0 %v86
  %v2657 = vpop.f32.mrb[0].mxu0
  %v2658 = vadd.f32 0.0, %v2657
  %v2659 = vpop.f32.mrb[0].mxu0
  %v2660 = vpop.f32.mrb[0].mxu0
  %v2661 = vpop.f32.mrb[0].mxu0
  %2662 = vdwg.mxu0
  %v2671 = vunpack.c.l.b16 %v2607
  %v2672 = vunpack.c.l.b16 %v2608
  %v2673 = vunpack.c.l.b16 %v2609
  %v2674 = vunpack.c.l.b16 %v2610
  %v2675 = vunpack.c.l.b16 %v2611
  %v2676 = vunpack.c.l.b16 %v2612
  %v2677 = vunpack.c.l.b16 %v2613
  %v2678 = vunpack.c.l.b16 %v2614
  %v2679 = vpack.c.b16 %v2672, %v2671
  %v2680 = vpack.c.b16 %v2674, %v2673
  %v2681 = vpack.c.b16 %v2676, %v2675
  %v2682 = vpack.c.b16 %v2678, %v2677
  %2687 = vmatprep.subr.bf16.mxu0 0
  %2688 = vmatpush1.bf16.msra.mxu0 %v2679
  %2689 = vmatprep.subr.bf16.mxu0 0
  %2690 = vmatpush1.bf16.msra.mxu0 %v2680
  %2691 = vmatprep.subr.bf16.mxu0 0
  %2692 = vmatpush1.bf16.msra.mxu0 %v2681
  %2693 = vmatprep.subr.bf16.mxu0 0
  %2694 = vmatpush1.bf16.msra.mxu0 %v2682
  %2695 = vmatprep.subr.bf16.mxu0 0
  %2696 = vmatpush1.bf16.msra.mxu0 0
  %2697 = vmatprep.subr.bf16.mxu0 0
  %2698 = vmatpush1.bf16.msra.mxu0 0
  %2699 = vmatprep.subr.bf16.mxu0 0
  %2700 = vmatpush1.bf16.msra.mxu0 0
  %2701 = vmatprep.subr.bf16.mxu0 0
  %2702 = vmatpush1.bf16.msra.mxu0 0
  %2703 = vmatprep.subr.bf16.mxu0 0
  %2704 = vmatpush1.bf16.msra.mxu0 0
  %2705 = vmatprep.subr.bf16.mxu0 0
  %2706 = vmatpush1.bf16.msra.mxu0 0
  %2707 = vmatprep.subr.bf16.mxu0 0
  %2708 = vmatpush1.bf16.msra.mxu0 0
  %2709 = vmatprep.subr.bf16.mxu0 0
  %2710 = vmatpush1.bf16.msra.mxu0 0
  %2711 = vmatprep.subr.bf16.mxu0 0
  %2712 = vmatpush1.bf16.msra.mxu0 0
  %2713 = vmatprep.subr.bf16.mxu0 0
  %2714 = vmatpush1.bf16.msra.mxu0 0
  %2715 = vmatprep.subr.bf16.mxu0 0
  %2716 = vmatpush1.bf16.msra.mxu0 0
  %2717 = vmatprep.subr.bf16.mxu0 0
  %2718 = vmatpush1.bf16.msra.mxu0 0
  %2719 = vmatprep.mubr.bf16.mxu0 0
  %2720 = vmatmul.mubr.bf16.gmra.mrb[0].mxu0 %v86
  %v2721 = vpop.f32.mrb[0].mxu0
  %v2722 = vadd.f32 0.0, %v2721
  %v2723 = vpop.f32.mrb[0].mxu0
  %v2724 = vpop.f32.mrb[0].mxu0
  %v2725 = vpop.f32.mrb[0].mxu0
  %2726 = vdwg.mxu0
  %v2727 = vadd.f32 %v2615, %v2616
  %v2728 = vadd.f32 %v2727, %v2617
  %v2729 = vadd.f32 %v2728, %v2618
  %v2730 = vadd.f32 %v2729, %v2619
  %v2731 = vadd.f32 %v2730, %v2620
  %v2732 = vadd.f32 %v2731, %v2621
  %v2733 = vadd.f32 %v2732, %v2622
  %v2734 = vrot.slane %v2733, 4
  %v2735 = vadd.f32 %v2733, %v2734
  %v2736 = vrot.slane %v2735, 2
  %v2737 = vadd.f32 %v2735, %v2736
  %v2738 = vrot.slane %v2737, 1
  %v2739 = vadd.f32 %v2737, %v2738
  %v2741 = vrot.slane %v292, 7
  %v2744 = vrot.slane %v461, 6
  %v2747 = vrot.slane %v630, 5
  %v2750 = vrot.slane %v799, 4
  %v2753 = vrot.slane %v968, 3
  %v2756 = vrot.slane %v1137, 2
  %v2759 = vrot.slane %v1306, 1
  %v2762 = vrot.slane %v1644, 7
  %v2765 = vrot.slane %v1813, 6
  %v2768 = vrot.slane %v1982, 5
  %v2771 = vrot.slane %v2151, 4
  %v2774 = vrot.slane %v2320, 3
  %v2777 = vrot.slane %v2489, 2
  %v2780 = vrot.slane %v2658, 1
  %vm2782 = vcmask 1040384
  %v2783 = vsel %vm2782, %v123, %v2741
  %vm2784 = vcmask 1041408
  %v2785 = vsel %vm2784, %v2783, %v2744
  %vm2786 = vcmask 1042432
  %v2787 = vsel %vm2786, %v2785, %v2747
  %vm2788 = vcmask 1043456
  %v2789 = vsel %vm2788, %v2787, %v2750
  %vm2790 = vcmask 1044480
  %v2791 = vsel %vm2790, %v2789, %v2753
  %vm2792 = vcmask 1045504
  %v2793 = vsel %vm2792, %v2791, %v2756
  %vm2794 = vcmask 1046528
  %v2795 = vsel %vm2794, %v2793, %v2759
  %v2796 = vsel %vm2782, %v1475, %v2762
  %v2797 = vsel %vm2784, %v2796, %v2765
  %v2798 = vsel %vm2786, %v2797, %v2768
  %v2799 = vsel %vm2788, %v2798, %v2771
  %v2800 = vsel %vm2790, %v2799, %v2774
  %v2801 = vsel %vm2792, %v2800, %v2777
  %v2802 = vsel %vm2794, %v2801, %v2780
  %v2803 = vadd.f32 %v2795, 0.0
  %v2804 = vadd.f32 %v2802, 0.0
  %v2805 = vsel %vm2782, %v204, %v373
  %v2806 = vsel %vm2784, %v2805, %v542
  %v2807 = vsel %vm2786, %v2806, %v711
  %v2808 = vsel %vm2788, %v2807, %v880
  %v2809 = vsel %vm2790, %v2808, %v1049
  %v2810 = vsel %vm2792, %v2809, %v1218
  %v2811 = vsel %vm2794, %v2810, %v1387
  %v2812 = vsel %vm2782, %v1556, %v1725
  %v2813 = vsel %vm2784, %v2812, %v1894
  %v2814 = vsel %vm2786, %v2813, %v2063
  %v2815 = vsel %vm2788, %v2814, %v2232
  %v2816 = vsel %vm2790, %v2815, %v2401
  %v2817 = vsel %vm2792, %v2816, %v2570
  %v2818 = vsel %vm2794, %v2817, %v2739
  %v2819 = vadd.f32 %v2811, 0.0
  %v2820 = vadd.f32 %v2818, 0.0
  %v2822 = vrot.slane %v356, 7
  %v2825 = vrot.slane %v525, 6
  %v2828 = vrot.slane %v694, 5
  %v2831 = vrot.slane %v863, 4
  %v2834 = vrot.slane %v1032, 3
  %v2837 = vrot.slane %v1201, 2
  %v2840 = vrot.slane %v1370, 1
  %v2843 = vrot.slane %v1708, 7
  %v2846 = vrot.slane %v1877, 6
  %v2849 = vrot.slane %v2046, 5
  %v2852 = vrot.slane %v2215, 4
  %v2855 = vrot.slane %v2384, 3
  %v2858 = vrot.slane %v2553, 2
  %v2861 = vrot.slane %v2722, 1
  %v2863 = vsel %vm2782, %v187, %v2822
  %v2864 = vsel %vm2784, %v2863, %v2825
  %v2865 = vsel %vm2786, %v2864, %v2828
  %v2866 = vsel %vm2788, %v2865, %v2831
  %v2867 = vsel %vm2790, %v2866, %v2834
  %v2868 = vsel %vm2792, %v2867, %v2837
  %v2869 = vsel %vm2794, %v2868, %v2840
  %v2870 = vsel %vm2782, %v1539, %v2843
  %v2871 = vsel %vm2784, %v2870, %v2846
  %v2872 = vsel %vm2786, %v2871, %v2849
  %v2873 = vsel %vm2788, %v2872, %v2852
  %v2874 = vsel %vm2790, %v2873, %v2855
  %v2875 = vsel %vm2792, %v2874, %v2858
  %v2876 = vsel %vm2794, %v2875, %v2861
  %v2877 = vadd.f32 %v2869, 0.0
  %v2878 = vadd.f32 %v2876, 0.0
  %2879 = vst [vmem:[%s2] sm:$0xff] %v2803
  %2880 = vst [vmem:[%s2 + $0x8] sm:$0xff] %v2804
  %2881 = vst [vmem:[%s3] sm:$0xff] %v2819
  %2882 = vst [vmem:[%s3 + $0x8] sm:$0xff] %v2820
  %2883 = vst [vmem:[%s4] sm:$0xff] %v2877
  %2884 = vst [vmem:[%s4 + $0x8] sm:$0xff] %v2878
  // Predicated region
  $region10: #{ece_loss_pallas.1} parent=0 // pred_check
    _
  $region11: #{ece_loss_pallas.1} parent=0 // pred_check_branch
    %2886 = sbr.rel (0) target = $region13
  $region12: #{ece_loss_pallas.1} parent=0 // pred_region
    _
  $region13: #{ece_loss_pallas.1} parent=0 // pred_fallthru
    _
  // Predicated region
  $region14: #{ece_loss_pallas.1} parent=0 // pred_check
    _
  $region15: #{ece_loss_pallas.1} parent=0 // pred_check_branch
    %2888 = sbr.rel (0) target = $region17
  $region16: #{ece_loss_pallas.1} parent=0 // pred_region
    _
  $region17: #{ece_loss_pallas.1} parent=0 // pred_fallthru
    _
  // Predicated region
  $region18: #{ece_loss_pallas.1} parent=0 // pred_check
    _
  $region19: #{ece_loss_pallas.1} parent=0 // pred_check_branch
    %2890 = sbr.rel (0) target = $region21
  $region20: #{ece_loss_pallas.1} parent=0 // pred_region
    _
  $region21: #{ece_loss_pallas.1} parent=0 // pred_fallthru
    _
  // Predicated region
  $region22: #{ece_loss_pallas.1} parent=0 // pred_check
    _
  $region23: #{ece_loss_pallas.1} parent=0 // pred_check_branch
    %2892 = sbr.rel (0) target = $region25
  $region24: #{ece_loss_pallas.1} parent=0 // pred_region
    _
  $region25: #{ece_loss_pallas.1} parent=0 // pred_fallthru
    _
  // Predicated region
  $region26: #{ece_loss_pallas.1} parent=0 // pred_check
    _
  $region27: #{ece_loss_pallas.1} parent=0 // pred_check_branch
    %2894 = sbr.rel (0) target = $region29
  $region28: #{ece_loss_pallas.1} parent=0 // pred_region
    _
  $region29: #{ece_loss_pallas.1} parent=0 // pred_fallthru
    _
  // Predicated region
  $region30: #{ece_loss_pallas.1} parent=0 // pred_check
    _
  $region31: #{ece_loss_pallas.1} parent=0 // pred_check_branch
    %2896 = sbr.rel (0) target = $region33
  $region32: #{ece_loss_pallas.1} parent=0 // pred_region
    _
  $region33: #{ece_loss_pallas.1} parent=0 // pred_fallthru
    _

</llo_original>
